<compile_context>
chip_gen: v5e
topology: v5e:2x2
jax: 0.10.0
libtpu: 0.0.40
codegen_flags: <defaults>
</compile_context>

<pallas_src>
import functools

import jax
import jax.numpy as jnp
from jax.experimental import pallas as pl
from jax.experimental.pallas import tpu as pltpu


def _round_up(n, m):
    return ((n + m - 1) // m) * m


def _vmem_limit_bytes():
    try:
        cap = int(pltpu.get_tpu_info().vmem_capacity_bytes)
    except Exception:
        cap = 64 * 1024 * 1024                     # conservative (v7x physical)
    return max(32 * 1024 * 1024, min(cap * 3 // 4, 100 * 1024 * 1024))


def _choose_batch_block(N, per_image_bytes, budget_bytes):
    """Largest Nb dividing N that fits the VMEM budget, keeping >=2 grid steps
    when N > 1 so both v7x TensorCores get work on the 'parallel' batch axis."""
    best = 1
    for nb in range(1, N + 1):
        if N % nb:
            continue
        if nb * per_image_bytes > budget_bytes:
            continue
        if N > 1 and N // nb < 2:
            continue
        best = nb
    return best


def _mbconv_kernel(x_ref, w1_ref, b1_ref, wd_ref, b2_ref,
                   wse1_ref, wse2_ref, w3_ref, b3_ref,
                   o_ref, pad_ref,
                   *, Nb, H, W, Cin, Cmidp, Coutp, K, stride, padding,
                   shortcut, mm_dtype):
    Hout = (H + 2 * padding - K) // stride + 1
    Wout = (W + 2 * padding - K) // stride + 1
    Hp = H + 2 * padding
    Wp = W + 2 * padding
    sdt = pad_ref.dtype

    def mm(a, b):
        # MXU matmul; bf16 operands (default) with f32 accumulation.
        return jnp.dot(a.astype(mm_dtype), b,
                       preferred_element_type=jnp.float32)

    x2d = x_ref[...].reshape(Nb * H * W, Cin)

    # --- conv1 (1x1 expand, bn1 scale pre-folded into w1) + bias + SiLU -----
    h1 = mm(x2d, w1_ref[...]) + b1_ref[...]
    h1 = h1 * jax.nn.sigmoid(h1)

    # --- depthwise KxK conv (stride, same padding; bn2 scale pre-folded) ----
    # Zero only the halo strips (the interior is fully overwritten each step).
    # Re-zeroed every grid step so this stays correct when the batch grid axis
    # is split across TensorCores (each core owns a private scratch copy).
    if padding > 0:
        pad_ref[:, 0:padding, :, :] = jnp.zeros((Nb, padding, Wp, Cmidp), sdt)
        pad_ref[:, padding + H:Hp, :, :] = jnp.zeros((Nb, padding, Wp, Cmidp),
                                                     sdt)
        pad_ref[:, padding:padding + H, 0:padding, :] = jnp.zeros(
            (Nb, H, padding, Cmidp), sdt)
        pad_ref[:, padding:padding + H, padding + W:Wp, :] = jnp.zeros(
            (Nb, H, padding, Cmidp), sdt)
    pad_ref[:, padding:padding + H, padding:padding + W, :] = (
        h1.reshape(Nb, H, W, Cmidp).astype(sdt))

    wd = wd_ref[...]                                    # (K, K, Cmidp), f32
    acc = jnp.zeros((Nb, Hout, Wout, Cmidp), jnp.float32)
    for kw in range(K):                                 # static taps, unrolled
        if stride == 1:
            # One sublane-shifted read per kw; kh slices are vreg-row selects.
            col = pad_ref[:, :, kw:kw + Wout, :]        # (Nb, Hp, Wout, Cmidp)
            for kh in range(K):
                patch = col[:, kh:kh + Hout, :, :]
                acc = acc + patch.astype(jnp.float32) * wd[kh, kw, :]
        else:
            for kh in range(K):
                # Strided reads straight off the scratch ref (no value gather).
                patch = pad_ref[:, pl.ds(kh, Hout, stride=stride),
                                pl.ds(kw, Wout, stride=stride), :]
                acc = acc + patch.astype(jnp.float32) * wd[kh, kw, :]
    h2 = acc.reshape(Nb * Hout * Wout, Cmidp) + b2_ref[...]
    h2 = h2 * jax.nn.sigmoid(h2)

    # --- Squeeze-and-Excitation (per-image global spatial mean) -------------
    h2b = h2.reshape(Nb, Hout * Wout, Cmidp)
    sq = jnp.mean(h2b, axis=1)                          # (Nb, Cmidp)
    e = mm(sq, wse1_ref[...])
    e = e * jax.nn.sigmoid(e)                           # SiLU
    e = jax.nn.sigmoid(mm(e, wse2_ref[...]))            # (Nb, Cmidp)
    h2 = (h2b * e[:, None, :]).reshape(Nb * Hout * Wout, Cmidp)

    # --- conv3 (1x1 project, bn3 scale pre-folded) + residual ---------------
    h3 = mm(h2, w3_ref[...]) + b3_ref[...]              # (Nb*Hout*Wout, Coutp)
    if shortcut:
        xs = x2d
        if Coutp != Cin:                                # lane-pad the residual
            xs = jnp.concatenate(
                [xs, jnp.zeros((Nb * H * W, Coutp - Cin), xs.dtype)], axis=-1)
        h3 = h3 + xs
    o_ref[...] = h3.reshape(Nb, Hout * Wout, Coutp)


def prepare_params(p, *, matmul_dtype=jnp.bfloat16):
    """One-time host-side prep: pad Cmid (and large Cout) up to 128 lanes and
    cast the MXU operands.  Call once per layer and reuse across forwards."""
    Cin, Cmid = p["w1"].shape
    Cout = p["w3"].shape[1]
    Cmidp = _round_up(Cmid, 128)
    # Dense Cout below ~112 channels avoids 3-16x HBM write amplification;
    # pad to a multiple of 128 only when the padding overhead is small.
    Coutp = _round_up(Cout, 128) if Cout >= 112 else Cout
    dm = Cmidp - Cmid
    do = Coutp - Cout
    return {
        "w1": jnp.pad(p["w1"], ((0, 0), (0, dm))).astype(matmul_dtype),
        "b1": jnp.pad(p["b1"], ((0, 0), (0, dm))),
        "wd": jnp.pad(p["wd"], ((0, 0), (0, 0), (0, dm))),  # stays f32 (VPU)
        "b2": jnp.pad(p["b2"], ((0, 0), (0, dm))),
        "wse1": jnp.pad(p["wse1"], ((0, dm), (0, 0))).astype(matmul_dtype),
        "wse2": jnp.pad(p["wse2"], ((0, 0), (0, dm))).astype(matmul_dtype),
        "w3": jnp.pad(p["w3"], ((0, dm), (0, do))).astype(matmul_dtype),
        "b3": jnp.pad(p["b3"], ((0, 0), (0, do))),
        "meta": {"Cin": Cin, "Cmid": Cmid, "Cmidp": Cmidp,
                 "Cout": Cout, "Coutp": Coutp, "matmul_dtype": matmul_dtype},
    }


def mbconv_forward(x, prep, *, kernel_size=3, stride=1,
                   scratch_dtype=jnp.float32):
    """x: (N, H, W, Cin) float32 NHWC.  prep: output of prepare_params."""
    N, H, W, Cin = x.shape
    meta = prep["meta"]
    assert Cin == meta["Cin"], (Cin, meta["Cin"])
    Cmidp, Cout, Coutp = meta["Cmidp"], meta["Cout"], meta["Coutp"]
    K = kernel_size
    padding = (K - 1) // 2
    Hout = (H + 2 * padding - K) // stride + 1
    Wout = (W + 2 * padding - K) // stride + 1
    Hp, Wp = H + 2 * padding, W + 2 * padding
    shortcut = (stride == 1 and Cin == Cout)

    vmem_limit = _vmem_limit_bytes()
    sb = jnp.dtype(scratch_dtype).itemsize
    per_image = (2 * H * W * Cin * 4                 # double-buffered input
                 + 2 * Hout * Wout * Coutp * 4       # double-buffered output
                 + Hp * Wp * Cmidp * sb              # depthwise halo scratch
                 + 6 * Hout * Wout * Cmidp * 4)      # live h1/col/acc/h2/h3
    Nb = _choose_batch_block(N, per_image, vmem_limit // 2)

    kernel = functools.partial(
        _mbconv_kernel, Nb=Nb, H=H, W=W, Cin=Cin, Cmidp=Cmidp, Coutp=Coutp,
        K=K, stride=stride, padding=padding, shortcut=shortcut,
        mm_dtype=meta["matmul_dtype"])

    weights = (prep["w1"], prep["b1"], prep["wd"], prep["b2"],
               prep["wse1"], prep["wse2"], prep["w3"], prep["b3"])

    def full_spec(a):
        nd = a.ndim
        return pl.BlockSpec(a.shape, lambda n, _nd=nd: (0,) * _nd)

    grid_spec = pltpu.PrefetchScalarGridSpec(
        num_scalar_prefetch=0,
        grid=(N // Nb,),
        in_specs=[pl.BlockSpec((Nb, H, W, Cin), lambda n: (n, 0, 0, 0))] +
                 [full_spec(a) for a in weights],
        out_specs=pl.BlockSpec((Nb, Hout * Wout, Coutp), lambda n: (n, 0, 0)),
        scratch_shapes=[pltpu.VMEM((Nb, Hp, Wp, Cmidp), scratch_dtype)],
    )

    out = pl.pallas_call(
        kernel,
        out_shape=jax.ShapeDtypeStruct((N, Hout * Wout, Coutp), jnp.float32),
        grid_spec=grid_spec,
        compiler_params=pltpu.CompilerParams(
            dimension_semantics=("parallel",),
            vmem_limit_bytes=vmem_limit),
    )(x, *weights)

    if Coutp != Cout:
        out = out[:, :, :Cout]
    return out.reshape(N, Hout, Wout, Cout)


# ----------------------- pure-JAX reference (for checking) -----------------
def mbconv_reference(x, raw, *, kernel_size=3, stride=1, eps=1e-5):
    def bn(y, prm):
        g, b, m, v = prm
        return (y - m) / jnp.sqrt(v + eps) * g + b

    silu = lambda t: t * jax.nn.sigmoid(t)
    dn = ("NHWC", "HWIO", "NHWC")
    K = kernel_size
    pad = (K - 1) // 2
    Cmid = raw["w1"].shape[1]

    h = jax.lax.conv_general_dilated(x, raw["w1"][None, None], (1, 1), "VALID",
                                     dimension_numbers=dn)
    h = silu(bn(h, raw["bn1"]))
    h = jax.lax.conv_general_dilated(h, raw["wd"][:, :, None, :],
                                     (stride, stride),
                                     [(pad, pad), (pad, pad)],
                                     dimension_numbers=dn,
                                     feature_group_count=Cmid)
    h = silu(bn(h, raw["bn2"]))
    sq = jnp.mean(h, axis=(1, 2))
    e = silu(sq @ raw["wse1"])
    e = jax.nn.sigmoid(e @ raw["wse2"])
    h = h * e[:, None, None, :]
    o = jax.lax.conv_general_dilated(h, raw["w3"][None, None], (1, 1), "VALID",
                                     dimension_numbers=dn)
    o = bn(o, raw["bn3"])
    if stride == 1 and x.shape[-1] == o.shape[-1]:
        o = o + x
    return o


def make_params(key, in_channels, out_channels, kernel_size, expansion,
                reduction=16, eps=1e-5):
    Cin, Cout, K = in_channels, out_channels, kernel_size
    Cmid = Cin * expansion
    Cred = Cmid // reduction
    ks = jax.random.split(key, 20)
    rnd = lambda k, s, sc=0.2: sc * jax.random.normal(k, s, jnp.float32)

    def bn_params(k, C):
        k1, k2, k3, k4 = jax.random.split(k, 4)
        gamma = 1.0 + 0.1 * jax.random.normal(k1, (C,), jnp.float32)
        beta = 0.1 * jax.random.normal(k2, (C,), jnp.float32)
        mean = 0.1 * jax.random.normal(k3, (C,), jnp.float32)
        var = jax.random.uniform(k4, (C,), jnp.float32, 0.5, 1.5)
        return (gamma, beta, mean, var)

    raw = {
        "w1": rnd(ks[0], (Cin, Cmid)),
        "wd": rnd(ks[1], (K, K, Cmid)),
        "w3": rnd(ks[2], (Cmid, Cout)),
        "wse1": rnd(ks[3], (Cmid, Cred)),
        "wse2": rnd(ks[4], (Cred, Cmid)),
        "bn1": bn_params(ks[5], Cmid),
        "bn2": bn_params(ks[6], Cmid),
        "bn3": bn_params(ks[7], Cout),
    }

    def fold(prm):
        g, b, m, v = prm
        s = g / jnp.sqrt(v + eps)
        return s.reshape(1, -1), (b - m * s).reshape(1, -1)

    s1, b1 = fold(raw["bn1"])
    s2, b2 = fold(raw["bn2"])
    s3, b3 = fold(raw["bn3"])
    # BatchNorm scales folded straight into the conv weights (exact: the convs
    # are linear and the depthwise conv is per-channel).
    kernel_params = {
        "w1": raw["w1"] * s1,                    # (Cin, Cmid)
        "b1": b1,
        "wd": raw["wd"] * s2.reshape(1, 1, -1),  # (K, K, Cmid)
        "b2": b2,
        "wse1": raw["wse1"], "wse2": raw["wse2"],
        "w3": raw["w3"] * s3,                    # (Cmid, Cout)
        "b3": b3,
    }
    return kernel_params, raw


if __name__ == "__main__":
    kernel_size, stride, expansion = 3, 1, 6
    in_channels = out_channels = 8      # stride=1, Cin==Cout -> shortcut on
    N, H, W = 2, 16, 16

    key = jax.random.PRNGKey(0)
    kx, kx4, kp = jax.random.split(key, 3)
    x = jax.random.normal(kx, (N, H, W, in_channels), jnp.float32)

    params, raw = make_params(kp, in_channels, out_channels, kernel_size,
                              expansion)
    ref = jax.block_until_ready(
        mbconv_reference(x, raw, kernel_size=kernel_size, stride=stride))

    # f32-MXU run: tight check of the fused kernel vs the pure-JAX reference.
    prep_f32 = prepare_params(params, matmul_dtype=jnp.float32)
    out_f32 = jax.block_until_ready(
        mbconv_forward(x, prep_f32, kernel_size=kernel_size, stride=stride))
    assert out_f32.shape == ref.shape, (out_f32.shape, ref.shape)
    assert jnp.allclose(out_f32, ref, rtol=1e-4, atol=1e-4), (
        float(jnp.max(jnp.abs(out_f32 - ref))))

    # Default perf config: bf16 MXU operands (f32 accumulation) -> looser tol.
    prep_bf16 = prepare_params(params)
    out_bf16 = jax.block_until_ready(
        mbconv_forward(x, prep_bf16, kernel_size=kernel_size, stride=stride))
    assert jnp.allclose(out_bf16, ref, rtol=5e-2, atol=5e-2), (
        float(jnp.max(jnp.abs(out_bf16 - ref))))

    # Larger batch exercises Nb>1 images per grid step (Nb=2, grid=(2,)).
    x4 = jax.random.normal(kx4, (4, H, W, in_channels), jnp.float32)
    ref4 = jax.block_until_ready(
        mbconv_reference(x4, raw, kernel_size=kernel_size, stride=stride))
    out4 = jax.block_until_ready(
        mbconv_forward(x4, prep_bf16, kernel_size=kernel_size, stride=stride))
    assert out4.shape == ref4.shape, (out4.shape, ref4.shape)
    assert jnp.allclose(out4, ref4, rtol=5e-2, atol=5e-2), (
        float(jnp.max(jnp.abs(out4 - ref4))))

    print("KERNEL_OK")
</pallas_src>

<mosaic_0001>
module attributes {stable_mosaic.version = 11 : i64} {
  func.func @_mbconv_kernel(%arg0: i32, %arg1: memref<1x16x16x8xf32, #tpu.memory_space<vmem>>, %arg2: memref<8x128xf32, #tpu.memory_space<vmem>>, %arg3: memref<1x128xf32, #tpu.memory_space<vmem>>, %arg4: memref<3x3x128xf32, #tpu.memory_space<vmem>>, %arg5: memref<1x128xf32, #tpu.memory_space<vmem>>, %arg6: memref<128x3xf32, #tpu.memory_space<vmem>>, %arg7: memref<3x128xf32, #tpu.memory_space<vmem>>, %arg8: memref<128x8xf32, #tpu.memory_space<vmem>>, %arg9: memref<1x8xf32, #tpu.memory_space<vmem>>, %arg10: memref<1x256x8xf32, #tpu.memory_space<vmem>>, %arg11: memref<1x18x18x128xf32, #tpu.memory_space<vmem>>) attributes {dimension_semantics = [#tpu.dimension_semantics<parallel>], iteration_bounds = array<i64: 2>, scalar_prefetch = 0 : i64, scratch_operands = 1 : i64, tpu.core_type = #tpu.core_type<tc>, window_params = [{transform_indices = @transform_0, window_bounds = array<i64: 1, 16, 16, 8>}, {pipeline_mode = #tpu.pipeline_mode<synchronous>, transform_indices = @transform_1, window_bounds = array<i64: 8, 128>}, {pipeline_mode = #tpu.pipeline_mode<synchronous>, transform_indices = @transform_2, window_bounds = array<i64: 1, 128>}, {pipeline_mode = #tpu.pipeline_mode<synchronous>, transform_indices = @transform_3, window_bounds = array<i64: 3, 3, 128>}, {pipeline_mode = #tpu.pipeline_mode<synchronous>, transform_indices = @transform_4, window_bounds = array<i64: 1, 128>}, {pipeline_mode = #tpu.pipeline_mode<synchronous>, transform_indices = @transform_5, window_bounds = array<i64: 128, 3>}, {pipeline_mode = #tpu.pipeline_mode<synchronous>, transform_indices = @transform_6, window_bounds = array<i64: 3, 128>}, {pipeline_mode = #tpu.pipeline_mode<synchronous>, transform_indices = @transform_7, window_bounds = array<i64: 128, 8>}, {pipeline_mode = #tpu.pipeline_mode<synchronous>, transform_indices = @transform_8, window_bounds = array<i64: 1, 8>}, {transform_indices = @transform_9, window_bounds = array<i64: 1, 256, 8>}]} {
    %c0 = arith.constant 0 : index
    %c0_0 = arith.constant 0 : index
    %c0_1 = arith.constant 0 : index
    %c0_2 = arith.constant 0 : index
    %0 = vector.load %arg1[%c0, %c0_0, %c0_1, %c0_2] : memref<1x16x16x8xf32, #tpu.memory_space<vmem>>, vector<1x16x16x8xf32>
    %1 = vector.shape_cast %0 : vector<1x16x16x8xf32> to vector<256x8xf32>
    %c0_3 = arith.constant 0 : index
    %c0_4 = arith.constant 0 : index
    %2 = vector.load %arg2[%c0_3, %c0_4] : memref<8x128xf32, #tpu.memory_space<vmem>>, vector<8x128xf32>
    %cst = arith.constant dense<0.000000e+00> : vector<256x128xf32>
    %3 = tpu.matmul %1, %2, %cst {dimension_numbers = #tpu.dot_dimension_numbers<[1], [0], [0], [1], [0, 0, 1, 1], [], []>} : vector<256x8xf32>, vector<8x128xf32>, vector<256x128xf32> -> vector<256x128xf32>
    %c0_5 = arith.constant 0 : index
    %c0_6 = arith.constant 0 : index
    %4 = vector.load %arg3[%c0_5, %c0_6] : memref<1x128xf32, #tpu.memory_space<vmem>>, vector<1x128xf32>
    %5 = vector.broadcast %4 : vector<1x128xf32> to vector<256x128xf32>
    %6 = arith.addf %3, %5 : vector<256x128xf32>
    %7 = arith.negf %6 : vector<256x128xf32>
    %8 = math.exp %7 : vector<256x128xf32>
    %cst_7 = arith.constant 1.000000e+00 : f32
    %9 = vector.broadcast %cst_7 : f32 to vector<256x128xf32>
    %10 = arith.addf %9, %8 : vector<256x128xf32>
    %11 = arith.divf %9, %10 : vector<256x128xf32>
    %12 = arith.mulf %6, %11 : vector<256x128xf32>
    %cst_8 = arith.constant 0.000000e+00 : f32
    %13 = vector.broadcast %cst_8 : f32 to vector<1x1x18x128xf32>
    %c0_9 = arith.constant 0 : index
    %c0_10 = arith.constant 0 : index
    %c0_11 = arith.constant 0 : index
    %c0_12 = arith.constant 0 : index
    %14 = vector.load %arg11[%c0_9, %c0_10, %c0_11, %c0_12] : memref<1x18x18x128xf32, #tpu.memory_space<vmem>>, vector<1x1x18x128xf32>
    tpu.vector_store %arg11[%c0_9, %c0_10, %c0_11, %c0_12], %13 {strides = array<i32>} : memref<1x18x18x128xf32, #tpu.memory_space<vmem>>, vector<1x1x18x128xf32>,
    %cst_13 = arith.constant 0.000000e+00 : f32
    %15 = vector.broadcast %cst_13 : f32 to vector<1x1x18x128xf32>
    %c0_14 = arith.constant 0 : index
    %c17 = arith.constant 17 : index
    %c0_15 = arith.constant 0 : index
    %c0_16 = arith.constant 0 : index
    %16 = vector.load %arg11[%c0_14, %c17, %c0_15, %c0_16] : memref<1x18x18x128xf32, #tpu.memory_space<vmem>>, vector<1x1x18x128xf32>
    tpu.vector_store %arg11[%c0_14, %c17, %c0_15, %c0_16], %15 {strides = array<i32>} : memref<1x18x18x128xf32, #tpu.memory_space<vmem>>, vector<1x1x18x128xf32>,
    %cst_17 = arith.constant 0.000000e+00 : f32
    %17 = vector.broadcast %cst_17 : f32 to vector<1x16x1x128xf32>
    %c0_18 = arith.constant 0 : index
    %c1 = arith.constant 1 : index
    %c0_19 = arith.constant 0 : index
    %c0_20 = arith.constant 0 : index
    %18 = vector.load %arg11[%c0_18, %c1, %c0_19, %c0_20] : memref<1x18x18x128xf32, #tpu.memory_space<vmem>>, vector<1x16x1x128xf32>
    tpu.vector_store %arg11[%c0_18, %c1, %c0_19, %c0_20], %17 {strides = array<i32>} : memref<1x18x18x128xf32, #tpu.memory_space<vmem>>, vector<1x16x1x128xf32>,
    %cst_21 = arith.constant 0.000000e+00 : f32
    %19 = vector.broadcast %cst_21 : f32 to vector<1x16x1x128xf32>
    %c0_22 = arith.constant 0 : index
    %c1_23 = arith.constant 1 : index
    %c17_24 = arith.constant 17 : index
    %c0_25 = arith.constant 0 : index
    %20 = vector.load %arg11[%c0_22, %c1_23, %c17_24, %c0_25] : memref<1x18x18x128xf32, #tpu.memory_space<vmem>>, vector<1x16x1x128xf32>
    tpu.vector_store %arg11[%c0_22, %c1_23, %c17_24, %c0_25], %19 {strides = array<i32>} : memref<1x18x18x128xf32, #tpu.memory_space<vmem>>, vector<1x16x1x128xf32>,
    %21 = vector.shape_cast %12 : vector<256x128xf32> to vector<1x16x16x128xf32>
    %c0_26 = arith.constant 0 : index
    %c1_27 = arith.constant 1 : index
    %c1_28 = arith.constant 1 : index
    %c0_29 = arith.constant 0 : index
    %22 = vector.load %arg11[%c0_26, %c1_27, %c1_28, %c0_29] : memref<1x18x18x128xf32, #tpu.memory_space<vmem>>, vector<1x16x16x128xf32>
    tpu.vector_store %arg11[%c0_26, %c1_27, %c1_28, %c0_29], %21 {strides = array<i32>} : memref<1x18x18x128xf32, #tpu.memory_space<vmem>>, vector<1x16x16x128xf32>,
    %c0_30 = arith.constant 0 : index
    %c0_31 = arith.constant 0 : index
    %c0_32 = arith.constant 0 : index
    %23 = vector.load %arg4[%c0_30, %c0_31, %c0_32] : memref<3x3x128xf32, #tpu.memory_space<vmem>>, vector<3x3x128xf32>
    %cst_33 = arith.constant 0.000000e+00 : f32
    %24 = vector.broadcast %cst_33 : f32 to vector<1x16x16x128xf32>
    %c0_34 = arith.constant 0 : index
    %c0_35 = arith.constant 0 : index
    %c0_36 = arith.constant 0 : index
    %c0_37 = arith.constant 0 : index
    %25 = vector.load %arg11[%c0_34, %c0_35, %c0_36, %c0_37] : memref<1x18x18x128xf32, #tpu.memory_space<vmem>>, vector<1x18x16x128xf32>
    %26 = vector.extract_strided_slice %25 {offsets = [0, 0, 0, 0], sizes = [1, 16, 16, 128], strides = [1, 1, 1, 1]} : vector<1x18x16x128xf32> to vector<1x16x16x128xf32>
    %27 = vector.extract_strided_slice %23 {offsets = [0, 0, 0], sizes = [1, 1, 128], strides = [1, 1, 1]} : vector<3x3x128xf32> to vector<1x1x128xf32>
    %28 = vector.shape_cast %27 : vector<1x1x128xf32> to vector<128xf32>
    %29 = vector.shape_cast %28 : vector<128xf32> to vector<1x1x1x128xf32>
    %30 = vector.broadcast %29 : vector<1x1x1x128xf32> to vector<1x16x16x128xf32>
    %31 = arith.mulf %26, %30 : vector<1x16x16x128xf32>
    %32 = arith.addf %24, %31 : vector<1x16x16x128xf32>
    %33 = vector.extract_strided_slice %25 {offsets = [0, 1, 0, 0], sizes = [1, 16, 16, 128], strides = [1, 1, 1, 1]} : vector<1x18x16x128xf32> to vector<1x16x16x128xf32>
    %34 = vector.extract_strided_slice %23 {offsets = [1, 0, 0], sizes = [1, 1, 128], strides = [1, 1, 1]} : vector<3x3x128xf32> to vector<1x1x128xf32>
    %35 = vector.shape_cast %34 : vector<1x1x128xf32> to vector<128xf32>
    %36 = vector.shape_cast %35 : vector<128xf32> to vector<1x1x1x128xf32>
    %37 = vector.broadcast %36 : vector<1x1x1x128xf32> to vector<1x16x16x128xf32>
    %38 = arith.mulf %33, %37 : vector<1x16x16x128xf32>
    %39 = arith.addf %32, %38 : vector<1x16x16x128xf32>
    %40 = vector.extract_strided_slice %25 {offsets = [0, 2, 0, 0], sizes = [1, 16, 16, 128], strides = [1, 1, 1, 1]} : vector<1x18x16x128xf32> to vector<1x16x16x128xf32>
    %41 = vector.extract_strided_slice %23 {offsets = [2, 0, 0], sizes = [1, 1, 128], strides = [1, 1, 1]} : vector<3x3x128xf32> to vector<1x1x128xf32>
    %42 = vector.shape_cast %41 : vector<1x1x128xf32> to vector<128xf32>
    %43 = vector.shape_cast %42 : vector<128xf32> to vector<1x1x1x128xf32>
    %44 = vector.broadcast %43 : vector<1x1x1x128xf32> to vector<1x16x16x128xf32>
    %45 = arith.mulf %40, %44 : vector<1x16x16x128xf32>
    %46 = arith.addf %39, %45 : vector<1x16x16x128xf32>
    %c0_38 = arith.constant 0 : index
    %c0_39 = arith.constant 0 : index
    %c1_40 = arith.constant 1 : index
    %c0_41 = arith.constant 0 : index
    %47 = vector.load %arg11[%c0_38, %c0_39, %c1_40, %c0_41] : memref<1x18x18x128xf32, #tpu.memory_space<vmem>>, vector<1x18x16x128xf32>
    %48 = vector.extract_strided_slice %47 {offsets = [0, 0, 0, 0], sizes = [1, 16, 16, 128], strides = [1, 1, 1, 1]} : vector<1x18x16x128xf32> to vector<1x16x16x128xf32>
    %49 = vector.extract_strided_slice %23 {offsets = [0, 1, 0], sizes = [1, 1, 128], strides = [1, 1, 1]} : vector<3x3x128xf32> to vector<1x1x128xf32>
    %50 = vector.shape_cast %49 : vector<1x1x128xf32> to vector<128xf32>
    %51 = vector.shape_cast %50 : vector<128xf32> to vector<1x1x1x128xf32>
    %52 = vector.broadcast %51 : vector<1x1x1x128xf32> to vector<1x16x16x128xf32>
    %53 = arith.mulf %48, %52 : vector<1x16x16x128xf32>
    %54 = arith.addf %46, %53 : vector<1x16x16x128xf32>
    %55 = vector.extract_strided_slice %47 {offsets = [0, 1, 0, 0], sizes = [1, 16, 16, 128], strides = [1, 1, 1, 1]} : vector<1x18x16x128xf32> to vector<1x16x16x128xf32>
    %56 = vector.extract_strided_slice %23 {offsets = [1, 1, 0], sizes = [1, 1, 128], strides = [1, 1, 1]} : vector<3x3x128xf32> to vector<1x1x128xf32>
    %57 = vector.shape_cast %56 : vector<1x1x128xf32> to vector<128xf32>
    %58 = vector.shape_cast %57 : vector<128xf32> to vector<1x1x1x128xf32>
    %59 = vector.broadcast %58 : vector<1x1x1x128xf32> to vector<1x16x16x128xf32>
    %60 = arith.mulf %55, %59 : vector<1x16x16x128xf32>
    %61 = arith.addf %54, %60 : vector<1x16x16x128xf32>
    %62 = vector.extract_strided_slice %47 {offsets = [0, 2, 0, 0], sizes = [1, 16, 16, 128], strides = [1, 1, 1, 1]} : vector<1x18x16x128xf32> to vector<1x16x16x128xf32>
    %63 = vector.extract_strided_slice %23 {offsets = [2, 1, 0], sizes = [1, 1, 128], strides = [1, 1, 1]} : vector<3x3x128xf32> to vector<1x1x128xf32>
    %64 = vector.shape_cast %63 : vector<1x1x128xf32> to vector<128xf32>
    %65 = vector.shape_cast %64 : vector<128xf32> to vector<1x1x1x128xf32>
    %66 = vector.broadcast %65 : vector<1x1x1x128xf32> to vector<1x16x16x128xf32>
    %67 = arith.mulf %62, %66 : vector<1x16x16x128xf32>
    %68 = arith.addf %61, %67 : vector<1x16x16x128xf32>
    %c0_42 = arith.constant 0 : index
    %c0_43 = arith.constant 0 : index
    %c2 = arith.constant 2 : index
    %c0_44 = arith.constant 0 : index
    %69 = vector.load %arg11[%c0_42, %c0_43, %c2, %c0_44] : memref<1x18x18x128xf32, #tpu.memory_space<vmem>>, vector<1x18x16x128xf32>
    %70 = vector.extract_strided_slice %69 {offsets = [0, 0, 0, 0], sizes = [1, 16, 16, 128], strides = [1, 1, 1, 1]} : vector<1x18x16x128xf32> to vector<1x16x16x128xf32>
    %71 = vector.extract_strided_slice %23 {offsets = [0, 2, 0], sizes = [1, 1, 128], strides = [1, 1, 1]} : vector<3x3x128xf32> to vector<1x1x128xf32>
    %72 = vector.shape_cast %71 : vector<1x1x128xf32> to vector<128xf32>
    %73 = vector.shape_cast %72 : vector<128xf32> to vector<1x1x1x128xf32>
    %74 = vector.broadcast %73 : vector<1x1x1x128xf32> to vector<1x16x16x128xf32>
    %75 = arith.mulf %70, %74 : vector<1x16x16x128xf32>
    %76 = arith.addf %68, %75 : vector<1x16x16x128xf32>
    %77 = vector.extract_strided_slice %69 {offsets = [0, 1, 0, 0], sizes = [1, 16, 16, 128], strides = [1, 1, 1, 1]} : vector<1x18x16x128xf32> to vector<1x16x16x128xf32>
    %78 = vector.extract_strided_slice %23 {offsets = [1, 2, 0], sizes = [1, 1, 128], strides = [1, 1, 1]} : vector<3x3x128xf32> to vector<1x1x128xf32>
    %79 = vector.shape_cast %78 : vector<1x1x128xf32> to vector<128xf32>
    %80 = vector.shape_cast %79 : vector<128xf32> to vector<1x1x1x128xf32>
    %81 = vector.broadcast %80 : vector<1x1x1x128xf32> to vector<1x16x16x128xf32>
    %82 = arith.mulf %77, %81 : vector<1x16x16x128xf32>
    %83 = arith.addf %76, %82 : vector<1x16x16x128xf32>
    %84 = vector.extract_strided_slice %69 {offsets = [0, 2, 0, 0], sizes = [1, 16, 16, 128], strides = [1, 1, 1, 1]} : vector<1x18x16x128xf32> to vector<1x16x16x128xf32>
    %85 = vector.extract_strided_slice %23 {offsets = [2, 2, 0], sizes = [1, 1, 128], strides = [1, 1, 1]} : vector<3x3x128xf32> to vector<1x1x128xf32>
    %86 = vector.shape_cast %85 : vector<1x1x128xf32> to vector<128xf32>
    %87 = vector.shape_cast %86 : vector<128xf32> to vector<1x1x1x128xf32>
    %88 = vector.broadcast %87 : vector<1x1x1x128xf32> to vector<1x16x16x128xf32>
    %89 = arith.mulf %84, %88 : vector<1x16x16x128xf32>
    %90 = arith.addf %83, %89 : vector<1x16x16x128xf32>
    %91 = vector.shape_cast %90 : vector<1x16x16x128xf32> to vector<256x128xf32>
    %c0_45 = arith.constant 0 : index
    %c0_46 = arith.constant 0 : index
    %92 = vector.load %arg5[%c0_45, %c0_46] : memref<1x128xf32, #tpu.memory_space<vmem>>, vector<1x128xf32>
    %93 = vector.broadcast %92 : vector<1x128xf32> to vector<256x128xf32>
    %94 = arith.addf %91, %93 : vector<256x128xf32>
    %95 = arith.negf %94 : vector<256x128xf32>
    %96 = math.exp %95 : vector<256x128xf32>
    %cst_47 = arith.constant 1.000000e+00 : f32
    %97 = vector.broadcast %cst_47 : f32 to vector<256x128xf32>
    %98 = arith.addf %97, %96 : vector<256x128xf32>
    %99 = arith.divf %97, %98 : vector<256x128xf32>
    %100 = arith.mulf %94, %99 : vector<256x128xf32>
    %101 = vector.shape_cast %100 : vector<256x128xf32> to vector<1x256x128xf32>
    %cst_48 = arith.constant dense<0.000000e+00> : vector<1x128xf32>
    %102 = vector.multi_reduction <add>, %101, %cst_48 [1] : vector<1x256x128xf32> to vector<1x128xf32>
    %cst_49 = arith.constant 2.560000e+02 : f32
    %103 = vector.broadcast %cst_49 : f32 to vector<1x128xf32>
    %104 = arith.divf %102, %103 : vector<1x128xf32>
    %c0_50 = arith.constant 0 : index
    %c0_51 = arith.constant 0 : index
    %105 = vector.load %arg6[%c0_50, %c0_51] : memref<128x3xf32, #tpu.memory_space<vmem>>, vector<128x3xf32>
    %cst_52 = arith.constant dense<0.000000e+00> : vector<1x3xf32>
    %106 = tpu.matmul %104, %105, %cst_52 {dimension_numbers = #tpu.dot_dimension_numbers<[1], [0], [0], [1], [0, 0, 1, 1], [], []>} : vector<1x128xf32>, vector<128x3xf32>, vector<1x3xf32> -> vector<1x3xf32>
    %107 = arith.negf %106 : vector<1x3xf32>
    %108 = math.exp %107 : vector<1x3xf32>
    %cst_53 = arith.constant 1.000000e+00 : f32
    %109 = vector.broadcast %cst_53 : f32 to vector<1x3xf32>
    %110 = arith.addf %109, %108 : vector<1x3xf32>
    %111 = arith.divf %109, %110 : vector<1x3xf32>
    %112 = arith.mulf %106, %111 : vector<1x3xf32>
    %c0_54 = arith.constant 0 : index
    %c0_55 = arith.constant 0 : index
    %113 = vector.load %arg7[%c0_54, %c0_55] : memref<3x128xf32, #tpu.memory_space<vmem>>, vector<3x128xf32>
    %cst_56 = arith.constant dense<0.000000e+00> : vector<1x128xf32>
    %114 = tpu.matmul %112, %113, %cst_56 {dimension_numbers = #tpu.dot_dimension_numbers<[1], [0], [0], [1], [0, 0, 1, 1], [], []>} : vector<1x3xf32>, vector<3x128xf32>, vector<1x128xf32> -> vector<1x128xf32>
    %115 = arith.negf %114 : vector<1x128xf32>
    %116 = math.exp %115 : vector<1x128xf32>
    %cst_57 = arith.constant 1.000000e+00 : f32
    %117 = vector.broadcast %cst_57 : f32 to vector<1x128xf32>
    %118 = arith.addf %117, %116 : vector<1x128xf32>
    %119 = arith.divf %117, %118 : vector<1x128xf32>
    %120 = vector.shape_cast %119 : vector<1x128xf32> to vector<1x1x128xf32>
    %121 = vector.broadcast %120 : vector<1x1x128xf32> to vector<1x256x128xf32>
    %122 = arith.mulf %101, %121 : vector<1x256x128xf32>
    %123 = vector.shape_cast %122 : vector<1x256x128xf32> to vector<256x128xf32>
    %c0_58 = arith.constant 0 : index
    %c0_59 = arith.constant 0 : index
    %124 = vector.load %arg8[%c0_58, %c0_59] : memref<128x8xf32, #tpu.memory_space<vmem>>, vector<128x8xf32>
    %cst_60 = arith.constant dense<0.000000e+00> : vector<256x8xf32>
    %125 = tpu.matmul %123, %124, %cst_60 {dimension_numbers = #tpu.dot_dimension_numbers<[1], [0], [0], [1], [0, 0, 1, 1], [], []>} : vector<256x128xf32>, vector<128x8xf32>, vector<256x8xf32> -> vector<256x8xf32>
    %c0_61 = arith.constant 0 : index
    %c0_62 = arith.constant 0 : index
    %126 = vector.load %arg9[%c0_61, %c0_62] : memref<1x8xf32, #tpu.memory_space<vmem>>, vector<1x8xf32>
    %127 = vector.broadcast %126 : vector<1x8xf32> to vector<256x8xf32>
    %128 = arith.addf %125, %127 : vector<256x8xf32>
    %129 = arith.addf %128, %1 : vector<256x8xf32>
    %130 = vector.shape_cast %129 : vector<256x8xf32> to vector<1x256x8xf32>
    %c0_63 = arith.constant 0 : index
    %c0_64 = arith.constant 0 : index
    %c0_65 = arith.constant 0 : index
    %131 = vector.load %arg10[%c0_63, %c0_64, %c0_65] : memref<1x256x8xf32, #tpu.memory_space<vmem>>, vector<1x256x8xf32>
    tpu.vector_store %arg10[%c0_63, %c0_64, %c0_65], %130 {strides = array<i32>} : memref<1x256x8xf32, #tpu.memory_space<vmem>>, vector<1x256x8xf32>,
    return
  }
  func.func @transform_0(%arg0: i32) -> (i32, i32, i32, i32) {
    %c0_i32 = arith.constant 0 : i32
    %c0_i32_0 = arith.constant 0 : i32
    %c0_i32_1 = arith.constant 0 : i32
    %c0_i32_2 = arith.constant 0 : i32
    return %arg0, %c0_i32, %c0_i32_0, %c0_i32_1 : i32, i32, i32, i32
  }
  func.func @transform_1(%arg0: i32) -> (i32, i32) {
    %c0_i32 = arith.constant 0 : i32
    %c0_i32_0 = arith.constant 0 : i32
    %c0_i32_1 = arith.constant 0 : i32
    return %c0_i32, %c0_i32_0 : i32, i32
  }
  func.func @transform_2(%arg0: i32) -> (i32, i32) {
    %c0_i32 = arith.constant 0 : i32
    %c0_i32_0 = arith.constant 0 : i32
    %c0_i32_1 = arith.constant 0 : i32
    return %c0_i32, %c0_i32_0 : i32, i32
  }
  func.func @transform_3(%arg0: i32) -> (i32, i32, i32) {
    %c0_i32 = arith.constant 0 : i32
    %c0_i32_0 = arith.constant 0 : i32
    %c0_i32_1 = arith.constant 0 : i32
    %c0_i32_2 = arith.constant 0 : i32
    return %c0_i32, %c0_i32_0, %c0_i32_1 : i32, i32, i32
  }
  func.func @transform_4(%arg0: i32) -> (i32, i32) {
    %c0_i32 = arith.constant 0 : i32
    %c0_i32_0 = arith.constant 0 : i32
    %c0_i32_1 = arith.constant 0 : i32
    return %c0_i32, %c0_i32_0 : i32, i32
  }
  func.func @transform_5(%arg0: i32) -> (i32, i32) {
    %c0_i32 = arith.constant 0 : i32
    %c0_i32_0 = arith.constant 0 : i32
    %c0_i32_1 = arith.constant 0 : i32
    return %c0_i32, %c0_i32_0 : i32, i32
  }
  func.func @transform_6(%arg0: i32) -> (i32, i32) {
    %c0_i32 = arith.constant 0 : i32
    %c0_i32_0 = arith.constant 0 : i32
    %c0_i32_1 = arith.constant 0 : i32
    return %c0_i32, %c0_i32_0 : i32, i32
  }
  func.func @transform_7(%arg0: i32) -> (i32, i32) {
    %c0_i32 = arith.constant 0 : i32
    %c0_i32_0 = arith.constant 0 : i32
    %c0_i32_1 = arith.constant 0 : i32
    return %c0_i32, %c0_i32_0 : i32, i32
  }
  func.func @transform_8(%arg0: i32) -> (i32, i32) {
    %c0_i32 = arith.constant 0 : i32
    %c0_i32_0 = arith.constant 0 : i32
    %c0_i32_1 = arith.constant 0 : i32
    return %c0_i32, %c0_i32_0 : i32, i32
  }
  func.func @transform_9(%arg0: i32) -> (i32, i32, i32) {
    %c0_i32 = arith.constant 0 : i32
    %c0_i32_0 = arith.constant 0 : i32
    %c0_i32_1 = arith.constant 0 : i32
    return %arg0, %c0_i32, %c0_i32_0 : i32, i32, i32
  }
}

</mosaic_0001>

<llo_original>
// kernel: tpu_custom_call.1
$region0: #{tpu_custom_call.1}
  #allocation0 [shape = 'u32[]', space=smem, size = 0x4, offset = 0x4, fixed_abs, tag = 'smem constant byte address 0x4 - core index']
  #allocation1 [shape = 'u32[72,128]{1,0:T(1,128)}', space=vmem, size = 0x9000, scoped, tag = 'internal scratch']
  #allocation2 [shape = 'f32[1,18,18,128]{3,2,1,0:T(8,128)}', space=vmem, size = 0x36000, scoped, tag = 'scratch operand']
  %s0 = inlined_call_operand.vmem [shape: f32[2,16,16,8], index: 0, kind: input, shape index: {}]
  %s1 = inlined_call_operand.vmem [shape: f32[8,128], index: 1, kind: input, shape index: {}]
  %s2 = inlined_call_operand.vmem [shape: f32[1,128], index: 2, kind: input, shape index: {}]
  %s3 = inlined_call_operand.vmem [shape: f32[3,3,128], index: 3, kind: input, shape index: {}]
  %s4 = inlined_call_operand.vmem [shape: f32[1,128], index: 4, kind: input, shape index: {}]
  %s5 = inlined_call_operand.vmem [shape: f32[128,3], index: 5, kind: input, shape index: {}]
  %s6 = inlined_call_operand.vmem [shape: f32[3,128], index: 6, kind: input, shape index: {}]
  %s7 = inlined_call_operand.vmem [shape: f32[128,8], index: 7, kind: input, shape index: {}]
  %s8 = inlined_call_operand.vmem [shape: f32[1,8], index: 8, kind: input, shape index: {}]
  %s9 = inlined_call_operand.vmem [shape: f32[2,256,8], index: 9, kind: output, shape index: {}]
  %s10 = sld [smem:[#allocation0]]
  $region69: #{tpu_custom_call.1} parent=0
    _
  %s12 = ssub.s32 1, %s10
  %s13 = scalar_select 0, %s12, %s10
  loop: start=0, step=1, limit=4
  $region2: #{tpu_custom_call.1} parent=0 // loop_pre_header
    _
  $region3: #{tpu_custom_call.1} parent=0 // loop_header
    %s15 = sphi 0, %s19
    %p16 = scmp.ge.s32.totalorder %s15, 4
    %s25 = sphi 0, %s27
    %s28 = sphi 0, %s25
    %s29 = sphi 0, %s28
    %s45 = sphi 0, %s29
    %s49 = sphi 0, %s49
    %s51 = sphi 0, %s49
    %s52 = sphi 0, %s51
    %s66 = sphi 0, %s52
    %s70 = sphi 0, %s70
    %s72 = sphi 0, %s70
    %s73 = sphi 0, %s72
    %s87 = sphi 0, %s73
    %s91 = sphi 0, %s91
    %s93 = sphi 0, %s91
    %s94 = sphi 0, %s93
    %s108 = sphi 0, %s94
    %s112 = sphi 0, %s112
    %s114 = sphi 0, %s112
    %s115 = sphi 0, %s114
    %s129 = sphi 0, %s115
    %s133 = sphi 0, %s133
    %s135 = sphi 0, %s133
    %s136 = sphi 0, %s135
    %s150 = sphi 0, %s136
    %s154 = sphi 0, %s154
    %s156 = sphi 0, %s154
    %s157 = sphi 0, %s156
    %s171 = sphi 0, %s157
    %s175 = sphi 0, %s175
    %s177 = sphi 0, %s175
    %s178 = sphi 0, %s177
    %s192 = sphi 0, %s178
    %s196 = sphi 0, %s196
    %s198 = sphi 0, %s196
    %s199 = sphi 0, %s198
    %s213 = sphi 0, %s199
    %s219 = sphi 0, %s221
    %s222 = sphi 0, %s219
    %s223 = sphi 0, %s222
    %s239 = sphi 0, %s223
  $region4: #{tpu_custom_call.1} parent=0 // loop_header_branch
    %18 = sbr.rel (%p16) target = $region8
  $region5: #{tpu_custom_call.1} parent=0 // loop_body
    %s20 = ssub.s32 %s15, 1
    %s21 = ssub.s32 %s15, 2
    %s22 = sadd.s32 %s15, 1
    %s23 = ssub.s32 %s15, %s22
    %p24 = scmp.eq.s32.totalorder %s23, 0
    %s26 = sadd.s32 %s25, 1
    %s27 = scalar_select %p24, %s25, %s26
    %p30 = pneg %p24
    %p31 = scmp.eq.s32.totalorder %s15, 1
    %p32 = por %p30, %p31
    %p33 = scmp.ne.s32.totalorder %s25, %s28
    %p34 = scmp.eq.s32.totalorder %s15, 0
    %p35 = por %p33, %p34
    %p36 = scmp.ne.s32.totalorder %s25, %s28
    %p37 = scmp.eq.s32.totalorder %s20, 1
    %p38 = por %p36, %p37
    %p39 = scmp.ne.s32.totalorder %s28, %s29
    %p40 = scmp.eq.s32.totalorder %s20, 0
    %p41 = por %p39, %p40
    %p42 = scmp.ne.s32.totalorder %s28, %s29
    %p43 = scmp.eq.s32.totalorder %s21, 1
    %p44 = por %p42, %p43
    %p46 = scmp.ne.s32.totalorder %s29, %s45
    %p47 = scmp.eq.s32.totalorder %s21, 0
    %p48 = por %p46, %p47
    %s50 = sadd.s32 %s49, 1
    %p53 = scmp.eq.s32.totalorder %s15, 1
    %p54 = scmp.ne.s32.totalorder %s49, %s51
    %p55 = scmp.eq.s32.totalorder %s15, 0
    %p56 = por %p54, %p55
    %p57 = scmp.ne.s32.totalorder %s49, %s51
    %p58 = scmp.eq.s32.totalorder %s20, 1
    %p59 = por %p57, %p58
    %p60 = scmp.ne.s32.totalorder %s51, %s52
    %p61 = scmp.eq.s32.totalorder %s20, 0
    %p62 = por %p60, %p61
    %p63 = scmp.ne.s32.totalorder %s51, %s52
    %p64 = scmp.eq.s32.totalorder %s21, 1
    %p65 = por %p63, %p64
    %p67 = scmp.ne.s32.totalorder %s52, %s66
    %p68 = scmp.eq.s32.totalorder %s21, 0
    %p69 = por %p67, %p68
    %s71 = sadd.s32 %s70, 1
    %p74 = scmp.eq.s32.totalorder %s15, 1
    %p75 = scmp.ne.s32.totalorder %s70, %s72
    %p76 = scmp.eq.s32.totalorder %s15, 0
    %p77 = por %p75, %p76
    %p78 = scmp.ne.s32.totalorder %s70, %s72
    %p79 = scmp.eq.s32.totalorder %s20, 1
    %p80 = por %p78, %p79
    %p81 = scmp.ne.s32.totalorder %s72, %s73
    %p82 = scmp.eq.s32.totalorder %s20, 0
    %p83 = por %p81, %p82
    %p84 = scmp.ne.s32.totalorder %s72, %s73
    %p85 = scmp.eq.s32.totalorder %s21, 1
    %p86 = por %p84, %p85
    %p88 = scmp.ne.s32.totalorder %s73, %s87
    %p89 = scmp.eq.s32.totalorder %s21, 0
    %p90 = por %p88, %p89
    %s92 = sadd.s32 %s91, 1
    %p95 = scmp.eq.s32.totalorder %s15, 1
    %p96 = scmp.ne.s32.totalorder %s91, %s93
    %p97 = scmp.eq.s32.totalorder %s15, 0
    %p98 = por %p96, %p97
    %p99 = scmp.ne.s32.totalorder %s91, %s93
    %p100 = scmp.eq.s32.totalorder %s20, 1
    %p101 = por %p99, %p100
    %p102 = scmp.ne.s32.totalorder %s93, %s94
    %p103 = scmp.eq.s32.totalorder %s20, 0
    %p104 = por %p102, %p103
    %p105 = scmp.ne.s32.totalorder %s93, %s94
    %p106 = scmp.eq.s32.totalorder %s21, 1
    %p107 = por %p105, %p106
    %p109 = scmp.ne.s32.totalorder %s94, %s108
    %p110 = scmp.eq.s32.totalorder %s21, 0
    %p111 = por %p109, %p110
    %s113 = sadd.s32 %s112, 1
    %p116 = scmp.eq.s32.totalorder %s15, 1
    %p117 = scmp.ne.s32.totalorder %s112, %s114
    %p118 = scmp.eq.s32.totalorder %s15, 0
    %p119 = por %p117, %p118
    %p120 = scmp.ne.s32.totalorder %s112, %s114
    %p121 = scmp.eq.s32.totalorder %s20, 1
    %p122 = por %p120, %p121
    %p123 = scmp.ne.s32.totalorder %s114, %s115
    %p124 = scmp.eq.s32.totalorder %s20, 0
    %p125 = por %p123, %p124
    %p126 = scmp.ne.s32.totalorder %s114, %s115
    %p127 = scmp.eq.s32.totalorder %s21, 1
    %p128 = por %p126, %p127
    %p130 = scmp.ne.s32.totalorder %s115, %s129
    %p131 = scmp.eq.s32.totalorder %s21, 0
    %p132 = por %p130, %p131
    %s134 = sadd.s32 %s133, 1
    %p137 = scmp.eq.s32.totalorder %s15, 1
    %p138 = scmp.ne.s32.totalorder %s133, %s135
    %p139 = scmp.eq.s32.totalorder %s15, 0
    %p140 = por %p138, %p139
    %p141 = scmp.ne.s32.totalorder %s133, %s135
    %p142 = scmp.eq.s32.totalorder %s20, 1
    %p143 = por %p141, %p142
    %p144 = scmp.ne.s32.totalorder %s135, %s136
    %p145 = scmp.eq.s32.totalorder %s20, 0
    %p146 = por %p144, %p145
    %p147 = scmp.ne.s32.totalorder %s135, %s136
    %p148 = scmp.eq.s32.totalorder %s21, 1
    %p149 = por %p147, %p148
    %p151 = scmp.ne.s32.totalorder %s136, %s150
    %p152 = scmp.eq.s32.totalorder %s21, 0
    %p153 = por %p151, %p152
    %s155 = sadd.s32 %s154, 1
    %p158 = scmp.eq.s32.totalorder %s15, 1
    %p159 = scmp.ne.s32.totalorder %s154, %s156
    %p160 = scmp.eq.s32.totalorder %s15, 0
    %p161 = por %p159, %p160
    %p162 = scmp.ne.s32.totalorder %s154, %s156
    %p163 = scmp.eq.s32.totalorder %s20, 1
    %p164 = por %p162, %p163
    %p165 = scmp.ne.s32.totalorder %s156, %s157
    %p166 = scmp.eq.s32.totalorder %s20, 0
    %p167 = por %p165, %p166
    %p168 = scmp.ne.s32.totalorder %s156, %s157
    %p169 = scmp.eq.s32.totalorder %s21, 1
    %p170 = por %p168, %p169
    %p172 = scmp.ne.s32.totalorder %s157, %s171
    %p173 = scmp.eq.s32.totalorder %s21, 0
    %p174 = por %p172, %p173
    %s176 = sadd.s32 %s175, 1
    %p179 = scmp.eq.s32.totalorder %s15, 1
    %p180 = scmp.ne.s32.totalorder %s175, %s177
    %p181 = scmp.eq.s32.totalorder %s15, 0
    %p182 = por %p180, %p181
    %p183 = scmp.ne.s32.totalorder %s175, %s177
    %p184 = scmp.eq.s32.totalorder %s20, 1
    %p185 = por %p183, %p184
    %p186 = scmp.ne.s32.totalorder %s177, %s178
    %p187 = scmp.eq.s32.totalorder %s20, 0
    %p188 = por %p186, %p187
    %p189 = scmp.ne.s32.totalorder %s177, %s178
    %p190 = scmp.eq.s32.totalorder %s21, 1
    %p191 = por %p189, %p190
    %p193 = scmp.ne.s32.totalorder %s178, %s192
    %p194 = scmp.eq.s32.totalorder %s21, 0
    %p195 = por %p193, %p194
    %s197 = sadd.s32 %s196, 1
    %p200 = scmp.eq.s32.totalorder %s15, 1
    %p201 = scmp.ne.s32.totalorder %s196, %s198
    %p202 = scmp.eq.s32.totalorder %s15, 0
    %p203 = por %p201, %p202
    %p204 = scmp.ne.s32.totalorder %s196, %s198
    %p205 = scmp.eq.s32.totalorder %s20, 1
    %p206 = por %p204, %p205
    %p207 = scmp.ne.s32.totalorder %s198, %s199
    %p208 = scmp.eq.s32.totalorder %s20, 0
    %p209 = por %p207, %p208
    %p210 = scmp.ne.s32.totalorder %s198, %s199
    %p211 = scmp.eq.s32.totalorder %s21, 1
    %p212 = por %p210, %p211
    %p214 = scmp.ne.s32.totalorder %s199, %s213
    %p215 = scmp.eq.s32.totalorder %s21, 0
    %p216 = por %p214, %p215
    %s217 = ssub.s32 %s15, %s22
    %p218 = scmp.eq.s32.totalorder %s217, 0
    %s220 = sadd.s32 %s219, 1
    %s221 = scalar_select %p218, %s219, %s220
    %p224 = pneg %p218
    %p225 = scmp.eq.s32.totalorder %s15, 1
    %p226 = por %p224, %p225
    %p227 = scmp.ne.s32.totalorder %s219, %s222
    %p228 = scmp.eq.s32.totalorder %s15, 0
    %p229 = por %p227, %p228
    %p230 = scmp.ne.s32.totalorder %s219, %s222
    %p231 = scmp.eq.s32.totalorder %s20, 1
    %p232 = por %p230, %p231
    %p233 = scmp.ne.s32.totalorder %s222, %s223
    %p234 = scmp.eq.s32.totalorder %s20, 0
    %p235 = por %p233, %p234
    %p236 = scmp.ne.s32.totalorder %s222, %s223
    %p237 = scmp.eq.s32.totalorder %s21, 1
    %p238 = por %p236, %p237
    %p240 = scmp.ne.s32.totalorder %s223, %s239
    %p241 = scmp.eq.s32.totalorder %s21, 0
    %p242 = por %p240, %p241
    %p243 = scmp.le.s32.totalorder 1, %s15
    %p244 = scmp.lt.s32.totalorder %s15, 3
    %p245 = pnand %p243, %p244
    %p246 = pneg %p245
    // Predicated region
    $region9: #{tpu_custom_call.1} parent=5 // pred_check
      _
    $region10: #{tpu_custom_call.1} parent=5 // pred_check_branch
      %248 = sbr.rel (%p245) target = $region12
    $region11: #{tpu_custom_call.1} parent=5 // pred_region
      %s249 = ssub.s32 %s15, 1
      // Predicated region
      $region13: #{tpu_custom_call.1} parent=11 // pred_check
        %p250 = pneg %p62
      $region14: #{tpu_custom_call.1} parent=11 // pred_check_branch
        %252 = sbr.rel (%p250) target = $region16
      $region15: #{tpu_custom_call.1} parent=11 // pred_region
        _
      $region16: #{tpu_custom_call.1} parent=11 // pred_fallthru
        _
      // Predicated region
      $region17: #{tpu_custom_call.1} parent=11 // pred_check
        %p253 = pneg %p83
      $region18: #{tpu_custom_call.1} parent=11 // pred_check_branch
        %255 = sbr.rel (%p253) target = $region20
      $region19: #{tpu_custom_call.1} parent=11 // pred_region
        _
      $region20: #{tpu_custom_call.1} parent=11 // pred_fallthru
        _
      // Predicated region
      $region21: #{tpu_custom_call.1} parent=11 // pred_check
        %p256 = pneg %p104
      $region22: #{tpu_custom_call.1} parent=11 // pred_check_branch
        %258 = sbr.rel (%p256) target = $region24
      $region23: #{tpu_custom_call.1} parent=11 // pred_region
        _
      $region24: #{tpu_custom_call.1} parent=11 // pred_fallthru
        _
      // Predicated region
      $region25: #{tpu_custom_call.1} parent=11 // pred_check
        %p259 = pneg %p125
      $region26: #{tpu_custom_call.1} parent=11 // pred_check_branch
        %261 = sbr.rel (%p259) target = $region28
      $region27: #{tpu_custom_call.1} parent=11 // pred_region
        _
      $region28: #{tpu_custom_call.1} parent=11 // pred_fallthru
        _
      // Predicated region
      $region29: #{tpu_custom_call.1} parent=11 // pred_check
        %p262 = pneg %p146
      $region30: #{tpu_custom_call.1} parent=11 // pred_check_branch
        %264 = sbr.rel (%p262) target = $region32
      $region31: #{tpu_custom_call.1} parent=11 // pred_region
        _
      $region32: #{tpu_custom_call.1} parent=11 // pred_fallthru
        _
      // Predicated region
      $region33: #{tpu_custom_call.1} parent=11 // pred_check
        %p265 = pneg %p167
      $region34: #{tpu_custom_call.1} parent=11 // pred_check_branch
        %267 = sbr.rel (%p265) target = $region36
      $region35: #{tpu_custom_call.1} parent=11 // pred_region
        _
      $region36: #{tpu_custom_call.1} parent=11 // pred_fallthru
        _
      // Predicated region
      $region37: #{tpu_custom_call.1} parent=11 // pred_check
        %p268 = pneg %p188
      $region38: #{tpu_custom_call.1} parent=11 // pred_check_branch
        %270 = sbr.rel (%p268) target = $region40
      $region39: #{tpu_custom_call.1} parent=11 // pred_region
        _
      $region40: #{tpu_custom_call.1} parent=11 // pred_fallthru
        _
      // Predicated region
      $region41: #{tpu_custom_call.1} parent=11 // pred_check
        %p271 = pneg %p209
      $region42: #{tpu_custom_call.1} parent=11 // pred_check_branch
        %273 = sbr.rel (%p271) target = $region44
      $region43: #{tpu_custom_call.1} parent=11 // pred_region
        _
      $region44: #{tpu_custom_call.1} parent=11 // pred_fallthru
        _
    $region12: #{tpu_custom_call.1} parent=5 // pred_fallthru
      _
    %p274 = scmp.lt.s32.totalorder %s15, 2
    // Predicated region
    $region45: #{tpu_custom_call.1} parent=5 // pred_check
      %p275 = pneg %p274
    $region46: #{tpu_custom_call.1} parent=5 // pred_check_branch
      %277 = sbr.rel (%p275) target = $region48
    $region47: #{tpu_custom_call.1} parent=5 // pred_region
      // Predicated region
      $region49: #{tpu_custom_call.1} parent=47 // pred_check
        %p278 = pneg %p35
      $region50: #{tpu_custom_call.1} parent=47 // pred_check_branch
        %280 = sbr.rel (%p278) target = $region52
      $region51: #{tpu_custom_call.1} parent=47 // pred_region
        %p281 = scmp.lt.s32.totalorder %s15, 1
        %s282 = scalar_select %p281, %s15, 1
        %s283 = smul.addr %s282, 32
        %s284 = smul.addr %s283, 8
        %s285 = scalar_lea.vmem %s0, %s284
      $region52: #{tpu_custom_call.1} parent=47 // pred_fallthru
        _
    $region48: #{tpu_custom_call.1} parent=5 // pred_fallthru
      _
    %p286 = scmp.le.s32.totalorder 1, %s15
    %p287 = scmp.lt.s32.totalorder %s15, 3
    %p288 = pnand %p286, %p287
    %p289 = pneg %p288
    // Predicated region
    $region53: #{tpu_custom_call.1} parent=5 // pred_check
      _
    $region54: #{tpu_custom_call.1} parent=5 // pred_check_branch
      %291 = sbr.rel (%p288) target = $region56
    $region55: #{tpu_custom_call.1} parent=5 // pred_region
      %s292 = ssub.s32 %s15, 1
      %p293 = scmp.lt.s32.totalorder %s20, 1
      %s294 = scalar_select %p293, %s20, 1
      %s295 = smul.addr %s294, 32
      %s296 = smul.addr %s295, 8
      %s297 = scalar_lea.vmem %s0, %s296
      %p298 = pneg %p41
      %p299 = pneg %p38
      %p300 = pneg %p62
      %p301 = pneg %p59
      %p302 = pneg %p83
      %p303 = pneg %p80
      %p304 = pneg %p104
      %p305 = pneg %p101
      %p306 = pneg %p125
      %p307 = pneg %p122
      %p308 = pneg %p146
      %p309 = pneg %p143
      %p310 = pneg %p167
      %p311 = pneg %p164
      %p312 = pneg %p188
      %p313 = pneg %p185
      %p314 = pneg %p209
      %p315 = pneg %p206
      %p316 = pneg %p235
      %p317 = pneg %p232
      %p318 = scmp.lt.s32.totalorder %s20, 1
      %s319 = scalar_select %p318, %s20, 1
      %s320 = smul.addr %s319, 32
      %s321 = smul.addr %s320, 8
      %s322 = scalar_lea.vmem %s9, %s321
      %p323 = scmp.lt.s32.totalorder %s20, 1
      %s324 = scalar_select %p323, %s20, 1
      %s325 = smul.addr %s324, 32
      %s326 = smul.addr %s325, 8
      %s327 = scalar_lea.vmem %s0, %s326
      %p328 = scmp.lt.s32.totalorder %s20, 1
      %s329 = scalar_select %p328, %s20, 1
      %s330 = smul.addr %s329, 32
      %s331 = smul.addr %s330, 8
      %s332 = scalar_lea.vmem %s9, %s331
      %v333 = vld [vmem:[%s327] sm:$0xff]
      %v334 = vld [vmem:[%s327 + $0x8] sm:$0xff]
      %v335 = vld [vmem:[%s327 + $0x10] sm:$0xff]
      %v336 = vld [vmem:[%s327 + $0x18] sm:$0xff]
      %v337 = vld [vmem:[%s327 + $0x20] sm:$0xff]
      %v338 = vld [vmem:[%s327 + $0x28] sm:$0xff]
      %v339 = vld [vmem:[%s327 + $0x30] sm:$0xff]
      %v340 = vld [vmem:[%s327 + $0x38] sm:$0xff]
      %v341 = vld [vmem:[%s327 + $0x40] sm:$0xff]
      %v342 = vld [vmem:[%s327 + $0x48] sm:$0xff]
      %v343 = vld [vmem:[%s327 + $0x50] sm:$0xff]
      %v344 = vld [vmem:[%s327 + $0x58] sm:$0xff]
      %v345 = vld [vmem:[%s327 + $0x60] sm:$0xff]
      %v346 = vld [vmem:[%s327 + $0x68] sm:$0xff]
      %v347 = vld [vmem:[%s327 + $0x70] sm:$0xff]
      %v348 = vld [vmem:[%s327 + $0x78] sm:$0xff]
      %v349 = vld [vmem:[%s327 + $0x80] sm:$0xff]
      %v350 = vld [vmem:[%s327 + $0x88] sm:$0xff]
      %v351 = vld [vmem:[%s327 + $0x90] sm:$0xff]
      %v352 = vld [vmem:[%s327 + $0x98] sm:$0xff]
      %v353 = vld [vmem:[%s327 + $0xa0] sm:$0xff]
      %v354 = vld [vmem:[%s327 + $0xa8] sm:$0xff]
      %v355 = vld [vmem:[%s327 + $0xb0] sm:$0xff]
      %v356 = vld [vmem:[%s327 + $0xb8] sm:$0xff]
      %v357 = vld [vmem:[%s327 + $0xc0] sm:$0xff]
      %v358 = vld [vmem:[%s327 + $0xc8] sm:$0xff]
      %v359 = vld [vmem:[%s327 + $0xd0] sm:$0xff]
      %v360 = vld [vmem:[%s327 + $0xd8] sm:$0xff]
      %v361 = vld [vmem:[%s327 + $0xe0] sm:$0xff]
      %v362 = vld [vmem:[%s327 + $0xe8] sm:$0xff]
      %v363 = vld [vmem:[%s327 + $0xf0] sm:$0xff]
      %v364 = vld [vmem:[%s327 + $0xf8] sm:$0xff]
      %v365 = vld [vmem:[%s1] sm:$0xff]
      %v366 = vld [vmem:[%s2] sm:$0x1]
      %v368 = vperm.slane %v366, 0
      %vm370 = vcmask 64512
      %v372 = vsel %vm370, %v333, 0
      %v375 = vsel %vm370, %v334, 0
      %v378 = vsel %vm370, %v335, 0
      %v381 = vsel %vm370, %v336, 0
      %v384 = vsel %vm370, %v337, 0
      %v387 = vsel %vm370, %v338, 0
      %v390 = vsel %vm370, %v339, 0
      %v393 = vsel %vm370, %v340, 0
      %v396 = vsel %vm370, %v341, 0
      %v399 = vsel %vm370, %v342, 0
      %v402 = vsel %vm370, %v343, 0
      %v405 = vsel %vm370, %v344, 0
      %v408 = vsel %vm370, %v345, 0
      %v411 = vsel %vm370, %v346, 0
      %v414 = vsel %vm370, %v347, 0
      %v417 = vsel %vm370, %v348, 0
      %v420 = vsel %vm370, %v349, 0
      %v423 = vsel %vm370, %v350, 0
      %v426 = vsel %vm370, %v351, 0
      %v429 = vsel %vm370, %v352, 0
      %v432 = vsel %vm370, %v353, 0
      %v435 = vsel %vm370, %v354, 0
      %v438 = vsel %vm370, %v355, 0
      %v441 = vsel %vm370, %v356, 0
      %v444 = vsel %vm370, %v357, 0
      %v447 = vsel %vm370, %v358, 0
      %v450 = vsel %vm370, %v359, 0
      %v453 = vsel %vm370, %v360, 0
      %v456 = vsel %vm370, %v361, 0
      %v459 = vsel %vm370, %v362, 0
      %v462 = vsel %vm370, %v363, 0
      %v465 = vsel %vm370, %v364, 0
      %467 = vmatpush.msra.mxu0 0.0
      %468 = vmatpush.msra.mxu0 0.0
      %469 = vmatpush.msra.mxu0 0.0
      %470 = vmatpush.msra.mxu0 0.0
      %471 = vmatpush.msra.mxu0 0.0
      %472 = vmatpush.msra.mxu0 0.0
      %473 = vmatpush.msra.mxu0 0.0
      %474 = vmatpush.msra.mxu0 0.0
      %475 = vmatpush.msra.mxu0 0.0
      %476 = vmatpush.msra.mxu0 0.0
      %477 = vmatpush.msra.mxu0 0.0
      %478 = vmatpush.msra.mxu0 0.0
      %479 = vmatpush.msra.mxu0 0.0
      %480 = vmatpush.msra.mxu0 0.0
      %481 = vmatpush.msra.mxu0 0.0
      %482 = vmatpush.msra.mxu0 %v365
      %483 = vmatmul.f32.gmra.mxu0 %v372
      %v484 = vpop.f32.mrf.mxu0
      %v485 = vadd.f32 %v368, %v484
      %486 = vmatmul.f32.gmra.mxu0 %v375
      %v487 = vpop.f32.mrf.mxu0
      %v488 = vadd.f32 %v368, %v487
      %489 = vmatmul.f32.gmra.mxu0 %v378
      %v490 = vpop.f32.mrf.mxu0
      %v491 = vadd.f32 %v368, %v490
      %492 = vmatmul.f32.gmra.mxu0 %v381
      %v493 = vpop.f32.mrf.mxu0
      %v494 = vadd.f32 %v368, %v493
      %495 = vmatmul.f32.gmra.mxu0 %v384
      %v496 = vpop.f32.mrf.mxu0
      %v497 = vadd.f32 %v368, %v496
      %498 = vmatmul.f32.gmra.mxu0 %v387
      %v499 = vpop.f32.mrf.mxu0
      %v500 = vadd.f32 %v368, %v499
      %501 = vmatmul.f32.gmra.mxu0 %v390
      %v502 = vpop.f32.mrf.mxu0
      %v503 = vadd.f32 %v368, %v502
      %504 = vmatmul.f32.gmra.mxu0 %v393
      %v505 = vpop.f32.mrf.mxu0
      %v506 = vadd.f32 %v368, %v505
      %507 = vmatmul.f32.gmra.mxu0 %v396
      %v508 = vpop.f32.mrf.mxu0
      %v509 = vadd.f32 %v368, %v508
      %510 = vmatmul.f32.gmra.mxu0 %v399
      %v511 = vpop.f32.mrf.mxu0
      %v512 = vadd.f32 %v368, %v511
      %513 = vmatmul.f32.gmra.mxu0 %v402
      %v514 = vpop.f32.mrf.mxu0
      %v515 = vadd.f32 %v368, %v514
      %516 = vmatmul.f32.gmra.mxu0 %v405
      %v517 = vpop.f32.mrf.mxu0
      %v518 = vadd.f32 %v368, %v517
      %519 = vmatmul.f32.gmra.mxu0 %v408
      %v520 = vpop.f32.mrf.mxu0
      %v521 = vadd.f32 %v368, %v520
      %522 = vmatmul.f32.gmra.mxu0 %v411
      %v523 = vpop.f32.mrf.mxu0
      %v524 = vadd.f32 %v368, %v523
      %525 = vmatmul.f32.gmra.mxu0 %v414
      %v526 = vpop.f32.mrf.mxu0
      %v527 = vadd.f32 %v368, %v526
      %528 = vmatmul.f32.gmra.mxu0 %v417
      %v529 = vpop.f32.mrf.mxu0
      %v530 = vadd.f32 %v368, %v529
      %531 = vmatmul.f32.gmra.mxu0 %v420
      %v532 = vpop.f32.mrf.mxu0
      %v533 = vadd.f32 %v368, %v532
      %534 = vmatmul.f32.gmra.mxu0 %v423
      %v535 = vpop.f32.mrf.mxu0
      %v536 = vadd.f32 %v368, %v535
      %537 = vmatmul.f32.gmra.mxu0 %v426
      %v538 = vpop.f32.mrf.mxu0
      %v539 = vadd.f32 %v368, %v538
      %540 = vmatmul.f32.gmra.mxu0 %v429
      %v541 = vpop.f32.mrf.mxu0
      %v542 = vadd.f32 %v368, %v541
      %543 = vmatmul.f32.gmra.mxu0 %v432
      %v544 = vpop.f32.mrf.mxu0
      %v545 = vadd.f32 %v368, %v544
      %546 = vmatmul.f32.gmra.mxu0 %v435
      %v547 = vpop.f32.mrf.mxu0
      %v548 = vadd.f32 %v368, %v547
      %549 = vmatmul.f32.gmra.mxu0 %v438
      %v550 = vpop.f32.mrf.mxu0
      %v551 = vadd.f32 %v368, %v550
      %552 = vmatmul.f32.gmra.mxu0 %v441
      %v553 = vpop.f32.mrf.mxu0
      %v554 = vadd.f32 %v368, %v553
      %555 = vmatmul.f32.gmra.mxu0 %v444
      %v556 = vpop.f32.mrf.mxu0
      %v557 = vadd.f32 %v368, %v556
      %558 = vmatmul.f32.gmra.mxu0 %v447
      %v559 = vpop.f32.mrf.mxu0
      %v560 = vadd.f32 %v368, %v559
      %561 = vmatmul.f32.gmra.mxu0 %v450
      %v562 = vpop.f32.mrf.mxu0
      %v563 = vadd.f32 %v368, %v562
      %564 = vmatmul.f32.gmra.mxu0 %v453
      %v565 = vpop.f32.mrf.mxu0
      %v566 = vadd.f32 %v368, %v565
      %567 = vmatmul.f32.gmra.mxu0 %v456
      %v568 = vpop.f32.mrf.mxu0
      %v569 = vadd.f32 %v368, %v568
      %570 = vmatmul.f32.gmra.mxu0 %v459
      %v571 = vpop.f32.mrf.mxu0
      %v572 = vadd.f32 %v368, %v571
      %573 = vmatmul.f32.gmra.mxu0 %v462
      %v574 = vpop.f32.mrf.mxu0
      %v575 = vadd.f32 %v368, %v574
      %576 = vmatmul.f32.gmra.mxu0 %v465
      %v577 = vpop.f32.mrf.mxu0
      %v578 = vadd.f32 %v368, %v577
      %579 = vdwg.mxu0
      %v580 = vxor.u32 %v485, 2147483648
      %v581 = vxor.u32 %v488, 2147483648
      %v582 = vxor.u32 %v491, 2147483648
      %v583 = vxor.u32 %v494, 2147483648
      %v584 = vxor.u32 %v497, 2147483648
      %v585 = vxor.u32 %v500, 2147483648
      %v586 = vxor.u32 %v503, 2147483648
      %v587 = vxor.u32 %v506, 2147483648
      %v588 = vxor.u32 %v509, 2147483648
      %v589 = vxor.u32 %v512, 2147483648
      %v590 = vxor.u32 %v515, 2147483648
      %v591 = vxor.u32 %v518, 2147483648
      %v592 = vxor.u32 %v521, 2147483648
      %v593 = vxor.u32 %v524, 2147483648
      %v594 = vxor.u32 %v527, 2147483648
      %v595 = vxor.u32 %v530, 2147483648
      %v596 = vxor.u32 %v533, 2147483648
      %v597 = vxor.u32 %v536, 2147483648
      %v598 = vxor.u32 %v539, 2147483648
      %v599 = vxor.u32 %v542, 2147483648
      %v600 = vxor.u32 %v545, 2147483648
      %v601 = vxor.u32 %v548, 2147483648
      %v602 = vxor.u32 %v551, 2147483648
      %v603 = vxor.u32 %v554, 2147483648
      %v604 = vxor.u32 %v557, 2147483648
      %v605 = vxor.u32 %v560, 2147483648
      %v606 = vxor.u32 %v563, 2147483648
      %v607 = vxor.u32 %v566, 2147483648
      %v608 = vxor.u32 %v569, 2147483648
      %v609 = vxor.u32 %v572, 2147483648
      %v610 = vxor.u32 %v575, 2147483648
      %v611 = vxor.u32 %v578, 2147483648
      %v612 = vmul.f32 %v580, 1.442695
      %v613 = vpow.pop %v612
      %v614 = vmul.f32 %v581, 1.442695
      %v615 = vpow.pop %v614
      %v616 = vmul.f32 %v582, 1.442695
      %v617 = vpow.pop %v616
      %v618 = vmul.f32 %v583, 1.442695
      %v619 = vpow.pop %v618
      %v620 = vmul.f32 %v584, 1.442695
      %v621 = vpow.pop %v620
      %v622 = vmul.f32 %v585, 1.442695
      %v623 = vpow.pop %v622
      %v624 = vmul.f32 %v586, 1.442695
      %v625 = vpow.pop %v624
      %v626 = vmul.f32 %v587, 1.442695
      %v627 = vpow.pop %v626
      %v628 = vmul.f32 %v588, 1.442695
      %v629 = vpow.pop %v628
      %v630 = vmul.f32 %v589, 1.442695
      %v631 = vpow.pop %v630
      %v632 = vmul.f32 %v590, 1.442695
      %v633 = vpow.pop %v632
      %v634 = vmul.f32 %v591, 1.442695
      %v635 = vpow.pop %v634
      %v636 = vmul.f32 %v592, 1.442695
      %v637 = vpow.pop %v636
      %v638 = vmul.f32 %v593, 1.442695
      %v639 = vpow.pop %v638
      %v640 = vmul.f32 %v594, 1.442695
      %v641 = vpow.pop %v640
      %v642 = vmul.f32 %v595, 1.442695
      %v643 = vpow.pop %v642
      %v644 = vmul.f32 %v596, 1.442695
      %v645 = vpow.pop %v644
      %v646 = vmul.f32 %v597, 1.442695
      %v647 = vpow.pop %v646
      %v648 = vmul.f32 %v598, 1.442695
      %v649 = vpow.pop %v648
      %v650 = vmul.f32 %v599, 1.442695
      %v651 = vpow.pop %v650
      %v652 = vmul.f32 %v600, 1.442695
      %v653 = vpow.pop %v652
      %v654 = vmul.f32 %v601, 1.442695
      %v655 = vpow.pop %v654
      %v656 = vmul.f32 %v602, 1.442695
      %v657 = vpow.pop %v656
      %v658 = vmul.f32 %v603, 1.442695
      %v659 = vpow.pop %v658
      %v660 = vmul.f32 %v604, 1.442695
      %v661 = vpow.pop %v660
      %v662 = vmul.f32 %v605, 1.442695
      %v663 = vpow.pop %v662
      %v664 = vmul.f32 %v606, 1.442695
      %v665 = vpow.pop %v664
      %v666 = vmul.f32 %v607, 1.442695
      %v667 = vpow.pop %v666
      %v668 = vmul.f32 %v608, 1.442695
      %v669 = vpow.pop %v668
      %v670 = vmul.f32 %v609, 1.442695
      %v671 = vpow.pop %v670
      %v672 = vmul.f32 %v610, 1.442695
      %v673 = vpow.pop %v672
      %v674 = vmul.f32 %v611, 1.442695
      %v675 = vpow.pop %v674
      %v676 = vadd.f32 %v613, 1.0
      %v677 = vadd.f32 %v615, 1.0
      %v678 = vadd.f32 %v617, 1.0
      %v679 = vadd.f32 %v619, 1.0
      %v680 = vadd.f32 %v621, 1.0
      %v681 = vadd.f32 %v623, 1.0
      %v682 = vadd.f32 %v625, 1.0
      %v683 = vadd.f32 %v627, 1.0
      %v684 = vadd.f32 %v629, 1.0
      %v685 = vadd.f32 %v631, 1.0
      %v686 = vadd.f32 %v633, 1.0
      %v687 = vadd.f32 %v635, 1.0
      %v688 = vadd.f32 %v637, 1.0
      %v689 = vadd.f32 %v639, 1.0
      %v690 = vadd.f32 %v641, 1.0
      %v691 = vadd.f32 %v643, 1.0
      %v692 = vadd.f32 %v645, 1.0
      %v693 = vadd.f32 %v647, 1.0
      %v694 = vadd.f32 %v649, 1.0
      %v695 = vadd.f32 %v651, 1.0
      %v696 = vadd.f32 %v653, 1.0
      %v697 = vadd.f32 %v655, 1.0
      %v698 = vadd.f32 %v657, 1.0
      %v699 = vadd.f32 %v659, 1.0
      %v700 = vadd.f32 %v661, 1.0
      %v701 = vadd.f32 %v663, 1.0
      %v702 = vadd.f32 %v665, 1.0
      %v703 = vadd.f32 %v667, 1.0
      %v704 = vadd.f32 %v669, 1.0
      %v705 = vadd.f32 %v671, 1.0
      %v706 = vadd.f32 %v673, 1.0
      %v707 = vadd.f32 %v675, 1.0
      %v708 = vrcp.pop %v676
      %v709 = vmul.f32 %v676, %v708
      %v710 = vsub.f32 1.0, %v709
      %v711 = vmul.f32 %v708, %v710
      %v712 = vadd.f32 %v708, %v711
      %vm713 = vweird.f32 %v676
      %vm714 = vweird.f32 %v708
      %vm715 = vmor %vm713, %vm714
      %v716 = vsel %vm715, %v708, %v712
      %v717 = vand.u32 2147483647, %v676
      %vm718 = vcmp.eq.f32.partialorder %v717, 8.507059e+37
      %v719 = vand.u32 %v676, 2147483648
      %v720 = vor.u32 1.1754944e-38, %v719
      %v721 = vsel %vm718, %v720, %v716
      %v722 = vmul.f32 1.0, %v721
      %v723 = vrcp.pop %v677
      %v724 = vmul.f32 %v677, %v723
      %v725 = vsub.f32 1.0, %v724
      %v726 = vmul.f32 %v723, %v725
      %v727 = vadd.f32 %v723, %v726
      %vm728 = vweird.f32 %v677
      %vm729 = vweird.f32 %v723
      %vm730 = vmor %vm728, %vm729
      %v731 = vsel %vm730, %v723, %v727
      %v732 = vand.u32 2147483647, %v677
      %vm733 = vcmp.eq.f32.partialorder %v732, 8.507059e+37
      %v734 = vand.u32 %v677, 2147483648
      %v735 = vor.u32 1.1754944e-38, %v734
      %v736 = vsel %vm733, %v735, %v731
      %v737 = vmul.f32 1.0, %v736
      %v738 = vrcp.pop %v678
      %v739 = vmul.f32 %v678, %v738
      %v740 = vsub.f32 1.0, %v739
      %v741 = vmul.f32 %v738, %v740
      %v742 = vadd.f32 %v738, %v741
      %vm743 = vweird.f32 %v678
      %vm744 = vweird.f32 %v738
      %vm745 = vmor %vm743, %vm744
      %v746 = vsel %vm745, %v738, %v742
      %v747 = vand.u32 2147483647, %v678
      %vm748 = vcmp.eq.f32.partialorder %v747, 8.507059e+37
      %v749 = vand.u32 %v678, 2147483648
      %v750 = vor.u32 1.1754944e-38, %v749
      %v751 = vsel %vm748, %v750, %v746
      %v752 = vmul.f32 1.0, %v751
      %v753 = vrcp.pop %v679
      %v754 = vmul.f32 %v679, %v753
      %v755 = vsub.f32 1.0, %v754
      %v756 = vmul.f32 %v753, %v755
      %v757 = vadd.f32 %v753, %v756
      %vm758 = vweird.f32 %v679
      %vm759 = vweird.f32 %v753
      %vm760 = vmor %vm758, %vm759
      %v761 = vsel %vm760, %v753, %v757
      %v762 = vand.u32 2147483647, %v679
      %vm763 = vcmp.eq.f32.partialorder %v762, 8.507059e+37
      %v764 = vand.u32 %v679, 2147483648
      %v765 = vor.u32 1.1754944e-38, %v764
      %v766 = vsel %vm763, %v765, %v761
      %v767 = vmul.f32 1.0, %v766
      %v768 = vrcp.pop %v680
      %v769 = vmul.f32 %v680, %v768
      %v770 = vsub.f32 1.0, %v769
      %v771 = vmul.f32 %v768, %v770
      %v772 = vadd.f32 %v768, %v771
      %vm773 = vweird.f32 %v680
      %vm774 = vweird.f32 %v768
      %vm775 = vmor %vm773, %vm774
      %v776 = vsel %vm775, %v768, %v772
      %v777 = vand.u32 2147483647, %v680
      %vm778 = vcmp.eq.f32.partialorder %v777, 8.507059e+37
      %v779 = vand.u32 %v680, 2147483648
      %v780 = vor.u32 1.1754944e-38, %v779
      %v781 = vsel %vm778, %v780, %v776
      %v782 = vmul.f32 1.0, %v781
      %v783 = vrcp.pop %v681
      %v784 = vmul.f32 %v681, %v783
      %v785 = vsub.f32 1.0, %v784
      %v786 = vmul.f32 %v783, %v785
      %v787 = vadd.f32 %v783, %v786
      %vm788 = vweird.f32 %v681
      %vm789 = vweird.f32 %v783
      %vm790 = vmor %vm788, %vm789
      %v791 = vsel %vm790, %v783, %v787
      %v792 = vand.u32 2147483647, %v681
      %vm793 = vcmp.eq.f32.partialorder %v792, 8.507059e+37
      %v794 = vand.u32 %v681, 2147483648
      %v795 = vor.u32 1.1754944e-38, %v794
      %v796 = vsel %vm793, %v795, %v791
      %v797 = vmul.f32 1.0, %v796
      %v798 = vrcp.pop %v682
      %v799 = vmul.f32 %v682, %v798
      %v800 = vsub.f32 1.0, %v799
      %v801 = vmul.f32 %v798, %v800
      %v802 = vadd.f32 %v798, %v801
      %vm803 = vweird.f32 %v682
      %vm804 = vweird.f32 %v798
      %vm805 = vmor %vm803, %vm804
      %v806 = vsel %vm805, %v798, %v802
      %v807 = vand.u32 2147483647, %v682
      %vm808 = vcmp.eq.f32.partialorder %v807, 8.507059e+37
      %v809 = vand.u32 %v682, 2147483648
      %v810 = vor.u32 1.1754944e-38, %v809
      %v811 = vsel %vm808, %v810, %v806
      %v812 = vmul.f32 1.0, %v811
      %v813 = vrcp.pop %v683
      %v814 = vmul.f32 %v683, %v813
      %v815 = vsub.f32 1.0, %v814
      %v816 = vmul.f32 %v813, %v815
      %v817 = vadd.f32 %v813, %v816
      %vm818 = vweird.f32 %v683
      %vm819 = vweird.f32 %v813
      %vm820 = vmor %vm818, %vm819
      %v821 = vsel %vm820, %v813, %v817
      %v822 = vand.u32 2147483647, %v683
      %vm823 = vcmp.eq.f32.partialorder %v822, 8.507059e+37
      %v824 = vand.u32 %v683, 2147483648
      %v825 = vor.u32 1.1754944e-38, %v824
      %v826 = vsel %vm823, %v825, %v821
      %v827 = vmul.f32 1.0, %v826
      %v828 = vrcp.pop %v684
      %v829 = vmul.f32 %v684, %v828
      %v830 = vsub.f32 1.0, %v829
      %v831 = vmul.f32 %v828, %v830
      %v832 = vadd.f32 %v828, %v831
      %vm833 = vweird.f32 %v684
      %vm834 = vweird.f32 %v828
      %vm835 = vmor %vm833, %vm834
      %v836 = vsel %vm835, %v828, %v832
      %v837 = vand.u32 2147483647, %v684
      %vm838 = vcmp.eq.f32.partialorder %v837, 8.507059e+37
      %v839 = vand.u32 %v684, 2147483648
      %v840 = vor.u32 1.1754944e-38, %v839
      %v841 = vsel %vm838, %v840, %v836
      %v842 = vmul.f32 1.0, %v841
      %v843 = vrcp.pop %v685
      %v844 = vmul.f32 %v685, %v843
      %v845 = vsub.f32 1.0, %v844
      %v846 = vmul.f32 %v843, %v845
      %v847 = vadd.f32 %v843, %v846
      %vm848 = vweird.f32 %v685
      %vm849 = vweird.f32 %v843
      %vm850 = vmor %vm848, %vm849
      %v851 = vsel %vm850, %v843, %v847
      %v852 = vand.u32 2147483647, %v685
      %vm853 = vcmp.eq.f32.partialorder %v852, 8.507059e+37
      %v854 = vand.u32 %v685, 2147483648
      %v855 = vor.u32 1.1754944e-38, %v854
      %v856 = vsel %vm853, %v855, %v851
      %v857 = vmul.f32 1.0, %v856
      %v858 = vrcp.pop %v686
      %v859 = vmul.f32 %v686, %v858
      %v860 = vsub.f32 1.0, %v859
      %v861 = vmul.f32 %v858, %v860
      %v862 = vadd.f32 %v858, %v861
      %vm863 = vweird.f32 %v686
      %vm864 = vweird.f32 %v858
      %vm865 = vmor %vm863, %vm864
      %v866 = vsel %vm865, %v858, %v862
      %v867 = vand.u32 2147483647, %v686
      %vm868 = vcmp.eq.f32.partialorder %v867, 8.507059e+37
      %v869 = vand.u32 %v686, 2147483648
      %v870 = vor.u32 1.1754944e-38, %v869
      %v871 = vsel %vm868, %v870, %v866
      %v872 = vmul.f32 1.0, %v871
      %v873 = vrcp.pop %v687
      %v874 = vmul.f32 %v687, %v873
      %v875 = vsub.f32 1.0, %v874
      %v876 = vmul.f32 %v873, %v875
      %v877 = vadd.f32 %v873, %v876
      %vm878 = vweird.f32 %v687
      %vm879 = vweird.f32 %v873
      %vm880 = vmor %vm878, %vm879
      %v881 = vsel %vm880, %v873, %v877
      %v882 = vand.u32 2147483647, %v687
      %vm883 = vcmp.eq.f32.partialorder %v882, 8.507059e+37
      %v884 = vand.u32 %v687, 2147483648
      %v885 = vor.u32 1.1754944e-38, %v884
      %v886 = vsel %vm883, %v885, %v881
      %v887 = vmul.f32 1.0, %v886
      %v888 = vrcp.pop %v688
      %v889 = vmul.f32 %v688, %v888
      %v890 = vsub.f32 1.0, %v889
      %v891 = vmul.f32 %v888, %v890
      %v892 = vadd.f32 %v888, %v891
      %vm893 = vweird.f32 %v688
      %vm894 = vweird.f32 %v888
      %vm895 = vmor %vm893, %vm894
      %v896 = vsel %vm895, %v888, %v892
      %v897 = vand.u32 2147483647, %v688
      %vm898 = vcmp.eq.f32.partialorder %v897, 8.507059e+37
      %v899 = vand.u32 %v688, 2147483648
      %v900 = vor.u32 1.1754944e-38, %v899
      %v901 = vsel %vm898, %v900, %v896
      %v902 = vmul.f32 1.0, %v901
      %v903 = vrcp.pop %v689
      %v904 = vmul.f32 %v689, %v903
      %v905 = vsub.f32 1.0, %v904
      %v906 = vmul.f32 %v903, %v905
      %v907 = vadd.f32 %v903, %v906
      %vm908 = vweird.f32 %v689
      %vm909 = vweird.f32 %v903
      %vm910 = vmor %vm908, %vm909
      %v911 = vsel %vm910, %v903, %v907
      %v912 = vand.u32 2147483647, %v689
      %vm913 = vcmp.eq.f32.partialorder %v912, 8.507059e+37
      %v914 = vand.u32 %v689, 2147483648
      %v915 = vor.u32 1.1754944e-38, %v914
      %v916 = vsel %vm913, %v915, %v911
      %v917 = vmul.f32 1.0, %v916
      %v918 = vrcp.pop %v690
      %v919 = vmul.f32 %v690, %v918
      %v920 = vsub.f32 1.0, %v919
      %v921 = vmul.f32 %v918, %v920
      %v922 = vadd.f32 %v918, %v921
      %vm923 = vweird.f32 %v690
      %vm924 = vweird.f32 %v918
      %vm925 = vmor %vm923, %vm924
      %v926 = vsel %vm925, %v918, %v922
      %v927 = vand.u32 2147483647, %v690
      %vm928 = vcmp.eq.f32.partialorder %v927, 8.507059e+37
      %v929 = vand.u32 %v690, 2147483648
      %v930 = vor.u32 1.1754944e-38, %v929
      %v931 = vsel %vm928, %v930, %v926
      %v932 = vmul.f32 1.0, %v931
      %v933 = vrcp.pop %v691
      %v934 = vmul.f32 %v691, %v933
      %v935 = vsub.f32 1.0, %v934
      %v936 = vmul.f32 %v933, %v935
      %v937 = vadd.f32 %v933, %v936
      %vm938 = vweird.f32 %v691
      %vm939 = vweird.f32 %v933
      %vm940 = vmor %vm938, %vm939
      %v941 = vsel %vm940, %v933, %v937
      %v942 = vand.u32 2147483647, %v691
      %vm943 = vcmp.eq.f32.partialorder %v942, 8.507059e+37
      %v944 = vand.u32 %v691, 2147483648
      %v945 = vor.u32 1.1754944e-38, %v944
      %v946 = vsel %vm943, %v945, %v941
      %v947 = vmul.f32 1.0, %v946
      %v948 = vrcp.pop %v692
      %v949 = vmul.f32 %v692, %v948
      %v950 = vsub.f32 1.0, %v949
      %v951 = vmul.f32 %v948, %v950
      %v952 = vadd.f32 %v948, %v951
      %vm953 = vweird.f32 %v692
      %vm954 = vweird.f32 %v948
      %vm955 = vmor %vm953, %vm954
      %v956 = vsel %vm955, %v948, %v952
      %v957 = vand.u32 2147483647, %v692
      %vm958 = vcmp.eq.f32.partialorder %v957, 8.507059e+37
      %v959 = vand.u32 %v692, 2147483648
      %v960 = vor.u32 1.1754944e-38, %v959
      %v961 = vsel %vm958, %v960, %v956
      %v962 = vmul.f32 1.0, %v961
      %v963 = vrcp.pop %v693
      %v964 = vmul.f32 %v693, %v963
      %v965 = vsub.f32 1.0, %v964
      %v966 = vmul.f32 %v963, %v965
      %v967 = vadd.f32 %v963, %v966
      %vm968 = vweird.f32 %v693
      %vm969 = vweird.f32 %v963
      %vm970 = vmor %vm968, %vm969
      %v971 = vsel %vm970, %v963, %v967
      %v972 = vand.u32 2147483647, %v693
      %vm973 = vcmp.eq.f32.partialorder %v972, 8.507059e+37
      %v974 = vand.u32 %v693, 2147483648
      %v975 = vor.u32 1.1754944e-38, %v974
      %v976 = vsel %vm973, %v975, %v971
      %v977 = vmul.f32 1.0, %v976
      %v978 = vrcp.pop %v694
      %v979 = vmul.f32 %v694, %v978
      %v980 = vsub.f32 1.0, %v979
      %v981 = vmul.f32 %v978, %v980
      %v982 = vadd.f32 %v978, %v981
      %vm983 = vweird.f32 %v694
      %vm984 = vweird.f32 %v978
      %vm985 = vmor %vm983, %vm984
      %v986 = vsel %vm985, %v978, %v982
      %v987 = vand.u32 2147483647, %v694
      %vm988 = vcmp.eq.f32.partialorder %v987, 8.507059e+37
      %v989 = vand.u32 %v694, 2147483648
      %v990 = vor.u32 1.1754944e-38, %v989
      %v991 = vsel %vm988, %v990, %v986
      %v992 = vmul.f32 1.0, %v991
      %v993 = vrcp.pop %v695
      %v994 = vmul.f32 %v695, %v993
      %v995 = vsub.f32 1.0, %v994
      %v996 = vmul.f32 %v993, %v995
      %v997 = vadd.f32 %v993, %v996
      %vm998 = vweird.f32 %v695
      %vm999 = vweird.f32 %v993
      %vm1000 = vmor %vm998, %vm999
      %v1001 = vsel %vm1000, %v993, %v997
      %v1002 = vand.u32 2147483647, %v695
      %vm1003 = vcmp.eq.f32.partialorder %v1002, 8.507059e+37
      %v1004 = vand.u32 %v695, 2147483648
      %v1005 = vor.u32 1.1754944e-38, %v1004
      %v1006 = vsel %vm1003, %v1005, %v1001
      %v1007 = vmul.f32 1.0, %v1006
      %v1008 = vrcp.pop %v696
      %v1009 = vmul.f32 %v696, %v1008
      %v1010 = vsub.f32 1.0, %v1009
      %v1011 = vmul.f32 %v1008, %v1010
      %v1012 = vadd.f32 %v1008, %v1011
      %vm1013 = vweird.f32 %v696
      %vm1014 = vweird.f32 %v1008
      %vm1015 = vmor %vm1013, %vm1014
      %v1016 = vsel %vm1015, %v1008, %v1012
      %v1017 = vand.u32 2147483647, %v696
      %vm1018 = vcmp.eq.f32.partialorder %v1017, 8.507059e+37
      %v1019 = vand.u32 %v696, 2147483648
      %v1020 = vor.u32 1.1754944e-38, %v1019
      %v1021 = vsel %vm1018, %v1020, %v1016
      %v1022 = vmul.f32 1.0, %v1021
      %v1023 = vrcp.pop %v697
      %v1024 = vmul.f32 %v697, %v1023
      %v1025 = vsub.f32 1.0, %v1024
      %v1026 = vmul.f32 %v1023, %v1025
      %v1027 = vadd.f32 %v1023, %v1026
      %vm1028 = vweird.f32 %v697
      %vm1029 = vweird.f32 %v1023
      %vm1030 = vmor %vm1028, %vm1029
      %v1031 = vsel %vm1030, %v1023, %v1027
      %v1032 = vand.u32 2147483647, %v697
      %vm1033 = vcmp.eq.f32.partialorder %v1032, 8.507059e+37
      %v1034 = vand.u32 %v697, 2147483648
      %v1035 = vor.u32 1.1754944e-38, %v1034
      %v1036 = vsel %vm1033, %v1035, %v1031
      %v1037 = vmul.f32 1.0, %v1036
      %v1038 = vrcp.pop %v698
      %v1039 = vmul.f32 %v698, %v1038
      %v1040 = vsub.f32 1.0, %v1039
      %v1041 = vmul.f32 %v1038, %v1040
      %v1042 = vadd.f32 %v1038, %v1041
      %vm1043 = vweird.f32 %v698
      %vm1044 = vweird.f32 %v1038
      %vm1045 = vmor %vm1043, %vm1044
      %v1046 = vsel %vm1045, %v1038, %v1042
      %v1047 = vand.u32 2147483647, %v698
      %vm1048 = vcmp.eq.f32.partialorder %v1047, 8.507059e+37
      %v1049 = vand.u32 %v698, 2147483648
      %v1050 = vor.u32 1.1754944e-38, %v1049
      %v1051 = vsel %vm1048, %v1050, %v1046
      %v1052 = vmul.f32 1.0, %v1051
      %v1053 = vrcp.pop %v699
      %v1054 = vmul.f32 %v699, %v1053
      %v1055 = vsub.f32 1.0, %v1054
      %v1056 = vmul.f32 %v1053, %v1055
      %v1057 = vadd.f32 %v1053, %v1056
      %vm1058 = vweird.f32 %v699
      %vm1059 = vweird.f32 %v1053
      %vm1060 = vmor %vm1058, %vm1059
      %v1061 = vsel %vm1060, %v1053, %v1057
      %v1062 = vand.u32 2147483647, %v699
      %vm1063 = vcmp.eq.f32.partialorder %v1062, 8.507059e+37
      %v1064 = vand.u32 %v699, 2147483648
      %v1065 = vor.u32 1.1754944e-38, %v1064
      %v1066 = vsel %vm1063, %v1065, %v1061
      %v1067 = vmul.f32 1.0, %v1066
      %v1068 = vrcp.pop %v700
      %v1069 = vmul.f32 %v700, %v1068
      %v1070 = vsub.f32 1.0, %v1069
      %v1071 = vmul.f32 %v1068, %v1070
      %v1072 = vadd.f32 %v1068, %v1071
      %vm1073 = vweird.f32 %v700
      %vm1074 = vweird.f32 %v1068
      %vm1075 = vmor %vm1073, %vm1074
      %v1076 = vsel %vm1075, %v1068, %v1072
      %v1077 = vand.u32 2147483647, %v700
      %vm1078 = vcmp.eq.f32.partialorder %v1077, 8.507059e+37
      %v1079 = vand.u32 %v700, 2147483648
      %v1080 = vor.u32 1.1754944e-38, %v1079
      %v1081 = vsel %vm1078, %v1080, %v1076
      %v1082 = vmul.f32 1.0, %v1081
      %v1083 = vrcp.pop %v701
      %v1084 = vmul.f32 %v701, %v1083
      %v1085 = vsub.f32 1.0, %v1084
      %v1086 = vmul.f32 %v1083, %v1085
      %v1087 = vadd.f32 %v1083, %v1086
      %vm1088 = vweird.f32 %v701
      %vm1089 = vweird.f32 %v1083
      %vm1090 = vmor %vm1088, %vm1089
      %v1091 = vsel %vm1090, %v1083, %v1087
      %v1092 = vand.u32 2147483647, %v701
      %vm1093 = vcmp.eq.f32.partialorder %v1092, 8.507059e+37
      %v1094 = vand.u32 %v701, 2147483648
      %v1095 = vor.u32 1.1754944e-38, %v1094
      %v1096 = vsel %vm1093, %v1095, %v1091
      %v1097 = vmul.f32 1.0, %v1096
      %v1098 = vrcp.pop %v702
      %v1099 = vmul.f32 %v702, %v1098
      %v1100 = vsub.f32 1.0, %v1099
      %v1101 = vmul.f32 %v1098, %v1100
      %v1102 = vadd.f32 %v1098, %v1101
      %vm1103 = vweird.f32 %v702
      %vm1104 = vweird.f32 %v1098
      %vm1105 = vmor %vm1103, %vm1104
      %v1106 = vsel %vm1105, %v1098, %v1102
      %v1107 = vand.u32 2147483647, %v702
      %vm1108 = vcmp.eq.f32.partialorder %v1107, 8.507059e+37
      %v1109 = vand.u32 %v702, 2147483648
      %v1110 = vor.u32 1.1754944e-38, %v1109
      %v1111 = vsel %vm1108, %v1110, %v1106
      %v1112 = vmul.f32 1.0, %v1111
      %v1113 = vrcp.pop %v703
      %v1114 = vmul.f32 %v703, %v1113
      %v1115 = vsub.f32 1.0, %v1114
      %v1116 = vmul.f32 %v1113, %v1115
      %v1117 = vadd.f32 %v1113, %v1116
      %vm1118 = vweird.f32 %v703
      %vm1119 = vweird.f32 %v1113
      %vm1120 = vmor %vm1118, %vm1119
      %v1121 = vsel %vm1120, %v1113, %v1117
      %v1122 = vand.u32 2147483647, %v703
      %vm1123 = vcmp.eq.f32.partialorder %v1122, 8.507059e+37
      %v1124 = vand.u32 %v703, 2147483648
      %v1125 = vor.u32 1.1754944e-38, %v1124
      %v1126 = vsel %vm1123, %v1125, %v1121
      %v1127 = vmul.f32 1.0, %v1126
      %v1128 = vrcp.pop %v704
      %v1129 = vmul.f32 %v704, %v1128
      %v1130 = vsub.f32 1.0, %v1129
      %v1131 = vmul.f32 %v1128, %v1130
      %v1132 = vadd.f32 %v1128, %v1131
      %vm1133 = vweird.f32 %v704
      %vm1134 = vweird.f32 %v1128
      %vm1135 = vmor %vm1133, %vm1134
      %v1136 = vsel %vm1135, %v1128, %v1132
      %v1137 = vand.u32 2147483647, %v704
      %vm1138 = vcmp.eq.f32.partialorder %v1137, 8.507059e+37
      %v1139 = vand.u32 %v704, 2147483648
      %v1140 = vor.u32 1.1754944e-38, %v1139
      %v1141 = vsel %vm1138, %v1140, %v1136
      %v1142 = vmul.f32 1.0, %v1141
      %v1143 = vrcp.pop %v705
      %v1144 = vmul.f32 %v705, %v1143
      %v1145 = vsub.f32 1.0, %v1144
      %v1146 = vmul.f32 %v1143, %v1145
      %v1147 = vadd.f32 %v1143, %v1146
      %vm1148 = vweird.f32 %v705
      %vm1149 = vweird.f32 %v1143
      %vm1150 = vmor %vm1148, %vm1149
      %v1151 = vsel %vm1150, %v1143, %v1147
      %v1152 = vand.u32 2147483647, %v705
      %vm1153 = vcmp.eq.f32.partialorder %v1152, 8.507059e+37
      %v1154 = vand.u32 %v705, 2147483648
      %v1155 = vor.u32 1.1754944e-38, %v1154
      %v1156 = vsel %vm1153, %v1155, %v1151
      %v1157 = vmul.f32 1.0, %v1156
      %v1158 = vrcp.pop %v706
      %v1159 = vmul.f32 %v706, %v1158
      %v1160 = vsub.f32 1.0, %v1159
      %v1161 = vmul.f32 %v1158, %v1160
      %v1162 = vadd.f32 %v1158, %v1161
      %vm1163 = vweird.f32 %v706
      %vm1164 = vweird.f32 %v1158
      %vm1165 = vmor %vm1163, %vm1164
      %v1166 = vsel %vm1165, %v1158, %v1162
      %v1167 = vand.u32 2147483647, %v706
      %vm1168 = vcmp.eq.f32.partialorder %v1167, 8.507059e+37
      %v1169 = vand.u32 %v706, 2147483648
      %v1170 = vor.u32 1.1754944e-38, %v1169
      %v1171 = vsel %vm1168, %v1170, %v1166
      %v1172 = vmul.f32 1.0, %v1171
      %v1173 = vrcp.pop %v707
      %v1174 = vmul.f32 %v707, %v1173
      %v1175 = vsub.f32 1.0, %v1174
      %v1176 = vmul.f32 %v1173, %v1175
      %v1177 = vadd.f32 %v1173, %v1176
      %vm1178 = vweird.f32 %v707
      %vm1179 = vweird.f32 %v1173
      %vm1180 = vmor %vm1178, %vm1179
      %v1181 = vsel %vm1180, %v1173, %v1177
      %v1182 = vand.u32 2147483647, %v707
      %vm1183 = vcmp.eq.f32.partialorder %v1182, 8.507059e+37
      %v1184 = vand.u32 %v707, 2147483648
      %v1185 = vor.u32 1.1754944e-38, %v1184
      %v1186 = vsel %vm1183, %v1185, %v1181
      %v1187 = vmul.f32 1.0, %v1186
      %v1188 = vmul.f32 %v485, %v722
      %v1189 = vmul.f32 %v488, %v737
      %v1190 = vmul.f32 %v491, %v752
      %v1191 = vmul.f32 %v494, %v767
      %v1192 = vmul.f32 %v497, %v782
      %v1193 = vmul.f32 %v500, %v797
      %v1194 = vmul.f32 %v503, %v812
      %v1195 = vmul.f32 %v506, %v827
      %v1196 = vmul.f32 %v509, %v842
      %v1197 = vmul.f32 %v512, %v857
      %v1198 = vmul.f32 %v515, %v872
      %v1199 = vmul.f32 %v518, %v887
      %v1200 = vmul.f32 %v521, %v902
      %v1201 = vmul.f32 %v524, %v917
      %v1202 = vmul.f32 %v527, %v932
      %v1203 = vmul.f32 %v530, %v947
      %v1204 = vmul.f32 %v533, %v962
      %v1205 = vmul.f32 %v536, %v977
      %v1206 = vmul.f32 %v539, %v992
      %v1207 = vmul.f32 %v542, %v1007
      %v1208 = vmul.f32 %v545, %v1022
      %v1209 = vmul.f32 %v548, %v1037
      %v1210 = vmul.f32 %v551, %v1052
      %v1211 = vmul.f32 %v554, %v1067
      %v1212 = vmul.f32 %v557, %v1082
      %v1213 = vmul.f32 %v560, %v1097
      %v1214 = vmul.f32 %v563, %v1112
      %v1215 = vmul.f32 %v566, %v1127
      %v1216 = vmul.f32 %v569, %v1142
      %v1217 = vmul.f32 %v572, %v1157
      %v1218 = vmul.f32 %v575, %v1172
      %v1219 = vmul.f32 %v578, %v1187
      %1220 = vst [vmem:[#allocation2] sm:$0xff] 0.0
      %1221 = vst [vmem:[#allocation2 + $0x8] sm:$0xff] 0.0
      %1222 = vst [vmem:[#allocation2 + $0x10] sm:$0x3] 0.0
      %s1223 = scalar_lea.vmem [#allocation2], 408
      %1224 = vst [vmem:[%s1223] sm:$0xff] 0.0
      %1225 = vst [vmem:[%s1223 + $0x8] sm:$0xff] 0.0
      %1226 = vst [vmem:[%s1223 + $0x10] sm:$0x3] 0.0
      %s1227 = scalar_lea.vmem [#allocation2], 24
      %1228 = vst [vmem:[%s1227] sm:$0x1] 0.0
      %1229 = vst [vmem:[%s1227 + $0x18] sm:$0x1] 0.0
      %1230 = vst [vmem:[%s1227 + $0x30] sm:$0x1] 0.0
      %1231 = vst [vmem:[%s1227 + $0x48] sm:$0x1] 0.0
      %1232 = vst [vmem:[%s1227 + $0x60] sm:$0x1] 0.0
      %1233 = vst [vmem:[%s1227 + $0x78] sm:$0x1] 0.0
      %1234 = vst [vmem:[%s1227 + $0x90] sm:$0x1] 0.0
      %1235 = vst [vmem:[%s1227 + $0xa8] sm:$0x1] 0.0
      %1236 = vst [vmem:[%s1227 + $0xc0] sm:$0x1] 0.0
      %1237 = vst [vmem:[%s1227 + $0xd8] sm:$0x1] 0.0
      %1238 = vst [vmem:[%s1227 + $0xf0] sm:$0x1] 0.0
      %1239 = vst [vmem:[%s1227 + $0x108] sm:$0x1] 0.0
      %1240 = vst [vmem:[%s1227 + $0x120] sm:$0x1] 0.0
      %1241 = vst [vmem:[%s1227 + $0x138] sm:$0x1] 0.0
      %1242 = vst [vmem:[%s1227 + $0x150] sm:$0x1] 0.0
      %1243 = vst [vmem:[%s1227 + $0x168] sm:$0x1] 0.0
      %1244 = vst [vmem:[%s1227 + $0x11] sm:$0x1] 0.0
      %1245 = vst [vmem:[%s1227 + $0x29] sm:$0x1] 0.0
      %1246 = vst [vmem:[%s1227 + $0x41] sm:$0x1] 0.0
      %1247 = vst [vmem:[%s1227 + $0x59] sm:$0x1] 0.0
      %1248 = vst [vmem:[%s1227 + $0x71] sm:$0x1] 0.0
      %1249 = vst [vmem:[%s1227 + $0x89] sm:$0x1] 0.0
      %1250 = vst [vmem:[%s1227 + $0xa1] sm:$0x1] 0.0
      %1251 = vst [vmem:[%s1227 + $0xb9] sm:$0x1] 0.0
      %1252 = vst [vmem:[%s1227 + $0xd1] sm:$0x1] 0.0
      %1253 = vst [vmem:[%s1227 + $0xe9] sm:$0x1] 0.0
      %1254 = vst [vmem:[%s1227 + $0x101] sm:$0x1] 0.0
      %1255 = vst [vmem:[%s1227 + $0x119] sm:$0x1] 0.0
      %1256 = vst [vmem:[%s1227 + $0x131] sm:$0x1] 0.0
      %1257 = vst [vmem:[%s1227 + $0x149] sm:$0x1] 0.0
      %1258 = vst [vmem:[%s1227 + $0x161] sm:$0x1] 0.0
      %1259 = vst [vmem:[%s1227 + $0x179] sm:$0x1] 0.0
      %1260 = vst [vmem:[%s1227 + $0x1] sm:$0xff] %v1188
      %1261 = vst [vmem:[%s1227 + $0x9] sm:$0xff] %v1189
      %1262 = vst [vmem:[%s1227 + $0x19] sm:$0xff] %v1190
      %1263 = vst [vmem:[%s1227 + $0x21] sm:$0xff] %v1191
      %1264 = vst [vmem:[%s1227 + $0x31] sm:$0xff] %v1192
      %1265 = vst [vmem:[%s1227 + $0x39] sm:$0xff] %v1193
      %1266 = vst [vmem:[%s1227 + $0x49] sm:$0xff] %v1194
      %1267 = vst [vmem:[%s1227 + $0x51] sm:$0xff] %v1195
      %1268 = vst [vmem:[%s1227 + $0x61] sm:$0xff] %v1196
      %1269 = vst [vmem:[%s1227 + $0x69] sm:$0xff] %v1197
      %1270 = vst [vmem:[%s1227 + $0x79] sm:$0xff] %v1198
      %1271 = vst [vmem:[%s1227 + $0x81] sm:$0xff] %v1199
      %1272 = vst [vmem:[%s1227 + $0x91] sm:$0xff] %v1200
      %1273 = vst [vmem:[%s1227 + $0x99] sm:$0xff] %v1201
      %1274 = vst [vmem:[%s1227 + $0xa9] sm:$0xff] %v1202
      %1275 = vst [vmem:[%s1227 + $0xb1] sm:$0xff] %v1203
      %1276 = vst [vmem:[%s1227 + $0xc1] sm:$0xff] %v1204
      %1277 = vst [vmem:[%s1227 + $0xc9] sm:$0xff] %v1205
      %1278 = vst [vmem:[%s1227 + $0xd9] sm:$0xff] %v1206
      %1279 = vst [vmem:[%s1227 + $0xe1] sm:$0xff] %v1207
      %1280 = vst [vmem:[%s1227 + $0xf1] sm:$0xff] %v1208
      %1281 = vst [vmem:[%s1227 + $0xf9] sm:$0xff] %v1209
      %1282 = vst [vmem:[%s1227 + $0x109] sm:$0xff] %v1210
      %1283 = vst [vmem:[%s1227 + $0x111] sm:$0xff] %v1211
      %1284 = vst [vmem:[%s1227 + $0x121] sm:$0xff] %v1212
      %1285 = vst [vmem:[%s1227 + $0x129] sm:$0xff] %v1213
      %1286 = vst [vmem:[%s1227 + $0x139] sm:$0xff] %v1214
      %1287 = vst [vmem:[%s1227 + $0x141] sm:$0xff] %v1215
      %1288 = vst [vmem:[%s1227 + $0x151] sm:$0xff] %v1216
      %1289 = vst [vmem:[%s1227 + $0x159] sm:$0xff] %v1217
      %1290 = vst [vmem:[%s1227 + $0x169] sm:$0xff] %v1218
      %1291 = vst [vmem:[%s1227 + $0x171] sm:$0xff] %v1219
      %v1292 = vld [vmem:[%s3] sm:$0x7]
      %v1293 = vld [vmem:[%s3 + $0x4] sm:$0x7]
      %v1294 = vld [vmem:[%s3 + $0x8] sm:$0x7]
      %v1295 = vld [vmem:[#allocation2] sm:$0xff]
      %v1296 = vld [vmem:[#allocation2 + $0x8] sm:$0xff]
      %v1297 = vld [vmem:[#allocation2 + $0x18] sm:$0xff]
      %v1298 = vld [vmem:[#allocation2 + $0x20] sm:$0xff]
      %v1299 = vld [vmem:[#allocation2 + $0x30] sm:$0xff]
      %v1300 = vld [vmem:[#allocation2 + $0x38] sm:$0xff]
      %v1301 = vld [vmem:[#allocation2 + $0x48] sm:$0xff]
      %v1302 = vld [vmem:[#allocation2 + $0x50] sm:$0xff]
      %v1303 = vld [vmem:[#allocation2 + $0x60] sm:$0xff]
      %v1304 = vld [vmem:[#allocation2 + $0x68] sm:$0xff]
      %v1305 = vld [vmem:[#allocation2 + $0x78] sm:$0xff]
      %v1306 = vld [vmem:[#allocation2 + $0x80] sm:$0xff]
      %v1307 = vld [vmem:[#allocation2 + $0x90] sm:$0xff]
      %v1308 = vld [vmem:[#allocation2 + $0x98] sm:$0xff]
      %v1309 = vld [vmem:[#allocation2 + $0xa8] sm:$0xff]
      %v1310 = vld [vmem:[#allocation2 + $0xb0] sm:$0xff]
      %v1311 = vld [vmem:[#allocation2 + $0xc0] sm:$0xff]
      %v1312 = vld [vmem:[#allocation2 + $0xc8] sm:$0xff]
      %v1313 = vld [vmem:[#allocation2 + $0xd8] sm:$0xff]
      %v1314 = vld [vmem:[#allocation2 + $0xe0] sm:$0xff]
      %v1315 = vld [vmem:[#allocation2 + $0xf0] sm:$0xff]
      %v1316 = vld [vmem:[#allocation2 + $0xf8] sm:$0xff]
      %v1317 = vld [vmem:[#allocation2 + $0x108] sm:$0xff]
      %v1318 = vld [vmem:[#allocation2 + $0x110] sm:$0xff]
      %v1319 = vld [vmem:[#allocation2 + $0x120] sm:$0xff]
      %v1320 = vld [vmem:[#allocation2 + $0x128] sm:$0xff]
      %v1321 = vld [vmem:[#allocation2 + $0x138] sm:$0xff]
      %v1322 = vld [vmem:[#allocation2 + $0x140] sm:$0xff]
      %v1323 = vld [vmem:[#allocation2 + $0x150] sm:$0xff]
      %v1324 = vld [vmem:[#allocation2 + $0x158] sm:$0xff]
      %v1325 = vld [vmem:[#allocation2 + $0x168] sm:$0xff]
      %v1326 = vld [vmem:[#allocation2 + $0x170] sm:$0xff]
      %v1327 = vld [vmem:[#allocation2 + $0x180] sm:$0xff]
      %v1328 = vld [vmem:[#allocation2 + $0x188] sm:$0xff]
      %v1329 = vld [vmem:[#allocation2 + $0x198] sm:$0xff]
      %v1330 = vld [vmem:[#allocation2 + $0x1a0] sm:$0xff]
      %v1331 = vperm.slane %v1292, 0
      %v1332 = vmul.f32 %v1295, %v1331
      %v1333 = vmul.f32 %v1296, %v1331
      %v1334 = vmul.f32 %v1297, %v1331
      %v1335 = vmul.f32 %v1298, %v1331
      %v1336 = vmul.f32 %v1299, %v1331
      %v1337 = vmul.f32 %v1300, %v1331
      %v1338 = vmul.f32 %v1301, %v1331
      %v1339 = vmul.f32 %v1302, %v1331
      %v1340 = vmul.f32 %v1303, %v1331
      %v1341 = vmul.f32 %v1304, %v1331
      %v1342 = vmul.f32 %v1305, %v1331
      %v1343 = vmul.f32 %v1306, %v1331
      %v1344 = vmul.f32 %v1307, %v1331
      %v1345 = vmul.f32 %v1308, %v1331
      %v1346 = vmul.f32 %v1309, %v1331
      %v1347 = vmul.f32 %v1310, %v1331
      %v1348 = vmul.f32 %v1311, %v1331
      %v1349 = vmul.f32 %v1312, %v1331
      %v1350 = vmul.f32 %v1313, %v1331
      %v1351 = vmul.f32 %v1314, %v1331
      %v1352 = vmul.f32 %v1315, %v1331
      %v1353 = vmul.f32 %v1316, %v1331
      %v1354 = vmul.f32 %v1317, %v1331
      %v1355 = vmul.f32 %v1318, %v1331
      %v1356 = vmul.f32 %v1319, %v1331
      %v1357 = vmul.f32 %v1320, %v1331
      %v1358 = vmul.f32 %v1321, %v1331
      %v1359 = vmul.f32 %v1322, %v1331
      %v1360 = vmul.f32 %v1323, %v1331
      %v1361 = vmul.f32 %v1324, %v1331
      %v1362 = vmul.f32 %v1325, %v1331
      %v1363 = vmul.f32 %v1326, %v1331
      %v1364 = vadd.f32 %v1332, 0.0
      %v1365 = vadd.f32 %v1333, 0.0
      %v1366 = vadd.f32 %v1334, 0.0
      %v1367 = vadd.f32 %v1335, 0.0
      %v1368 = vadd.f32 %v1336, 0.0
      %v1369 = vadd.f32 %v1337, 0.0
      %v1370 = vadd.f32 %v1338, 0.0
      %v1371 = vadd.f32 %v1339, 0.0
      %v1372 = vadd.f32 %v1340, 0.0
      %v1373 = vadd.f32 %v1341, 0.0
      %v1374 = vadd.f32 %v1342, 0.0
      %v1375 = vadd.f32 %v1343, 0.0
      %v1376 = vadd.f32 %v1344, 0.0
      %v1377 = vadd.f32 %v1345, 0.0
      %v1378 = vadd.f32 %v1346, 0.0
      %v1379 = vadd.f32 %v1347, 0.0
      %v1380 = vadd.f32 %v1348, 0.0
      %v1381 = vadd.f32 %v1349, 0.0
      %v1382 = vadd.f32 %v1350, 0.0
      %v1383 = vadd.f32 %v1351, 0.0
      %v1384 = vadd.f32 %v1352, 0.0
      %v1385 = vadd.f32 %v1353, 0.0
      %v1386 = vadd.f32 %v1354, 0.0
      %v1387 = vadd.f32 %v1355, 0.0
      %v1388 = vadd.f32 %v1356, 0.0
      %v1389 = vadd.f32 %v1357, 0.0
      %v1390 = vadd.f32 %v1358, 0.0
      %v1391 = vadd.f32 %v1359, 0.0
      %v1392 = vadd.f32 %v1360, 0.0
      %v1393 = vadd.f32 %v1361, 0.0
      %v1394 = vadd.f32 %v1362, 0.0
      %v1395 = vadd.f32 %v1363, 0.0
      %v1396 = vperm.slane %v1293, 0
      %v1397 = vmul.f32 %v1297, %v1396
      %v1398 = vmul.f32 %v1298, %v1396
      %v1399 = vmul.f32 %v1299, %v1396
      %v1400 = vmul.f32 %v1300, %v1396
      %v1401 = vmul.f32 %v1301, %v1396
      %v1402 = vmul.f32 %v1302, %v1396
      %v1403 = vmul.f32 %v1303, %v1396
      %v1404 = vmul.f32 %v1304, %v1396
      %v1405 = vmul.f32 %v1305, %v1396
      %v1406 = vmul.f32 %v1306, %v1396
      %v1407 = vmul.f32 %v1307, %v1396
      %v1408 = vmul.f32 %v1308, %v1396
      %v1409 = vmul.f32 %v1309, %v1396
      %v1410 = vmul.f32 %v1310, %v1396
      %v1411 = vmul.f32 %v1311, %v1396
      %v1412 = vmul.f32 %v1312, %v1396
      %v1413 = vmul.f32 %v1313, %v1396
      %v1414 = vmul.f32 %v1314, %v1396
      %v1415 = vmul.f32 %v1315, %v1396
      %v1416 = vmul.f32 %v1316, %v1396
      %v1417 = vmul.f32 %v1317, %v1396
      %v1418 = vmul.f32 %v1318, %v1396
      %v1419 = vmul.f32 %v1319, %v1396
      %v1420 = vmul.f32 %v1320, %v1396
      %v1421 = vmul.f32 %v1321, %v1396
      %v1422 = vmul.f32 %v1322, %v1396
      %v1423 = vmul.f32 %v1323, %v1396
      %v1424 = vmul.f32 %v1324, %v1396
      %v1425 = vmul.f32 %v1325, %v1396
      %v1426 = vmul.f32 %v1326, %v1396
      %v1427 = vmul.f32 %v1327, %v1396
      %v1428 = vmul.f32 %v1328, %v1396
      %v1429 = vadd.f32 %v1364, %v1397
      %v1430 = vadd.f32 %v1365, %v1398
      %v1431 = vadd.f32 %v1366, %v1399
      %v1432 = vadd.f32 %v1367, %v1400
      %v1433 = vadd.f32 %v1368, %v1401
      %v1434 = vadd.f32 %v1369, %v1402
      %v1435 = vadd.f32 %v1370, %v1403
      %v1436 = vadd.f32 %v1371, %v1404
      %v1437 = vadd.f32 %v1372, %v1405
      %v1438 = vadd.f32 %v1373, %v1406
      %v1439 = vadd.f32 %v1374, %v1407
      %v1440 = vadd.f32 %v1375, %v1408
      %v1441 = vadd.f32 %v1376, %v1409
      %v1442 = vadd.f32 %v1377, %v1410
      %v1443 = vadd.f32 %v1378, %v1411
      %v1444 = vadd.f32 %v1379, %v1412
      %v1445 = vadd.f32 %v1380, %v1413
      %v1446 = vadd.f32 %v1381, %v1414
      %v1447 = vadd.f32 %v1382, %v1415
      %v1448 = vadd.f32 %v1383, %v1416
      %v1449 = vadd.f32 %v1384, %v1417
      %v1450 = vadd.f32 %v1385, %v1418
      %v1451 = vadd.f32 %v1386, %v1419
      %v1452 = vadd.f32 %v1387, %v1420
      %v1453 = vadd.f32 %v1388, %v1421
      %v1454 = vadd.f32 %v1389, %v1422
      %v1455 = vadd.f32 %v1390, %v1423
      %v1456 = vadd.f32 %v1391, %v1424
      %v1457 = vadd.f32 %v1392, %v1425
      %v1458 = vadd.f32 %v1393, %v1426
      %v1459 = vadd.f32 %v1394, %v1427
      %v1460 = vadd.f32 %v1395, %v1428
      %v1461 = vperm.slane %v1294, 0
      %v1462 = vmul.f32 %v1299, %v1461
      %v1463 = vmul.f32 %v1300, %v1461
      %v1464 = vmul.f32 %v1301, %v1461
      %v1465 = vmul.f32 %v1302, %v1461
      %v1466 = vmul.f32 %v1303, %v1461
      %v1467 = vmul.f32 %v1304, %v1461
      %v1468 = vmul.f32 %v1305, %v1461
      %v1469 = vmul.f32 %v1306, %v1461
      %v1470 = vmul.f32 %v1307, %v1461
      %v1471 = vmul.f32 %v1308, %v1461
      %v1472 = vmul.f32 %v1309, %v1461
      %v1473 = vmul.f32 %v1310, %v1461
      %v1474 = vmul.f32 %v1311, %v1461
      %v1475 = vmul.f32 %v1312, %v1461
      %v1476 = vmul.f32 %v1313, %v1461
      %v1477 = vmul.f32 %v1314, %v1461
      %v1478 = vmul.f32 %v1315, %v1461
      %v1479 = vmul.f32 %v1316, %v1461
      %v1480 = vmul.f32 %v1317, %v1461
      %v1481 = vmul.f32 %v1318, %v1461
      %v1482 = vmul.f32 %v1319, %v1461
      %v1483 = vmul.f32 %v1320, %v1461
      %v1484 = vmul.f32 %v1321, %v1461
      %v1485 = vmul.f32 %v1322, %v1461
      %v1486 = vmul.f32 %v1323, %v1461
      %v1487 = vmul.f32 %v1324, %v1461
      %v1488 = vmul.f32 %v1325, %v1461
      %v1489 = vmul.f32 %v1326, %v1461
      %v1490 = vmul.f32 %v1327, %v1461
      %v1491 = vmul.f32 %v1328, %v1461
      %v1492 = vmul.f32 %v1329, %v1461
      %v1493 = vmul.f32 %v1330, %v1461
      %v1494 = vadd.f32 %v1429, %v1462
      %v1495 = vadd.f32 %v1430, %v1463
      %v1496 = vadd.f32 %v1431, %v1464
      %v1497 = vadd.f32 %v1432, %v1465
      %v1498 = vadd.f32 %v1433, %v1466
      %v1499 = vadd.f32 %v1434, %v1467
      %v1500 = vadd.f32 %v1435, %v1468
      %v1501 = vadd.f32 %v1436, %v1469
      %v1502 = vadd.f32 %v1437, %v1470
      %v1503 = vadd.f32 %v1438, %v1471
      %v1504 = vadd.f32 %v1439, %v1472
      %v1505 = vadd.f32 %v1440, %v1473
      %v1506 = vadd.f32 %v1441, %v1474
      %v1507 = vadd.f32 %v1442, %v1475
      %v1508 = vadd.f32 %v1443, %v1476
      %v1509 = vadd.f32 %v1444, %v1477
      %v1510 = vadd.f32 %v1445, %v1478
      %v1511 = vadd.f32 %v1446, %v1479
      %v1512 = vadd.f32 %v1447, %v1480
      %v1513 = vadd.f32 %v1448, %v1481
      %v1514 = vadd.f32 %v1449, %v1482
      %v1515 = vadd.f32 %v1450, %v1483
      %v1516 = vadd.f32 %v1451, %v1484
      %v1517 = vadd.f32 %v1452, %v1485
      %v1518 = vadd.f32 %v1453, %v1486
      %v1519 = vadd.f32 %v1454, %v1487
      %v1520 = vadd.f32 %v1455, %v1488
      %v1521 = vadd.f32 %v1456, %v1489
      %v1522 = vadd.f32 %v1457, %v1490
      %v1523 = vadd.f32 %v1458, %v1491
      %v1524 = vadd.f32 %v1459, %v1492
      %v1525 = vadd.f32 %v1460, %v1493
      %v1526 = vld [vmem:[#allocation2 + $0x1] sm:$0xff]
      %v1527 = vld [vmem:[#allocation2 + $0x9] sm:$0xff]
      %v1528 = vld [vmem:[#allocation2 + $0x19] sm:$0xff]
      %v1529 = vld [vmem:[#allocation2 + $0x21] sm:$0xff]
      %v1530 = vld [vmem:[#allocation2 + $0x31] sm:$0xff]
      %v1531 = vld [vmem:[#allocation2 + $0x39] sm:$0xff]
      %v1532 = vld [vmem:[#allocation2 + $0x49] sm:$0xff]
      %v1533 = vld [vmem:[#allocation2 + $0x51] sm:$0xff]
      %v1534 = vld [vmem:[#allocation2 + $0x61] sm:$0xff]
      %v1535 = vld [vmem:[#allocation2 + $0x69] sm:$0xff]
      %v1536 = vld [vmem:[#allocation2 + $0x79] sm:$0xff]
      %v1537 = vld [vmem:[#allocation2 + $0x81] sm:$0xff]
      %v1538 = vld [vmem:[#allocation2 + $0x91] sm:$0xff]
      %v1539 = vld [vmem:[#allocation2 + $0x99] sm:$0xff]
      %v1540 = vld [vmem:[#allocation2 + $0xa9] sm:$0xff]
      %v1541 = vld [vmem:[#allocation2 + $0xb1] sm:$0xff]
      %v1542 = vld [vmem:[#allocation2 + $0xc1] sm:$0xff]
      %v1543 = vld [vmem:[#allocation2 + $0xc9] sm:$0xff]
      %v1544 = vld [vmem:[#allocation2 + $0xd9] sm:$0xff]
      %v1545 = vld [vmem:[#allocation2 + $0xe1] sm:$0xff]
      %v1546 = vld [vmem:[#allocation2 + $0xf1] sm:$0xff]
      %v1547 = vld [vmem:[#allocation2 + $0xf9] sm:$0xff]
      %v1548 = vld [vmem:[#allocation2 + $0x109] sm:$0xff]
      %v1549 = vld [vmem:[#allocation2 + $0x111] sm:$0xff]
      %v1550 = vld [vmem:[#allocation2 + $0x121] sm:$0xff]
      %v1551 = vld [vmem:[#allocation2 + $0x129] sm:$0xff]
      %v1552 = vld [vmem:[#allocation2 + $0x139] sm:$0xff]
      %v1553 = vld [vmem:[#allocation2 + $0x141] sm:$0xff]
      %v1554 = vld [vmem:[#allocation2 + $0x151] sm:$0xff]
      %v1555 = vld [vmem:[#allocation2 + $0x159] sm:$0xff]
      %v1556 = vld [vmem:[#allocation2 + $0x169] sm:$0xff]
      %v1557 = vld [vmem:[#allocation2 + $0x171] sm:$0xff]
      %v1558 = vld [vmem:[#allocation2 + $0x181] sm:$0xff]
      %v1559 = vld [vmem:[#allocation2 + $0x189] sm:$0xff]
      %v1560 = vld [vmem:[#allocation2 + $0x199] sm:$0xff]
      %v1561 = vld [vmem:[#allocation2 + $0x1a1] sm:$0xff]
      %v1562 = vperm.slane %v1292, 1
      %v1563 = vmul.f32 %v1526, %v1562
      %v1564 = vmul.f32 %v1527, %v1562
      %v1565 = vmul.f32 %v1528, %v1562
      %v1566 = vmul.f32 %v1529, %v1562
      %v1567 = vmul.f32 %v1530, %v1562
      %v1568 = vmul.f32 %v1531, %v1562
      %v1569 = vmul.f32 %v1532, %v1562
      %v1570 = vmul.f32 %v1533, %v1562
      %v1571 = vmul.f32 %v1534, %v1562
      %v1572 = vmul.f32 %v1535, %v1562
      %v1573 = vmul.f32 %v1536, %v1562
      %v1574 = vmul.f32 %v1537, %v1562
      %v1575 = vmul.f32 %v1538, %v1562
      %v1576 = vmul.f32 %v1539, %v1562
      %v1577 = vmul.f32 %v1540, %v1562
      %v1578 = vmul.f32 %v1541, %v1562
      %v1579 = vmul.f32 %v1542, %v1562
      %v1580 = vmul.f32 %v1543, %v1562
      %v1581 = vmul.f32 %v1544, %v1562
      %v1582 = vmul.f32 %v1545, %v1562
      %v1583 = vmul.f32 %v1546, %v1562
      %v1584 = vmul.f32 %v1547, %v1562
      %v1585 = vmul.f32 %v1548, %v1562
      %v1586 = vmul.f32 %v1549, %v1562
      %v1587 = vmul.f32 %v1550, %v1562
      %v1588 = vmul.f32 %v1551, %v1562
      %v1589 = vmul.f32 %v1552, %v1562
      %v1590 = vmul.f32 %v1553, %v1562
      %v1591 = vmul.f32 %v1554, %v1562
      %v1592 = vmul.f32 %v1555, %v1562
      %v1593 = vmul.f32 %v1556, %v1562
      %v1594 = vmul.f32 %v1557, %v1562
      %v1595 = vadd.f32 %v1494, %v1563
      %v1596 = vadd.f32 %v1495, %v1564
      %v1597 = vadd.f32 %v1496, %v1565
      %v1598 = vadd.f32 %v1497, %v1566
      %v1599 = vadd.f32 %v1498, %v1567
      %v1600 = vadd.f32 %v1499, %v1568
      %v1601 = vadd.f32 %v1500, %v1569
      %v1602 = vadd.f32 %v1501, %v1570
      %v1603 = vadd.f32 %v1502, %v1571
      %v1604 = vadd.f32 %v1503, %v1572
      %v1605 = vadd.f32 %v1504, %v1573
      %v1606 = vadd.f32 %v1505, %v1574
      %v1607 = vadd.f32 %v1506, %v1575
      %v1608 = vadd.f32 %v1507, %v1576
      %v1609 = vadd.f32 %v1508, %v1577
      %v1610 = vadd.f32 %v1509, %v1578
      %v1611 = vadd.f32 %v1510, %v1579
      %v1612 = vadd.f32 %v1511, %v1580
      %v1613 = vadd.f32 %v1512, %v1581
      %v1614 = vadd.f32 %v1513, %v1582
      %v1615 = vadd.f32 %v1514, %v1583
      %v1616 = vadd.f32 %v1515, %v1584
      %v1617 = vadd.f32 %v1516, %v1585
      %v1618 = vadd.f32 %v1517, %v1586
      %v1619 = vadd.f32 %v1518, %v1587
      %v1620 = vadd.f32 %v1519, %v1588
      %v1621 = vadd.f32 %v1520, %v1589
      %v1622 = vadd.f32 %v1521, %v1590
      %v1623 = vadd.f32 %v1522, %v1591
      %v1624 = vadd.f32 %v1523, %v1592
      %v1625 = vadd.f32 %v1524, %v1593
      %v1626 = vadd.f32 %v1525, %v1594
      %v1627 = vperm.slane %v1293, 1
      %v1628 = vmul.f32 %v1528, %v1627
      %v1629 = vmul.f32 %v1529, %v1627
      %v1630 = vmul.f32 %v1530, %v1627
      %v1631 = vmul.f32 %v1531, %v1627
      %v1632 = vmul.f32 %v1532, %v1627
      %v1633 = vmul.f32 %v1533, %v1627
      %v1634 = vmul.f32 %v1534, %v1627
      %v1635 = vmul.f32 %v1535, %v1627
      %v1636 = vmul.f32 %v1536, %v1627
      %v1637 = vmul.f32 %v1537, %v1627
      %v1638 = vmul.f32 %v1538, %v1627
      %v1639 = vmul.f32 %v1539, %v1627
      %v1640 = vmul.f32 %v1540, %v1627
      %v1641 = vmul.f32 %v1541, %v1627
      %v1642 = vmul.f32 %v1542, %v1627
      %v1643 = vmul.f32 %v1543, %v1627
      %v1644 = vmul.f32 %v1544, %v1627
      %v1645 = vmul.f32 %v1545, %v1627
      %v1646 = vmul.f32 %v1546, %v1627
      %v1647 = vmul.f32 %v1547, %v1627
      %v1648 = vmul.f32 %v1548, %v1627
      %v1649 = vmul.f32 %v1549, %v1627
      %v1650 = vmul.f32 %v1550, %v1627
      %v1651 = vmul.f32 %v1551, %v1627
      %v1652 = vmul.f32 %v1552, %v1627
      %v1653 = vmul.f32 %v1553, %v1627
      %v1654 = vmul.f32 %v1554, %v1627
      %v1655 = vmul.f32 %v1555, %v1627
      %v1656 = vmul.f32 %v1556, %v1627
      %v1657 = vmul.f32 %v1557, %v1627
      %v1658 = vmul.f32 %v1558, %v1627
      %v1659 = vmul.f32 %v1559, %v1627
      %v1660 = vadd.f32 %v1595, %v1628
      %v1661 = vadd.f32 %v1596, %v1629
      %v1662 = vadd.f32 %v1597, %v1630
      %v1663 = vadd.f32 %v1598, %v1631
      %v1664 = vadd.f32 %v1599, %v1632
      %v1665 = vadd.f32 %v1600, %v1633
      %v1666 = vadd.f32 %v1601, %v1634
      %v1667 = vadd.f32 %v1602, %v1635
      %v1668 = vadd.f32 %v1603, %v1636
      %v1669 = vadd.f32 %v1604, %v1637
      %v1670 = vadd.f32 %v1605, %v1638
      %v1671 = vadd.f32 %v1606, %v1639
      %v1672 = vadd.f32 %v1607, %v1640
      %v1673 = vadd.f32 %v1608, %v1641
      %v1674 = vadd.f32 %v1609, %v1642
      %v1675 = vadd.f32 %v1610, %v1643
      %v1676 = vadd.f32 %v1611, %v1644
      %v1677 = vadd.f32 %v1612, %v1645
      %v1678 = vadd.f32 %v1613, %v1646
      %v1679 = vadd.f32 %v1614, %v1647
      %v1680 = vadd.f32 %v1615, %v1648
      %v1681 = vadd.f32 %v1616, %v1649
      %v1682 = vadd.f32 %v1617, %v1650
      %v1683 = vadd.f32 %v1618, %v1651
      %v1684 = vadd.f32 %v1619, %v1652
      %v1685 = vadd.f32 %v1620, %v1653
      %v1686 = vadd.f32 %v1621, %v1654
      %v1687 = vadd.f32 %v1622, %v1655
      %v1688 = vadd.f32 %v1623, %v1656
      %v1689 = vadd.f32 %v1624, %v1657
      %v1690 = vadd.f32 %v1625, %v1658
      %v1691 = vadd.f32 %v1626, %v1659
      %v1692 = vperm.slane %v1294, 1
      %v1693 = vmul.f32 %v1530, %v1692
      %v1694 = vmul.f32 %v1531, %v1692
      %v1695 = vmul.f32 %v1532, %v1692
      %v1696 = vmul.f32 %v1533, %v1692
      %v1697 = vmul.f32 %v1534, %v1692
      %v1698 = vmul.f32 %v1535, %v1692
      %v1699 = vmul.f32 %v1536, %v1692
      %v1700 = vmul.f32 %v1537, %v1692
      %v1701 = vmul.f32 %v1538, %v1692
      %v1702 = vmul.f32 %v1539, %v1692
      %v1703 = vmul.f32 %v1540, %v1692
      %v1704 = vmul.f32 %v1541, %v1692
      %v1705 = vmul.f32 %v1542, %v1692
      %v1706 = vmul.f32 %v1543, %v1692
      %v1707 = vmul.f32 %v1544, %v1692
      %v1708 = vmul.f32 %v1545, %v1692
      %v1709 = vmul.f32 %v1546, %v1692
      %v1710 = vmul.f32 %v1547, %v1692
      %v1711 = vmul.f32 %v1548, %v1692
      %v1712 = vmul.f32 %v1549, %v1692
      %v1713 = vmul.f32 %v1550, %v1692
      %v1714 = vmul.f32 %v1551, %v1692
      %v1715 = vmul.f32 %v1552, %v1692
      %v1716 = vmul.f32 %v1553, %v1692
      %v1717 = vmul.f32 %v1554, %v1692
      %v1718 = vmul.f32 %v1555, %v1692
      %v1719 = vmul.f32 %v1556, %v1692
      %v1720 = vmul.f32 %v1557, %v1692
      %v1721 = vmul.f32 %v1558, %v1692
      %v1722 = vmul.f32 %v1559, %v1692
      %v1723 = vmul.f32 %v1560, %v1692
      %v1724 = vmul.f32 %v1561, %v1692
      %v1725 = vadd.f32 %v1660, %v1693
      %v1726 = vadd.f32 %v1661, %v1694
      %v1727 = vadd.f32 %v1662, %v1695
      %v1728 = vadd.f32 %v1663, %v1696
      %v1729 = vadd.f32 %v1664, %v1697
      %v1730 = vadd.f32 %v1665, %v1698
      %v1731 = vadd.f32 %v1666, %v1699
      %v1732 = vadd.f32 %v1667, %v1700
      %v1733 = vadd.f32 %v1668, %v1701
      %v1734 = vadd.f32 %v1669, %v1702
      %v1735 = vadd.f32 %v1670, %v1703
      %v1736 = vadd.f32 %v1671, %v1704
      %v1737 = vadd.f32 %v1672, %v1705
      %v1738 = vadd.f32 %v1673, %v1706
      %v1739 = vadd.f32 %v1674, %v1707
      %v1740 = vadd.f32 %v1675, %v1708
      %v1741 = vadd.f32 %v1676, %v1709
      %v1742 = vadd.f32 %v1677, %v1710
      %v1743 = vadd.f32 %v1678, %v1711
      %v1744 = vadd.f32 %v1679, %v1712
      %v1745 = vadd.f32 %v1680, %v1713
      %v1746 = vadd.f32 %v1681, %v1714
      %v1747 = vadd.f32 %v1682, %v1715
      %v1748 = vadd.f32 %v1683, %v1716
      %v1749 = vadd.f32 %v1684, %v1717
      %v1750 = vadd.f32 %v1685, %v1718
      %v1751 = vadd.f32 %v1686, %v1719
      %v1752 = vadd.f32 %v1687, %v1720
      %v1753 = vadd.f32 %v1688, %v1721
      %v1754 = vadd.f32 %v1689, %v1722
      %v1755 = vadd.f32 %v1690, %v1723
      %v1756 = vadd.f32 %v1691, %v1724
      %v1757 = vld [vmem:[#allocation2 + $0x2] sm:$0xff]
      %v1758 = vld [vmem:[#allocation2 + $0xa] sm:$0xff]
      %v1759 = vld [vmem:[#allocation2 + $0x1a] sm:$0xff]
      %v1760 = vld [vmem:[#allocation2 + $0x22] sm:$0xff]
      %v1761 = vld [vmem:[#allocation2 + $0x32] sm:$0xff]
      %v1762 = vld [vmem:[#allocation2 + $0x3a] sm:$0xff]
      %v1763 = vld [vmem:[#allocation2 + $0x4a] sm:$0xff]
      %v1764 = vld [vmem:[#allocation2 + $0x52] sm:$0xff]
      %v1765 = vld [vmem:[#allocation2 + $0x62] sm:$0xff]
      %v1766 = vld [vmem:[#allocation2 + $0x6a] sm:$0xff]
      %v1767 = vld [vmem:[#allocation2 + $0x7a] sm:$0xff]
      %v1768 = vld [vmem:[#allocation2 + $0x82] sm:$0xff]
      %v1769 = vld [vmem:[#allocation2 + $0x92] sm:$0xff]
      %v1770 = vld [vmem:[#allocation2 + $0x9a] sm:$0xff]
      %v1771 = vld [vmem:[#allocation2 + $0xaa] sm:$0xff]
      %v1772 = vld [vmem:[#allocation2 + $0xb2] sm:$0xff]
      %v1773 = vld [vmem:[#allocation2 + $0xc2] sm:$0xff]
      %v1774 = vld [vmem:[#allocation2 + $0xca] sm:$0xff]
      %v1775 = vld [vmem:[#allocation2 + $0xda] sm:$0xff]
      %v1776 = vld [vmem:[#allocation2 + $0xe2] sm:$0xff]
      %v1777 = vld [vmem:[#allocation2 + $0xf2] sm:$0xff]
      %v1778 = vld [vmem:[#allocation2 + $0xfa] sm:$0xff]
      %v1779 = vld [vmem:[#allocation2 + $0x10a] sm:$0xff]
      %v1780 = vld [vmem:[#allocation2 + $0x112] sm:$0xff]
      %v1781 = vld [vmem:[#allocation2 + $0x122] sm:$0xff]
      %v1782 = vld [vmem:[#allocation2 + $0x12a] sm:$0xff]
      %v1783 = vld [vmem:[#allocation2 + $0x13a] sm:$0xff]
      %v1784 = vld [vmem:[#allocation2 + $0x142] sm:$0xff]
      %v1785 = vld [vmem:[#allocation2 + $0x152] sm:$0xff]
      %v1786 = vld [vmem:[#allocation2 + $0x15a] sm:$0xff]
      %v1787 = vld [vmem:[#allocation2 + $0x16a] sm:$0xff]
      %v1788 = vld [vmem:[#allocation2 + $0x172] sm:$0xff]
      %v1789 = vld [vmem:[#allocation2 + $0x182] sm:$0xff]
      %v1790 = vld [vmem:[#allocation2 + $0x18a] sm:$0xff]
      %v1791 = vld [vmem:[#allocation2 + $0x19a] sm:$0xff]
      %v1792 = vld [vmem:[#allocation2 + $0x1a2] sm:$0xff]
      %v1793 = vperm.slane %v1292, 2
      %v1794 = vmul.f32 %v1757, %v1793
      %v1795 = vmul.f32 %v1758, %v1793
      %v1796 = vmul.f32 %v1759, %v1793
      %v1797 = vmul.f32 %v1760, %v1793
      %v1798 = vmul.f32 %v1761, %v1793
      %v1799 = vmul.f32 %v1762, %v1793
      %v1800 = vmul.f32 %v1763, %v1793
      %v1801 = vmul.f32 %v1764, %v1793
      %v1802 = vmul.f32 %v1765, %v1793
      %v1803 = vmul.f32 %v1766, %v1793
      %v1804 = vmul.f32 %v1767, %v1793
      %v1805 = vmul.f32 %v1768, %v1793
      %v1806 = vmul.f32 %v1769, %v1793
      %v1807 = vmul.f32 %v1770, %v1793
      %v1808 = vmul.f32 %v1771, %v1793
      %v1809 = vmul.f32 %v1772, %v1793
      %v1810 = vmul.f32 %v1773, %v1793
      %v1811 = vmul.f32 %v1774, %v1793
      %v1812 = vmul.f32 %v1775, %v1793
      %v1813 = vmul.f32 %v1776, %v1793
      %v1814 = vmul.f32 %v1777, %v1793
      %v1815 = vmul.f32 %v1778, %v1793
      %v1816 = vmul.f32 %v1779, %v1793
      %v1817 = vmul.f32 %v1780, %v1793
      %v1818 = vmul.f32 %v1781, %v1793
      %v1819 = vmul.f32 %v1782, %v1793
      %v1820 = vmul.f32 %v1783, %v1793
      %v1821 = vmul.f32 %v1784, %v1793
      %v1822 = vmul.f32 %v1785, %v1793
      %v1823 = vmul.f32 %v1786, %v1793
      %v1824 = vmul.f32 %v1787, %v1793
      %v1825 = vmul.f32 %v1788, %v1793
      %v1826 = vadd.f32 %v1725, %v1794
      %v1827 = vadd.f32 %v1726, %v1795
      %v1828 = vadd.f32 %v1727, %v1796
      %v1829 = vadd.f32 %v1728, %v1797
      %v1830 = vadd.f32 %v1729, %v1798
      %v1831 = vadd.f32 %v1730, %v1799
      %v1832 = vadd.f32 %v1731, %v1800
      %v1833 = vadd.f32 %v1732, %v1801
      %v1834 = vadd.f32 %v1733, %v1802
      %v1835 = vadd.f32 %v1734, %v1803
      %v1836 = vadd.f32 %v1735, %v1804
      %v1837 = vadd.f32 %v1736, %v1805
      %v1838 = vadd.f32 %v1737, %v1806
      %v1839 = vadd.f32 %v1738, %v1807
      %v1840 = vadd.f32 %v1739, %v1808
      %v1841 = vadd.f32 %v1740, %v1809
      %v1842 = vadd.f32 %v1741, %v1810
      %v1843 = vadd.f32 %v1742, %v1811
      %v1844 = vadd.f32 %v1743, %v1812
      %v1845 = vadd.f32 %v1744, %v1813
      %v1846 = vadd.f32 %v1745, %v1814
      %v1847 = vadd.f32 %v1746, %v1815
      %v1848 = vadd.f32 %v1747, %v1816
      %v1849 = vadd.f32 %v1748, %v1817
      %v1850 = vadd.f32 %v1749, %v1818
      %v1851 = vadd.f32 %v1750, %v1819
      %v1852 = vadd.f32 %v1751, %v1820
      %v1853 = vadd.f32 %v1752, %v1821
      %v1854 = vadd.f32 %v1753, %v1822
      %v1855 = vadd.f32 %v1754, %v1823
      %v1856 = vadd.f32 %v1755, %v1824
      %v1857 = vadd.f32 %v1756, %v1825
      %v1858 = vperm.slane %v1293, 2
      %v1859 = vmul.f32 %v1759, %v1858
      %v1860 = vmul.f32 %v1760, %v1858
      %v1861 = vmul.f32 %v1761, %v1858
      %v1862 = vmul.f32 %v1762, %v1858
      %v1863 = vmul.f32 %v1763, %v1858
      %v1864 = vmul.f32 %v1764, %v1858
      %v1865 = vmul.f32 %v1765, %v1858
      %v1866 = vmul.f32 %v1766, %v1858
      %v1867 = vmul.f32 %v1767, %v1858
      %v1868 = vmul.f32 %v1768, %v1858
      %v1869 = vmul.f32 %v1769, %v1858
      %v1870 = vmul.f32 %v1770, %v1858
      %v1871 = vmul.f32 %v1771, %v1858
      %v1872 = vmul.f32 %v1772, %v1858
      %v1873 = vmul.f32 %v1773, %v1858
      %v1874 = vmul.f32 %v1774, %v1858
      %v1875 = vmul.f32 %v1775, %v1858
      %v1876 = vmul.f32 %v1776, %v1858
      %v1877 = vmul.f32 %v1777, %v1858
      %v1878 = vmul.f32 %v1778, %v1858
      %v1879 = vmul.f32 %v1779, %v1858
      %v1880 = vmul.f32 %v1780, %v1858
      %v1881 = vmul.f32 %v1781, %v1858
      %v1882 = vmul.f32 %v1782, %v1858
      %v1883 = vmul.f32 %v1783, %v1858
      %v1884 = vmul.f32 %v1784, %v1858
      %v1885 = vmul.f32 %v1785, %v1858
      %v1886 = vmul.f32 %v1786, %v1858
      %v1887 = vmul.f32 %v1787, %v1858
      %v1888 = vmul.f32 %v1788, %v1858
      %v1889 = vmul.f32 %v1789, %v1858
      %v1890 = vmul.f32 %v1790, %v1858
      %v1891 = vadd.f32 %v1826, %v1859
      %v1892 = vadd.f32 %v1827, %v1860
      %v1893 = vadd.f32 %v1828, %v1861
      %v1894 = vadd.f32 %v1829, %v1862
      %v1895 = vadd.f32 %v1830, %v1863
      %v1896 = vadd.f32 %v1831, %v1864
      %v1897 = vadd.f32 %v1832, %v1865
      %v1898 = vadd.f32 %v1833, %v1866
      %v1899 = vadd.f32 %v1834, %v1867
      %v1900 = vadd.f32 %v1835, %v1868
      %v1901 = vadd.f32 %v1836, %v1869
      %v1902 = vadd.f32 %v1837, %v1870
      %v1903 = vadd.f32 %v1838, %v1871
      %v1904 = vadd.f32 %v1839, %v1872
      %v1905 = vadd.f32 %v1840, %v1873
      %v1906 = vadd.f32 %v1841, %v1874
      %v1907 = vadd.f32 %v1842, %v1875
      %v1908 = vadd.f32 %v1843, %v1876
      %v1909 = vadd.f32 %v1844, %v1877
      %v1910 = vadd.f32 %v1845, %v1878
      %v1911 = vadd.f32 %v1846, %v1879
      %v1912 = vadd.f32 %v1847, %v1880
      %v1913 = vadd.f32 %v1848, %v1881
      %v1914 = vadd.f32 %v1849, %v1882
      %v1915 = vadd.f32 %v1850, %v1883
      %v1916 = vadd.f32 %v1851, %v1884
      %v1917 = vadd.f32 %v1852, %v1885
      %v1918 = vadd.f32 %v1853, %v1886
      %v1919 = vadd.f32 %v1854, %v1887
      %v1920 = vadd.f32 %v1855, %v1888
      %v1921 = vadd.f32 %v1856, %v1889
      %v1922 = vadd.f32 %v1857, %v1890
      %v1923 = vperm.slane %v1294, 2
      %v1924 = vmul.f32 %v1761, %v1923
      %v1925 = vmul.f32 %v1762, %v1923
      %v1926 = vmul.f32 %v1763, %v1923
      %v1927 = vmul.f32 %v1764, %v1923
      %v1928 = vmul.f32 %v1765, %v1923
      %v1929 = vmul.f32 %v1766, %v1923
      %v1930 = vmul.f32 %v1767, %v1923
      %v1931 = vmul.f32 %v1768, %v1923
      %v1932 = vmul.f32 %v1769, %v1923
      %v1933 = vmul.f32 %v1770, %v1923
      %v1934 = vmul.f32 %v1771, %v1923
      %v1935 = vmul.f32 %v1772, %v1923
      %v1936 = vmul.f32 %v1773, %v1923
      %v1937 = vmul.f32 %v1774, %v1923
      %v1938 = vmul.f32 %v1775, %v1923
      %v1939 = vmul.f32 %v1776, %v1923
      %v1940 = vmul.f32 %v1777, %v1923
      %v1941 = vmul.f32 %v1778, %v1923
      %v1942 = vmul.f32 %v1779, %v1923
      %v1943 = vmul.f32 %v1780, %v1923
      %v1944 = vmul.f32 %v1781, %v1923
      %v1945 = vmul.f32 %v1782, %v1923
      %v1946 = vmul.f32 %v1783, %v1923
      %v1947 = vmul.f32 %v1784, %v1923
      %v1948 = vmul.f32 %v1785, %v1923
      %v1949 = vmul.f32 %v1786, %v1923
      %v1950 = vmul.f32 %v1787, %v1923
      %v1951 = vmul.f32 %v1788, %v1923
      %v1952 = vmul.f32 %v1789, %v1923
      %v1953 = vmul.f32 %v1790, %v1923
      %v1954 = vmul.f32 %v1791, %v1923
      %v1955 = vmul.f32 %v1792, %v1923
      %v1956 = vadd.f32 %v1891, %v1924
      %v1957 = vadd.f32 %v1892, %v1925
      %v1958 = vadd.f32 %v1893, %v1926
      %v1959 = vadd.f32 %v1894, %v1927
      %v1960 = vadd.f32 %v1895, %v1928
      %v1961 = vadd.f32 %v1896, %v1929
      %v1962 = vadd.f32 %v1897, %v1930
      %v1963 = vadd.f32 %v1898, %v1931
      %v1964 = vadd.f32 %v1899, %v1932
      %v1965 = vadd.f32 %v1900, %v1933
      %v1966 = vadd.f32 %v1901, %v1934
      %v1967 = vadd.f32 %v1902, %v1935
      %v1968 = vadd.f32 %v1903, %v1936
      %v1969 = vadd.f32 %v1904, %v1937
      %v1970 = vadd.f32 %v1905, %v1938
      %v1971 = vadd.f32 %v1906, %v1939
      %v1972 = vadd.f32 %v1907, %v1940
      %v1973 = vadd.f32 %v1908, %v1941
      %v1974 = vadd.f32 %v1909, %v1942
      %v1975 = vadd.f32 %v1910, %v1943
      %v1976 = vadd.f32 %v1911, %v1944
      %v1977 = vadd.f32 %v1912, %v1945
      %v1978 = vadd.f32 %v1913, %v1946
      %v1979 = vadd.f32 %v1914, %v1947
      %v1980 = vadd.f32 %v1915, %v1948
      %v1981 = vadd.f32 %v1916, %v1949
      %v1982 = vadd.f32 %v1917, %v1950
      %v1983 = vadd.f32 %v1918, %v1951
      %v1984 = vadd.f32 %v1919, %v1952
      %v1985 = vadd.f32 %v1920, %v1953
      %v1986 = vadd.f32 %v1921, %v1954
      %v1987 = vadd.f32 %v1922, %v1955
      %v1988 = vld [vmem:[%s4] sm:$0x1]
      %v1990 = vperm.slane %v1988, 0
      %v1992 = vadd.f32 %v1956, %v1990
      %v1993 = vadd.f32 %v1957, %v1990
      %v1994 = vadd.f32 %v1958, %v1990
      %v1995 = vadd.f32 %v1959, %v1990
      %v1996 = vadd.f32 %v1960, %v1990
      %v1997 = vadd.f32 %v1961, %v1990
      %v1998 = vadd.f32 %v1962, %v1990
      %v1999 = vadd.f32 %v1963, %v1990
      %v2000 = vadd.f32 %v1964, %v1990
      %v2001 = vadd.f32 %v1965, %v1990
      %v2002 = vadd.f32 %v1966, %v1990
      %v2003 = vadd.f32 %v1967, %v1990
      %v2004 = vadd.f32 %v1968, %v1990
      %v2005 = vadd.f32 %v1969, %v1990
      %v2006 = vadd.f32 %v1970, %v1990
      %v2007 = vadd.f32 %v1971, %v1990
      %v2008 = vadd.f32 %v1972, %v1990
      %v2009 = vadd.f32 %v1973, %v1990
      %v2010 = vadd.f32 %v1974, %v1990
      %v2011 = vadd.f32 %v1975, %v1990
      %v2012 = vadd.f32 %v1976, %v1990
      %v2013 = vadd.f32 %v1977, %v1990
      %v2014 = vadd.f32 %v1978, %v1990
      %v2015 = vadd.f32 %v1979, %v1990
      %v2016 = vadd.f32 %v1980, %v1990
      %v2017 = vadd.f32 %v1981, %v1990
      %v2018 = vadd.f32 %v1982, %v1990
      %v2019 = vadd.f32 %v1983, %v1990
      %v2020 = vadd.f32 %v1984, %v1990
      %v2021 = vadd.f32 %v1985, %v1990
      %v2022 = vadd.f32 %v1986, %v1990
      %v2023 = vadd.f32 %v1987, %v1990
      %v2024 = vxor.u32 %v1992, 2147483648
      %v2025 = vxor.u32 %v1993, 2147483648
      %v2026 = vxor.u32 %v1994, 2147483648
      %v2027 = vxor.u32 %v1995, 2147483648
      %v2028 = vxor.u32 %v1996, 2147483648
      %v2029 = vxor.u32 %v1997, 2147483648
      %v2030 = vxor.u32 %v1998, 2147483648
      %v2031 = vxor.u32 %v1999, 2147483648
      %v2032 = vxor.u32 %v2000, 2147483648
      %v2033 = vxor.u32 %v2001, 2147483648
      %v2034 = vxor.u32 %v2002, 2147483648
      %v2035 = vxor.u32 %v2003, 2147483648
      %v2036 = vxor.u32 %v2004, 2147483648
      %v2037 = vxor.u32 %v2005, 2147483648
      %v2038 = vxor.u32 %v2006, 2147483648
      %v2039 = vxor.u32 %v2007, 2147483648
      %v2040 = vxor.u32 %v2008, 2147483648
      %v2041 = vxor.u32 %v2009, 2147483648
      %v2042 = vxor.u32 %v2010, 2147483648
      %v2043 = vxor.u32 %v2011, 2147483648
      %v2044 = vxor.u32 %v2012, 2147483648
      %v2045 = vxor.u32 %v2013, 2147483648
      %v2046 = vxor.u32 %v2014, 2147483648
      %v2047 = vxor.u32 %v2015, 2147483648
      %v2048 = vxor.u32 %v2016, 2147483648
      %v2049 = vxor.u32 %v2017, 2147483648
      %v2050 = vxor.u32 %v2018, 2147483648
      %v2051 = vxor.u32 %v2019, 2147483648
      %v2052 = vxor.u32 %v2020, 2147483648
      %v2053 = vxor.u32 %v2021, 2147483648
      %v2054 = vxor.u32 %v2022, 2147483648
      %v2055 = vxor.u32 %v2023, 2147483648
      %v2056 = vmul.f32 %v2024, 1.442695
      %v2057 = vpow.pop %v2056
      %v2058 = vmul.f32 %v2025, 1.442695
      %v2059 = vpow.pop %v2058
      %v2060 = vmul.f32 %v2026, 1.442695
      %v2061 = vpow.pop %v2060
      %v2062 = vmul.f32 %v2027, 1.442695
      %v2063 = vpow.pop %v2062
      %v2064 = vmul.f32 %v2028, 1.442695
      %v2065 = vpow.pop %v2064
      %v2066 = vmul.f32 %v2029, 1.442695
      %v2067 = vpow.pop %v2066
      %v2068 = vmul.f32 %v2030, 1.442695
      %v2069 = vpow.pop %v2068
      %v2070 = vmul.f32 %v2031, 1.442695
      %v2071 = vpow.pop %v2070
      %v2072 = vmul.f32 %v2032, 1.442695
      %v2073 = vpow.pop %v2072
      %v2074 = vmul.f32 %v2033, 1.442695
      %v2075 = vpow.pop %v2074
      %v2076 = vmul.f32 %v2034, 1.442695
      %v2077 = vpow.pop %v2076
      %v2078 = vmul.f32 %v2035, 1.442695
      %v2079 = vpow.pop %v2078
      %v2080 = vmul.f32 %v2036, 1.442695
      %v2081 = vpow.pop %v2080
      %v2082 = vmul.f32 %v2037, 1.442695
      %v2083 = vpow.pop %v2082
      %v2084 = vmul.f32 %v2038, 1.442695
      %v2085 = vpow.pop %v2084
      %v2086 = vmul.f32 %v2039, 1.442695
      %v2087 = vpow.pop %v2086
      %v2088 = vmul.f32 %v2040, 1.442695
      %v2089 = vpow.pop %v2088
      %v2090 = vmul.f32 %v2041, 1.442695
      %v2091 = vpow.pop %v2090
      %v2092 = vmul.f32 %v2042, 1.442695
      %v2093 = vpow.pop %v2092
      %v2094 = vmul.f32 %v2043, 1.442695
      %v2095 = vpow.pop %v2094
      %v2096 = vmul.f32 %v2044, 1.442695
      %v2097 = vpow.pop %v2096
      %v2098 = vmul.f32 %v2045, 1.442695
      %v2099 = vpow.pop %v2098
      %v2100 = vmul.f32 %v2046, 1.442695
      %v2101 = vpow.pop %v2100
      %v2102 = vmul.f32 %v2047, 1.442695
      %v2103 = vpow.pop %v2102
      %v2104 = vmul.f32 %v2048, 1.442695
      %v2105 = vpow.pop %v2104
      %v2106 = vmul.f32 %v2049, 1.442695
      %v2107 = vpow.pop %v2106
      %v2108 = vmul.f32 %v2050, 1.442695
      %v2109 = vpow.pop %v2108
      %v2110 = vmul.f32 %v2051, 1.442695
      %v2111 = vpow.pop %v2110
      %v2112 = vmul.f32 %v2052, 1.442695
      %v2113 = vpow.pop %v2112
      %v2114 = vmul.f32 %v2053, 1.442695
      %v2115 = vpow.pop %v2114
      %v2116 = vmul.f32 %v2054, 1.442695
      %v2117 = vpow.pop %v2116
      %v2118 = vmul.f32 %v2055, 1.442695
      %v2119 = vpow.pop %v2118
      %v2120 = vadd.f32 %v2057, 1.0
      %v2121 = vadd.f32 %v2059, 1.0
      %v2122 = vadd.f32 %v2061, 1.0
      %v2123 = vadd.f32 %v2063, 1.0
      %v2124 = vadd.f32 %v2065, 1.0
      %v2125 = vadd.f32 %v2067, 1.0
      %v2126 = vadd.f32 %v2069, 1.0
      %v2127 = vadd.f32 %v2071, 1.0
      %v2128 = vadd.f32 %v2073, 1.0
      %v2129 = vadd.f32 %v2075, 1.0
      %v2130 = vadd.f32 %v2077, 1.0
      %v2131 = vadd.f32 %v2079, 1.0
      %v2132 = vadd.f32 %v2081, 1.0
      %v2133 = vadd.f32 %v2083, 1.0
      %v2134 = vadd.f32 %v2085, 1.0
      %v2135 = vadd.f32 %v2087, 1.0
      %v2136 = vadd.f32 %v2089, 1.0
      %v2137 = vadd.f32 %v2091, 1.0
      %v2138 = vadd.f32 %v2093, 1.0
      %v2139 = vadd.f32 %v2095, 1.0
      %v2140 = vadd.f32 %v2097, 1.0
      %v2141 = vadd.f32 %v2099, 1.0
      %v2142 = vadd.f32 %v2101, 1.0
      %v2143 = vadd.f32 %v2103, 1.0
      %v2144 = vadd.f32 %v2105, 1.0
      %v2145 = vadd.f32 %v2107, 1.0
      %v2146 = vadd.f32 %v2109, 1.0
      %v2147 = vadd.f32 %v2111, 1.0
      %v2148 = vadd.f32 %v2113, 1.0
      %v2149 = vadd.f32 %v2115, 1.0
      %v2150 = vadd.f32 %v2117, 1.0
      %v2151 = vadd.f32 %v2119, 1.0
      %v2152 = vrcp.pop %v2120
      %v2153 = vmul.f32 %v2120, %v2152
      %v2154 = vsub.f32 1.0, %v2153
      %v2155 = vmul.f32 %v2152, %v2154
      %v2156 = vadd.f32 %v2152, %v2155
      %vm2157 = vweird.f32 %v2120
      %vm2158 = vweird.f32 %v2152
      %vm2159 = vmor %vm2157, %vm2158
      %v2160 = vsel %vm2159, %v2152, %v2156
      %v2161 = vand.u32 2147483647, %v2120
      %vm2162 = vcmp.eq.f32.partialorder %v2161, 8.507059e+37
      %v2163 = vand.u32 %v2120, 2147483648
      %v2164 = vor.u32 1.1754944e-38, %v2163
      %v2165 = vsel %vm2162, %v2164, %v2160
      %v2166 = vmul.f32 1.0, %v2165
      %v2167 = vrcp.pop %v2121
      %v2168 = vmul.f32 %v2121, %v2167
      %v2169 = vsub.f32 1.0, %v2168
      %v2170 = vmul.f32 %v2167, %v2169
      %v2171 = vadd.f32 %v2167, %v2170
      %vm2172 = vweird.f32 %v2121
      %vm2173 = vweird.f32 %v2167
      %vm2174 = vmor %vm2172, %vm2173
      %v2175 = vsel %vm2174, %v2167, %v2171
      %v2176 = vand.u32 2147483647, %v2121
      %vm2177 = vcmp.eq.f32.partialorder %v2176, 8.507059e+37
      %v2178 = vand.u32 %v2121, 2147483648
      %v2179 = vor.u32 1.1754944e-38, %v2178
      %v2180 = vsel %vm2177, %v2179, %v2175
      %v2181 = vmul.f32 1.0, %v2180
      %v2182 = vrcp.pop %v2122
      %v2183 = vmul.f32 %v2122, %v2182
      %v2184 = vsub.f32 1.0, %v2183
      %v2185 = vmul.f32 %v2182, %v2184
      %v2186 = vadd.f32 %v2182, %v2185
      %vm2187 = vweird.f32 %v2122
      %vm2188 = vweird.f32 %v2182
      %vm2189 = vmor %vm2187, %vm2188
      %v2190 = vsel %vm2189, %v2182, %v2186
      %v2191 = vand.u32 2147483647, %v2122
      %vm2192 = vcmp.eq.f32.partialorder %v2191, 8.507059e+37
      %v2193 = vand.u32 %v2122, 2147483648
      %v2194 = vor.u32 1.1754944e-38, %v2193
      %v2195 = vsel %vm2192, %v2194, %v2190
      %v2196 = vmul.f32 1.0, %v2195
      %v2197 = vrcp.pop %v2123
      %v2198 = vmul.f32 %v2123, %v2197
      %v2199 = vsub.f32 1.0, %v2198
      %v2200 = vmul.f32 %v2197, %v2199
      %v2201 = vadd.f32 %v2197, %v2200
      %vm2202 = vweird.f32 %v2123
      %vm2203 = vweird.f32 %v2197
      %vm2204 = vmor %vm2202, %vm2203
      %v2205 = vsel %vm2204, %v2197, %v2201
      %v2206 = vand.u32 2147483647, %v2123
      %vm2207 = vcmp.eq.f32.partialorder %v2206, 8.507059e+37
      %v2208 = vand.u32 %v2123, 2147483648
      %v2209 = vor.u32 1.1754944e-38, %v2208
      %v2210 = vsel %vm2207, %v2209, %v2205
      %v2211 = vmul.f32 1.0, %v2210
      %v2212 = vrcp.pop %v2124
      %v2213 = vmul.f32 %v2124, %v2212
      %v2214 = vsub.f32 1.0, %v2213
      %v2215 = vmul.f32 %v2212, %v2214
      %v2216 = vadd.f32 %v2212, %v2215
      %vm2217 = vweird.f32 %v2124
      %vm2218 = vweird.f32 %v2212
      %vm2219 = vmor %vm2217, %vm2218
      %v2220 = vsel %vm2219, %v2212, %v2216
      %v2221 = vand.u32 2147483647, %v2124
      %vm2222 = vcmp.eq.f32.partialorder %v2221, 8.507059e+37
      %v2223 = vand.u32 %v2124, 2147483648
      %v2224 = vor.u32 1.1754944e-38, %v2223
      %v2225 = vsel %vm2222, %v2224, %v2220
      %v2226 = vmul.f32 1.0, %v2225
      %v2227 = vrcp.pop %v2125
      %v2228 = vmul.f32 %v2125, %v2227
      %v2229 = vsub.f32 1.0, %v2228
      %v2230 = vmul.f32 %v2227, %v2229
      %v2231 = vadd.f32 %v2227, %v2230
      %vm2232 = vweird.f32 %v2125
      %vm2233 = vweird.f32 %v2227
      %vm2234 = vmor %vm2232, %vm2233
      %v2235 = vsel %vm2234, %v2227, %v2231
      %v2236 = vand.u32 2147483647, %v2125
      %vm2237 = vcmp.eq.f32.partialorder %v2236, 8.507059e+37
      %v2238 = vand.u32 %v2125, 2147483648
      %v2239 = vor.u32 1.1754944e-38, %v2238
      %v2240 = vsel %vm2237, %v2239, %v2235
      %v2241 = vmul.f32 1.0, %v2240
      %v2242 = vrcp.pop %v2126
      %v2243 = vmul.f32 %v2126, %v2242
      %v2244 = vsub.f32 1.0, %v2243
      %v2245 = vmul.f32 %v2242, %v2244
      %v2246 = vadd.f32 %v2242, %v2245
      %vm2247 = vweird.f32 %v2126
      %vm2248 = vweird.f32 %v2242
      %vm2249 = vmor %vm2247, %vm2248
      %v2250 = vsel %vm2249, %v2242, %v2246
      %v2251 = vand.u32 2147483647, %v2126
      %vm2252 = vcmp.eq.f32.partialorder %v2251, 8.507059e+37
      %v2253 = vand.u32 %v2126, 2147483648
      %v2254 = vor.u32 1.1754944e-38, %v2253
      %v2255 = vsel %vm2252, %v2254, %v2250
      %v2256 = vmul.f32 1.0, %v2255
      %v2257 = vrcp.pop %v2127
      %v2258 = vmul.f32 %v2127, %v2257
      %v2259 = vsub.f32 1.0, %v2258
      %v2260 = vmul.f32 %v2257, %v2259
      %v2261 = vadd.f32 %v2257, %v2260
      %vm2262 = vweird.f32 %v2127
      %vm2263 = vweird.f32 %v2257
      %vm2264 = vmor %vm2262, %vm2263
      %v2265 = vsel %vm2264, %v2257, %v2261
      %v2266 = vand.u32 2147483647, %v2127
      %vm2267 = vcmp.eq.f32.partialorder %v2266, 8.507059e+37
      %v2268 = vand.u32 %v2127, 2147483648
      %v2269 = vor.u32 1.1754944e-38, %v2268
      %v2270 = vsel %vm2267, %v2269, %v2265
      %v2271 = vmul.f32 1.0, %v2270
      %v2272 = vrcp.pop %v2128
      %v2273 = vmul.f32 %v2128, %v2272
      %v2274 = vsub.f32 1.0, %v2273
      %v2275 = vmul.f32 %v2272, %v2274
      %v2276 = vadd.f32 %v2272, %v2275
      %vm2277 = vweird.f32 %v2128
      %vm2278 = vweird.f32 %v2272
      %vm2279 = vmor %vm2277, %vm2278
      %v2280 = vsel %vm2279, %v2272, %v2276
      %v2281 = vand.u32 2147483647, %v2128
      %vm2282 = vcmp.eq.f32.partialorder %v2281, 8.507059e+37
      %v2283 = vand.u32 %v2128, 2147483648
      %v2284 = vor.u32 1.1754944e-38, %v2283
      %v2285 = vsel %vm2282, %v2284, %v2280
      %v2286 = vmul.f32 1.0, %v2285
      %v2287 = vrcp.pop %v2129
      %v2288 = vmul.f32 %v2129, %v2287
      %v2289 = vsub.f32 1.0, %v2288
      %v2290 = vmul.f32 %v2287, %v2289
      %v2291 = vadd.f32 %v2287, %v2290
      %vm2292 = vweird.f32 %v2129
      %vm2293 = vweird.f32 %v2287
      %vm2294 = vmor %vm2292, %vm2293
      %v2295 = vsel %vm2294, %v2287, %v2291
      %v2296 = vand.u32 2147483647, %v2129
      %vm2297 = vcmp.eq.f32.partialorder %v2296, 8.507059e+37
      %v2298 = vand.u32 %v2129, 2147483648
      %v2299 = vor.u32 1.1754944e-38, %v2298
      %v2300 = vsel %vm2297, %v2299, %v2295
      %v2301 = vmul.f32 1.0, %v2300
      %v2302 = vrcp.pop %v2130
      %v2303 = vmul.f32 %v2130, %v2302
      %v2304 = vsub.f32 1.0, %v2303
      %v2305 = vmul.f32 %v2302, %v2304
      %v2306 = vadd.f32 %v2302, %v2305
      %vm2307 = vweird.f32 %v2130
      %vm2308 = vweird.f32 %v2302
      %vm2309 = vmor %vm2307, %vm2308
      %v2310 = vsel %vm2309, %v2302, %v2306
      %v2311 = vand.u32 2147483647, %v2130
      %vm2312 = vcmp.eq.f32.partialorder %v2311, 8.507059e+37
      %v2313 = vand.u32 %v2130, 2147483648
      %v2314 = vor.u32 1.1754944e-38, %v2313
      %v2315 = vsel %vm2312, %v2314, %v2310
      %v2316 = vmul.f32 1.0, %v2315
      %v2317 = vrcp.pop %v2131
      %v2318 = vmul.f32 %v2131, %v2317
      %v2319 = vsub.f32 1.0, %v2318
      %v2320 = vmul.f32 %v2317, %v2319
      %v2321 = vadd.f32 %v2317, %v2320
      %vm2322 = vweird.f32 %v2131
      %vm2323 = vweird.f32 %v2317
      %vm2324 = vmor %vm2322, %vm2323
      %v2325 = vsel %vm2324, %v2317, %v2321
      %v2326 = vand.u32 2147483647, %v2131
      %vm2327 = vcmp.eq.f32.partialorder %v2326, 8.507059e+37
      %v2328 = vand.u32 %v2131, 2147483648
      %v2329 = vor.u32 1.1754944e-38, %v2328
      %v2330 = vsel %vm2327, %v2329, %v2325
      %v2331 = vmul.f32 1.0, %v2330
      %v2332 = vrcp.pop %v2132
      %v2333 = vmul.f32 %v2132, %v2332
      %v2334 = vsub.f32 1.0, %v2333
      %v2335 = vmul.f32 %v2332, %v2334
      %v2336 = vadd.f32 %v2332, %v2335
      %vm2337 = vweird.f32 %v2132
      %vm2338 = vweird.f32 %v2332
      %vm2339 = vmor %vm2337, %vm2338
      %v2340 = vsel %vm2339, %v2332, %v2336
      %v2341 = vand.u32 2147483647, %v2132
      %vm2342 = vcmp.eq.f32.partialorder %v2341, 8.507059e+37
      %v2343 = vand.u32 %v2132, 2147483648
      %v2344 = vor.u32 1.1754944e-38, %v2343
      %v2345 = vsel %vm2342, %v2344, %v2340
      %v2346 = vmul.f32 1.0, %v2345
      %v2347 = vrcp.pop %v2133
      %v2348 = vmul.f32 %v2133, %v2347
      %v2349 = vsub.f32 1.0, %v2348
      %v2350 = vmul.f32 %v2347, %v2349
      %v2351 = vadd.f32 %v2347, %v2350
      %vm2352 = vweird.f32 %v2133
      %vm2353 = vweird.f32 %v2347
      %vm2354 = vmor %vm2352, %vm2353
      %v2355 = vsel %vm2354, %v2347, %v2351
      %v2356 = vand.u32 2147483647, %v2133
      %vm2357 = vcmp.eq.f32.partialorder %v2356, 8.507059e+37
      %v2358 = vand.u32 %v2133, 2147483648
      %v2359 = vor.u32 1.1754944e-38, %v2358
      %v2360 = vsel %vm2357, %v2359, %v2355
      %v2361 = vmul.f32 1.0, %v2360
      %v2362 = vrcp.pop %v2134
      %v2363 = vmul.f32 %v2134, %v2362
      %v2364 = vsub.f32 1.0, %v2363
      %v2365 = vmul.f32 %v2362, %v2364
      %v2366 = vadd.f32 %v2362, %v2365
      %vm2367 = vweird.f32 %v2134
      %vm2368 = vweird.f32 %v2362
      %vm2369 = vmor %vm2367, %vm2368
      %v2370 = vsel %vm2369, %v2362, %v2366
      %v2371 = vand.u32 2147483647, %v2134
      %vm2372 = vcmp.eq.f32.partialorder %v2371, 8.507059e+37
      %v2373 = vand.u32 %v2134, 2147483648
      %v2374 = vor.u32 1.1754944e-38, %v2373
      %v2375 = vsel %vm2372, %v2374, %v2370
      %v2376 = vmul.f32 1.0, %v2375
      %v2377 = vrcp.pop %v2135
      %v2378 = vmul.f32 %v2135, %v2377
      %v2379 = vsub.f32 1.0, %v2378
      %v2380 = vmul.f32 %v2377, %v2379
      %v2381 = vadd.f32 %v2377, %v2380
      %vm2382 = vweird.f32 %v2135
      %vm2383 = vweird.f32 %v2377
      %vm2384 = vmor %vm2382, %vm2383
      %v2385 = vsel %vm2384, %v2377, %v2381
      %v2386 = vand.u32 2147483647, %v2135
      %vm2387 = vcmp.eq.f32.partialorder %v2386, 8.507059e+37
      %v2388 = vand.u32 %v2135, 2147483648
      %v2389 = vor.u32 1.1754944e-38, %v2388
      %v2390 = vsel %vm2387, %v2389, %v2385
      %v2391 = vmul.f32 1.0, %v2390
      %v2392 = vrcp.pop %v2136
      %v2393 = vmul.f32 %v2136, %v2392
      %v2394 = vsub.f32 1.0, %v2393
      %v2395 = vmul.f32 %v2392, %v2394
      %v2396 = vadd.f32 %v2392, %v2395
      %vm2397 = vweird.f32 %v2136
      %vm2398 = vweird.f32 %v2392
      %vm2399 = vmor %vm2397, %vm2398
      %v2400 = vsel %vm2399, %v2392, %v2396
      %v2401 = vand.u32 2147483647, %v2136
      %vm2402 = vcmp.eq.f32.partialorder %v2401, 8.507059e+37
      %v2403 = vand.u32 %v2136, 2147483648
      %v2404 = vor.u32 1.1754944e-38, %v2403
      %v2405 = vsel %vm2402, %v2404, %v2400
      %v2406 = vmul.f32 1.0, %v2405
      %v2407 = vrcp.pop %v2137
      %v2408 = vmul.f32 %v2137, %v2407
      %v2409 = vsub.f32 1.0, %v2408
      %v2410 = vmul.f32 %v2407, %v2409
      %v2411 = vadd.f32 %v2407, %v2410
      %vm2412 = vweird.f32 %v2137
      %vm2413 = vweird.f32 %v2407
      %vm2414 = vmor %vm2412, %vm2413
      %v2415 = vsel %vm2414, %v2407, %v2411
      %v2416 = vand.u32 2147483647, %v2137
      %vm2417 = vcmp.eq.f32.partialorder %v2416, 8.507059e+37
      %v2418 = vand.u32 %v2137, 2147483648
      %v2419 = vor.u32 1.1754944e-38, %v2418
      %v2420 = vsel %vm2417, %v2419, %v2415
      %v2421 = vmul.f32 1.0, %v2420
      %v2422 = vrcp.pop %v2138
      %v2423 = vmul.f32 %v2138, %v2422
      %v2424 = vsub.f32 1.0, %v2423
      %v2425 = vmul.f32 %v2422, %v2424
      %v2426 = vadd.f32 %v2422, %v2425
      %vm2427 = vweird.f32 %v2138
      %vm2428 = vweird.f32 %v2422
      %vm2429 = vmor %vm2427, %vm2428
      %v2430 = vsel %vm2429, %v2422, %v2426
      %v2431 = vand.u32 2147483647, %v2138
      %vm2432 = vcmp.eq.f32.partialorder %v2431, 8.507059e+37
      %v2433 = vand.u32 %v2138, 2147483648
      %v2434 = vor.u32 1.1754944e-38, %v2433
      %v2435 = vsel %vm2432, %v2434, %v2430
      %v2436 = vmul.f32 1.0, %v2435
      %v2437 = vrcp.pop %v2139
      %v2438 = vmul.f32 %v2139, %v2437
      %v2439 = vsub.f32 1.0, %v2438
      %v2440 = vmul.f32 %v2437, %v2439
      %v2441 = vadd.f32 %v2437, %v2440
      %vm2442 = vweird.f32 %v2139
      %vm2443 = vweird.f32 %v2437
      %vm2444 = vmor %vm2442, %vm2443
      %v2445 = vsel %vm2444, %v2437, %v2441
      %v2446 = vand.u32 2147483647, %v2139
      %vm2447 = vcmp.eq.f32.partialorder %v2446, 8.507059e+37
      %v2448 = vand.u32 %v2139, 2147483648
      %v2449 = vor.u32 1.1754944e-38, %v2448
      %v2450 = vsel %vm2447, %v2449, %v2445
      %v2451 = vmul.f32 1.0, %v2450
      %v2452 = vrcp.pop %v2140
      %v2453 = vmul.f32 %v2140, %v2452
      %v2454 = vsub.f32 1.0, %v2453
      %v2455 = vmul.f32 %v2452, %v2454
      %v2456 = vadd.f32 %v2452, %v2455
      %vm2457 = vweird.f32 %v2140
      %vm2458 = vweird.f32 %v2452
      %vm2459 = vmor %vm2457, %vm2458
      %v2460 = vsel %vm2459, %v2452, %v2456
      %v2461 = vand.u32 2147483647, %v2140
      %vm2462 = vcmp.eq.f32.partialorder %v2461, 8.507059e+37
      %v2463 = vand.u32 %v2140, 2147483648
      %v2464 = vor.u32 1.1754944e-38, %v2463
      %v2465 = vsel %vm2462, %v2464, %v2460
      %v2466 = vmul.f32 1.0, %v2465
      %v2467 = vrcp.pop %v2141
      %v2468 = vmul.f32 %v2141, %v2467
      %v2469 = vsub.f32 1.0, %v2468
      %v2470 = vmul.f32 %v2467, %v2469
      %v2471 = vadd.f32 %v2467, %v2470
      %vm2472 = vweird.f32 %v2141
      %vm2473 = vweird.f32 %v2467
      %vm2474 = vmor %vm2472, %vm2473
      %v2475 = vsel %vm2474, %v2467, %v2471
      %v2476 = vand.u32 2147483647, %v2141
      %vm2477 = vcmp.eq.f32.partialorder %v2476, 8.507059e+37
      %v2478 = vand.u32 %v2141, 2147483648
      %v2479 = vor.u32 1.1754944e-38, %v2478
      %v2480 = vsel %vm2477, %v2479, %v2475
      %v2481 = vmul.f32 1.0, %v2480
      %v2482 = vrcp.pop %v2142
      %v2483 = vmul.f32 %v2142, %v2482
      %v2484 = vsub.f32 1.0, %v2483
      %v2485 = vmul.f32 %v2482, %v2484
      %v2486 = vadd.f32 %v2482, %v2485
      %vm2487 = vweird.f32 %v2142
      %vm2488 = vweird.f32 %v2482
      %vm2489 = vmor %vm2487, %vm2488
      %v2490 = vsel %vm2489, %v2482, %v2486
      %v2491 = vand.u32 2147483647, %v2142
      %vm2492 = vcmp.eq.f32.partialorder %v2491, 8.507059e+37
      %v2493 = vand.u32 %v2142, 2147483648
      %v2494 = vor.u32 1.1754944e-38, %v2493
      %v2495 = vsel %vm2492, %v2494, %v2490
      %v2496 = vmul.f32 1.0, %v2495
      %v2497 = vrcp.pop %v2143
      %v2498 = vmul.f32 %v2143, %v2497
      %v2499 = vsub.f32 1.0, %v2498
      %v2500 = vmul.f32 %v2497, %v2499
      %v2501 = vadd.f32 %v2497, %v2500
      %vm2502 = vweird.f32 %v2143
      %vm2503 = vweird.f32 %v2497
      %vm2504 = vmor %vm2502, %vm2503
      %v2505 = vsel %vm2504, %v2497, %v2501
      %v2506 = vand.u32 2147483647, %v2143
      %vm2507 = vcmp.eq.f32.partialorder %v2506, 8.507059e+37
      %v2508 = vand.u32 %v2143, 2147483648
      %v2509 = vor.u32 1.1754944e-38, %v2508
      %v2510 = vsel %vm2507, %v2509, %v2505
      %v2511 = vmul.f32 1.0, %v2510
      %v2512 = vrcp.pop %v2144
      %v2513 = vmul.f32 %v2144, %v2512
      %v2514 = vsub.f32 1.0, %v2513
      %v2515 = vmul.f32 %v2512, %v2514
      %v2516 = vadd.f32 %v2512, %v2515
      %vm2517 = vweird.f32 %v2144
      %vm2518 = vweird.f32 %v2512
      %vm2519 = vmor %vm2517, %vm2518
      %v2520 = vsel %vm2519, %v2512, %v2516
      %v2521 = vand.u32 2147483647, %v2144
      %vm2522 = vcmp.eq.f32.partialorder %v2521, 8.507059e+37
      %v2523 = vand.u32 %v2144, 2147483648
      %v2524 = vor.u32 1.1754944e-38, %v2523
      %v2525 = vsel %vm2522, %v2524, %v2520
      %v2526 = vmul.f32 1.0, %v2525
      %v2527 = vrcp.pop %v2145
      %v2528 = vmul.f32 %v2145, %v2527
      %v2529 = vsub.f32 1.0, %v2528
      %v2530 = vmul.f32 %v2527, %v2529
      %v2531 = vadd.f32 %v2527, %v2530
      %vm2532 = vweird.f32 %v2145
      %vm2533 = vweird.f32 %v2527
      %vm2534 = vmor %vm2532, %vm2533
      %v2535 = vsel %vm2534, %v2527, %v2531
      %v2536 = vand.u32 2147483647, %v2145
      %vm2537 = vcmp.eq.f32.partialorder %v2536, 8.507059e+37
      %v2538 = vand.u32 %v2145, 2147483648
      %v2539 = vor.u32 1.1754944e-38, %v2538
      %v2540 = vsel %vm2537, %v2539, %v2535
      %v2541 = vmul.f32 1.0, %v2540
      %v2542 = vrcp.pop %v2146
      %v2543 = vmul.f32 %v2146, %v2542
      %v2544 = vsub.f32 1.0, %v2543
      %v2545 = vmul.f32 %v2542, %v2544
      %v2546 = vadd.f32 %v2542, %v2545
      %vm2547 = vweird.f32 %v2146
      %vm2548 = vweird.f32 %v2542
      %vm2549 = vmor %vm2547, %vm2548
      %v2550 = vsel %vm2549, %v2542, %v2546
      %v2551 = vand.u32 2147483647, %v2146
      %vm2552 = vcmp.eq.f32.partialorder %v2551, 8.507059e+37
      %v2553 = vand.u32 %v2146, 2147483648
      %v2554 = vor.u32 1.1754944e-38, %v2553
      %v2555 = vsel %vm2552, %v2554, %v2550
      %v2556 = vmul.f32 1.0, %v2555
      %v2557 = vrcp.pop %v2147
      %v2558 = vmul.f32 %v2147, %v2557
      %v2559 = vsub.f32 1.0, %v2558
      %v2560 = vmul.f32 %v2557, %v2559
      %v2561 = vadd.f32 %v2557, %v2560
      %vm2562 = vweird.f32 %v2147
      %vm2563 = vweird.f32 %v2557
      %vm2564 = vmor %vm2562, %vm2563
      %v2565 = vsel %vm2564, %v2557, %v2561
      %v2566 = vand.u32 2147483647, %v2147
      %vm2567 = vcmp.eq.f32.partialorder %v2566, 8.507059e+37
      %v2568 = vand.u32 %v2147, 2147483648
      %v2569 = vor.u32 1.1754944e-38, %v2568
      %v2570 = vsel %vm2567, %v2569, %v2565
      %v2571 = vmul.f32 1.0, %v2570
      %v2572 = vrcp.pop %v2148
      %v2573 = vmul.f32 %v2148, %v2572
      %v2574 = vsub.f32 1.0, %v2573
      %v2575 = vmul.f32 %v2572, %v2574
      %v2576 = vadd.f32 %v2572, %v2575
      %vm2577 = vweird.f32 %v2148
      %vm2578 = vweird.f32 %v2572
      %vm2579 = vmor %vm2577, %vm2578
      %v2580 = vsel %vm2579, %v2572, %v2576
      %v2581 = vand.u32 2147483647, %v2148
      %vm2582 = vcmp.eq.f32.partialorder %v2581, 8.507059e+37
      %v2583 = vand.u32 %v2148, 2147483648
      %v2584 = vor.u32 1.1754944e-38, %v2583
      %v2585 = vsel %vm2582, %v2584, %v2580
      %v2586 = vmul.f32 1.0, %v2585
      %v2587 = vrcp.pop %v2149
      %v2588 = vmul.f32 %v2149, %v2587
      %v2589 = vsub.f32 1.0, %v2588
      %v2590 = vmul.f32 %v2587, %v2589
      %v2591 = vadd.f32 %v2587, %v2590
      %vm2592 = vweird.f32 %v2149
      %vm2593 = vweird.f32 %v2587
      %vm2594 = vmor %vm2592, %vm2593
      %v2595 = vsel %vm2594, %v2587, %v2591
      %v2596 = vand.u32 2147483647, %v2149
      %vm2597 = vcmp.eq.f32.partialorder %v2596, 8.507059e+37
      %v2598 = vand.u32 %v2149, 2147483648
      %v2599 = vor.u32 1.1754944e-38, %v2598
      %v2600 = vsel %vm2597, %v2599, %v2595
      %v2601 = vmul.f32 1.0, %v2600
      %v2602 = vrcp.pop %v2150
      %v2603 = vmul.f32 %v2150, %v2602
      %v2604 = vsub.f32 1.0, %v2603
      %v2605 = vmul.f32 %v2602, %v2604
      %v2606 = vadd.f32 %v2602, %v2605
      %vm2607 = vweird.f32 %v2150
      %vm2608 = vweird.f32 %v2602
      %vm2609 = vmor %vm2607, %vm2608
      %v2610 = vsel %vm2609, %v2602, %v2606
      %v2611 = vand.u32 2147483647, %v2150
      %vm2612 = vcmp.eq.f32.partialorder %v2611, 8.507059e+37
      %v2613 = vand.u32 %v2150, 2147483648
      %v2614 = vor.u32 1.1754944e-38, %v2613
      %v2615 = vsel %vm2612, %v2614, %v2610
      %v2616 = vmul.f32 1.0, %v2615
      %v2617 = vrcp.pop %v2151
      %v2618 = vmul.f32 %v2151, %v2617
      %v2619 = vsub.f32 1.0, %v2618
      %v2620 = vmul.f32 %v2617, %v2619
      %v2621 = vadd.f32 %v2617, %v2620
      %vm2622 = vweird.f32 %v2151
      %vm2623 = vweird.f32 %v2617
      %vm2624 = vmor %vm2622, %vm2623
      %v2625 = vsel %vm2624, %v2617, %v2621
      %v2626 = vand.u32 2147483647, %v2151
      %vm2627 = vcmp.eq.f32.partialorder %v2626, 8.507059e+37
      %v2628 = vand.u32 %v2151, 2147483648
      %v2629 = vor.u32 1.1754944e-38, %v2628
      %v2630 = vsel %vm2627, %v2629, %v2625
      %v2631 = vmul.f32 1.0, %v2630
      %v2632 = vmul.f32 %v1992, %v2166
      %v2633 = vmul.f32 %v1993, %v2181
      %v2634 = vmul.f32 %v1994, %v2196
      %v2635 = vmul.f32 %v1995, %v2211
      %v2636 = vmul.f32 %v1996, %v2226
      %v2637 = vmul.f32 %v1997, %v2241
      %v2638 = vmul.f32 %v1998, %v2256
      %v2639 = vmul.f32 %v1999, %v2271
      %v2640 = vmul.f32 %v2000, %v2286
      %v2641 = vmul.f32 %v2001, %v2301
      %v2642 = vmul.f32 %v2002, %v2316
      %v2643 = vmul.f32 %v2003, %v2331
      %v2644 = vmul.f32 %v2004, %v2346
      %v2645 = vmul.f32 %v2005, %v2361
      %v2646 = vmul.f32 %v2006, %v2376
      %v2647 = vmul.f32 %v2007, %v2391
      %v2648 = vmul.f32 %v2008, %v2406
      %v2649 = vmul.f32 %v2009, %v2421
      %v2650 = vmul.f32 %v2010, %v2436
      %v2651 = vmul.f32 %v2011, %v2451
      %v2652 = vmul.f32 %v2012, %v2466
      %v2653 = vmul.f32 %v2013, %v2481
      %v2654 = vmul.f32 %v2014, %v2496
      %v2655 = vmul.f32 %v2015, %v2511
      %v2656 = vmul.f32 %v2016, %v2526
      %v2657 = vmul.f32 %v2017, %v2541
      %v2658 = vmul.f32 %v2018, %v2556
      %v2659 = vmul.f32 %v2019, %v2571
      %v2660 = vmul.f32 %v2020, %v2586
      %v2661 = vmul.f32 %v2021, %v2601
      %v2662 = vmul.f32 %v2022, %v2616
      %v2663 = vmul.f32 %v2023, %v2631
      %v2664 = vadd.f32 %v2632, %v2633
      %v2665 = vadd.f32 %v2664, %v2634
      %v2666 = vadd.f32 %v2665, %v2635
      %v2667 = vadd.f32 %v2666, %v2636
      %v2668 = vadd.f32 %v2667, %v2637
      %v2669 = vadd.f32 %v2668, %v2638
      %v2670 = vadd.f32 %v2669, %v2639
      %v2671 = vadd.f32 %v2670, %v2640
      %v2672 = vadd.f32 %v2671, %v2641
      %v2673 = vadd.f32 %v2672, %v2642
      %v2674 = vadd.f32 %v2673, %v2643
      %v2675 = vadd.f32 %v2674, %v2644
      %v2676 = vadd.f32 %v2675, %v2645
      %v2677 = vadd.f32 %v2676, %v2646
      %v2678 = vadd.f32 %v2677, %v2647
      %v2679 = vadd.f32 %v2678, %v2648
      %v2680 = vadd.f32 %v2679, %v2649
      %v2681 = vadd.f32 %v2680, %v2650
      %v2682 = vadd.f32 %v2681, %v2651
      %v2683 = vadd.f32 %v2682, %v2652
      %v2684 = vadd.f32 %v2683, %v2653
      %v2685 = vadd.f32 %v2684, %v2654
      %v2686 = vadd.f32 %v2685, %v2655
      %v2687 = vadd.f32 %v2686, %v2656
      %v2688 = vadd.f32 %v2687, %v2657
      %v2689 = vadd.f32 %v2688, %v2658
      %v2690 = vadd.f32 %v2689, %v2659
      %v2691 = vadd.f32 %v2690, %v2660
      %v2692 = vadd.f32 %v2691, %v2661
      %v2693 = vadd.f32 %v2692, %v2662
      %v2694 = vadd.f32 %v2693, %v2663
      %v2695 = vrot.slane %v2694, 4
      %v2696 = vadd.f32 %v2694, %v2695
      %v2697 = vrot.slane %v2696, 2
      %v2698 = vadd.f32 %v2696, %v2697
      %v2699 = vrot.slane %v2698, 1
      %v2700 = vadd.f32 %v2698, %v2699
      %v2701 = vrcp.pop 256.0
      %v2702 = vmul.f32 256.0, %v2701
      %v2703 = vsub.f32 1.0, %v2702
      %v2704 = vmul.f32 %v2701, %v2703
      %v2705 = vadd.f32 %v2701, %v2704
      %vm2706 = vweird.f32 %v2701
      %v2707 = vsel %vm2706, %v2701, %v2705
      %v2708 = vmul.f32 %v2700, %v2707
      %v2709 = vld [vmem:[%s5] sm:$0xff]
      %v2710 = vld [vmem:[%s5 + $0x8] sm:$0xff]
      %v2711 = vld [vmem:[%s5 + $0x10] sm:$0xff]
      %v2712 = vld [vmem:[%s5 + $0x18] sm:$0xff]
      %v2713 = vld [vmem:[%s5 + $0x20] sm:$0xff]
      %v2714 = vld [vmem:[%s5 + $0x28] sm:$0xff]
      %v2715 = vld [vmem:[%s5 + $0x30] sm:$0xff]
      %v2716 = vld [vmem:[%s5 + $0x38] sm:$0xff]
      %v2717 = vld [vmem:[%s5 + $0x40] sm:$0xff]
      %v2718 = vld [vmem:[%s5 + $0x48] sm:$0xff]
      %v2719 = vld [vmem:[%s5 + $0x50] sm:$0xff]
      %v2720 = vld [vmem:[%s5 + $0x58] sm:$0xff]
      %v2721 = vld [vmem:[%s5 + $0x60] sm:$0xff]
      %v2722 = vld [vmem:[%s5 + $0x68] sm:$0xff]
      %v2723 = vld [vmem:[%s5 + $0x70] sm:$0xff]
      %v2724 = vld [vmem:[%s5 + $0x78] sm:$0xff]
      %2725 = vmatpush.msra.mxu0 %v2724
      %2726 = vmatpush.msra.mxu0 %v2723
      %2727 = vmatpush.msra.mxu0 %v2722
      %2728 = vmatpush.msra.mxu0 %v2721
      %2729 = vmatpush.msra.mxu0 %v2720
      %2730 = vmatpush.msra.mxu0 %v2719
      %2731 = vmatpush.msra.mxu0 %v2718
      %2732 = vmatpush.msra.mxu0 %v2717
      %2733 = vmatpush.msra.mxu0 %v2716
      %2734 = vmatpush.msra.mxu0 %v2715
      %2735 = vmatpush.msra.mxu0 %v2714
      %2736 = vmatpush.msra.mxu0 %v2713
      %2737 = vmatpush.msra.mxu0 %v2712
      %2738 = vmatpush.msra.mxu0 %v2711
      %2739 = vmatpush.msra.mxu0 %v2710
      %2740 = vmatpush.msra.mxu0 %v2709
      %2741 = vmatmul.f32.gmra.mxu0 %v2708
      %v2742 = vpop.f32.mrf.mxu0
      %v2743 = vadd.f32 0.0, %v2742
      %2744 = vdwg.mxu0
      %v2745 = vxor.u32 %v2743, 2147483648
      %v2746 = vmul.f32 %v2745, 1.442695
      %v2747 = vpow.pop %v2746
      %v2748 = vadd.f32 %v2747, 1.0
      %v2749 = vrcp.pop %v2748
      %v2750 = vmul.f32 %v2748, %v2749
      %v2751 = vsub.f32 1.0, %v2750
      %v2752 = vmul.f32 %v2749, %v2751
      %v2753 = vadd.f32 %v2749, %v2752
      %vm2754 = vweird.f32 %v2748
      %vm2755 = vweird.f32 %v2749
      %vm2756 = vmor %vm2754, %vm2755
      %v2757 = vsel %vm2756, %v2749, %v2753
      %v2758 = vand.u32 2147483647, %v2748
      %vm2759 = vcmp.eq.f32.partialorder %v2758, 8.507059e+37
      %v2760 = vand.u32 %v2748, 2147483648
      %v2761 = vor.u32 1.1754944e-38, %v2760
      %v2762 = vsel %vm2759, %v2761, %v2757
      %v2763 = vmul.f32 1.0, %v2762
      %v2764 = vmul.f32 %v2743, %v2763
      %v2765 = vld [vmem:[%s6] sm:$0x7]
      %vm2766 = vcmask 23552
      %v2768 = vsel %vm2766, %v2764, 0
      %vm2770 = vcmask 1042432
      %v2772 = vsel %vm2770, %v2765, 0
      %2774 = vmatpush.msra.mxu0 0.0
      %2775 = vmatpush.msra.mxu0 0.0
      %2776 = vmatpush.msra.mxu0 0.0
      %2777 = vmatpush.msra.mxu0 0.0
      %2778 = vmatpush.msra.mxu0 0.0
      %2779 = vmatpush.msra.mxu0 0.0
      %2780 = vmatpush.msra.mxu0 0.0
      %2781 = vmatpush.msra.mxu0 0.0
      %2782 = vmatpush.msra.mxu0 0.0
      %2783 = vmatpush.msra.mxu0 0.0
      %2784 = vmatpush.msra.mxu0 0.0
      %2785 = vmatpush.msra.mxu0 0.0
      %2786 = vmatpush.msra.mxu0 0.0
      %2787 = vmatpush.msra.mxu0 0.0
      %2788 = vmatpush.msra.mxu0 0.0
      %2789 = vmatpush.msra.mxu0 %v2772
      %2790 = vmatmul.f32.gmra.mxu0 %v2768
      %v2791 = vpop.f32.mrf.mxu0
      %v2792 = vadd.f32 0.0, %v2791
      %2793 = vdwg.mxu0
      %v2794 = vxor.u32 %v2792, 2147483648
      %v2795 = vmul.f32 %v2794, 1.442695
      %v2796 = vpow.pop %v2795
      %v2797 = vadd.f32 %v2796, 1.0
      %v2798 = vrcp.pop %v2797
      %v2799 = vmul.f32 %v2797, %v2798
      %v2800 = vsub.f32 1.0, %v2799
      %v2801 = vmul.f32 %v2798, %v2800
      %v2802 = vadd.f32 %v2798, %v2801
      %vm2803 = vweird.f32 %v2797
      %vm2804 = vweird.f32 %v2798
      %vm2805 = vmor %vm2803, %vm2804
      %v2806 = vsel %vm2805, %v2798, %v2802
      %v2807 = vand.u32 2147483647, %v2797
      %vm2808 = vcmp.eq.f32.partialorder %v2807, 8.507059e+37
      %v2809 = vand.u32 %v2797, 2147483648
      %v2810 = vor.u32 1.1754944e-38, %v2809
      %v2811 = vsel %vm2808, %v2810, %v2806
      %v2812 = vmul.f32 1.0, %v2811
      %v2813 = vperm.slane %v2812, 0
      %v2814 = vmul.f32 %v2632, %v2813
      %v2815 = vmul.f32 %v2633, %v2813
      %v2816 = vmul.f32 %v2634, %v2813
      %v2817 = vmul.f32 %v2635, %v2813
      %v2818 = vmul.f32 %v2636, %v2813
      %v2819 = vmul.f32 %v2637, %v2813
      %v2820 = vmul.f32 %v2638, %v2813
      %v2821 = vmul.f32 %v2639, %v2813
      %v2822 = vmul.f32 %v2640, %v2813
      %v2823 = vmul.f32 %v2641, %v2813
      %v2824 = vmul.f32 %v2642, %v2813
      %v2825 = vmul.f32 %v2643, %v2813
      %v2826 = vmul.f32 %v2644, %v2813
      %v2827 = vmul.f32 %v2645, %v2813
      %v2828 = vmul.f32 %v2646, %v2813
      %v2829 = vmul.f32 %v2647, %v2813
      %v2830 = vmul.f32 %v2648, %v2813
      %v2831 = vmul.f32 %v2649, %v2813
      %v2832 = vmul.f32 %v2650, %v2813
      %v2833 = vmul.f32 %v2651, %v2813
      %v2834 = vmul.f32 %v2652, %v2813
      %v2835 = vmul.f32 %v2653, %v2813
      %v2836 = vmul.f32 %v2654, %v2813
      %v2837 = vmul.f32 %v2655, %v2813
      %v2838 = vmul.f32 %v2656, %v2813
      %v2839 = vmul.f32 %v2657, %v2813
      %v2840 = vmul.f32 %v2658, %v2813
      %v2841 = vmul.f32 %v2659, %v2813
      %v2842 = vmul.f32 %v2660, %v2813
      %v2843 = vmul.f32 %v2661, %v2813
      %v2844 = vmul.f32 %v2662, %v2813
      %v2845 = vmul.f32 %v2663, %v2813
      %v2846 = vld [vmem:[%s7] sm:$0xff]
      %v2847 = vld [vmem:[%s7 + $0x8] sm:$0xff]
      %v2848 = vld [vmem:[%s7 + $0x10] sm:$0xff]
      %v2849 = vld [vmem:[%s7 + $0x18] sm:$0xff]
      %v2850 = vld [vmem:[%s7 + $0x20] sm:$0xff]
      %v2851 = vld [vmem:[%s7 + $0x28] sm:$0xff]
      %v2852 = vld [vmem:[%s7 + $0x30] sm:$0xff]
      %v2853 = vld [vmem:[%s7 + $0x38] sm:$0xff]
      %v2854 = vld [vmem:[%s7 + $0x40] sm:$0xff]
      %v2855 = vld [vmem:[%s7 + $0x48] sm:$0xff]
      %v2856 = vld [vmem:[%s7 + $0x50] sm:$0xff]
      %v2857 = vld [vmem:[%s7 + $0x58] sm:$0xff]
      %v2858 = vld [vmem:[%s7 + $0x60] sm:$0xff]
      %v2859 = vld [vmem:[%s7 + $0x68] sm:$0xff]
      %v2860 = vld [vmem:[%s7 + $0x70] sm:$0xff]
      %v2861 = vld [vmem:[%s7 + $0x78] sm:$0xff]
      %v2862 = vld [vmem:[%s8] sm:$0x1]
      %v2864 = vperm.slane %v2862, 0
      %2866 = vmatpush.msra.mxu0 %v2861
      %2867 = vmatpush.msra.mxu0 %v2860
      %2868 = vmatpush.msra.mxu0 %v2859
      %2869 = vmatpush.msra.mxu0 %v2858
      %2870 = vmatpush.msra.mxu0 %v2857
      %2871 = vmatpush.msra.mxu0 %v2856
      %2872 = vmatpush.msra.mxu0 %v2855
      %2873 = vmatpush.msra.mxu0 %v2854
      %2874 = vmatpush.msra.mxu0 %v2853
      %2875 = vmatpush.msra.mxu0 %v2852
      %2876 = vmatpush.msra.mxu0 %v2851
      %2877 = vmatpush.msra.mxu0 %v2850
      %2878 = vmatpush.msra.mxu0 %v2849
      %2879 = vmatpush.msra.mxu0 %v2848
      %2880 = vmatpush.msra.mxu0 %v2847
      %2881 = vmatpush.msra.mxu0 %v2846
      %2882 = vmatmul.f32.gmra.mxu0 %v2814
      %v2883 = vpop.f32.mrf.mxu0
      %v2884 = vadd.f32 %v2864, %v2883
      %2885 = vmatmul.f32.gmra.mxu0 %v2815
      %v2886 = vpop.f32.mrf.mxu0
      %v2887 = vadd.f32 %v2864, %v2886
      %2888 = vmatmul.f32.gmra.mxu0 %v2816
      %v2889 = vpop.f32.mrf.mxu0
      %v2890 = vadd.f32 %v2864, %v2889
      %2891 = vmatmul.f32.gmra.mxu0 %v2817
      %v2892 = vpop.f32.mrf.mxu0
      %v2893 = vadd.f32 %v2864, %v2892
      %2894 = vmatmul.f32.gmra.mxu0 %v2818
      %v2895 = vpop.f32.mrf.mxu0
      %v2896 = vadd.f32 %v2864, %v2895
      %2897 = vmatmul.f32.gmra.mxu0 %v2819
      %v2898 = vpop.f32.mrf.mxu0
      %v2899 = vadd.f32 %v2864, %v2898
      %2900 = vmatmul.f32.gmra.mxu0 %v2820
      %v2901 = vpop.f32.mrf.mxu0
      %v2902 = vadd.f32 %v2864, %v2901
      %2903 = vmatmul.f32.gmra.mxu0 %v2821
      %v2904 = vpop.f32.mrf.mxu0
      %v2905 = vadd.f32 %v2864, %v2904
      %2906 = vmatmul.f32.gmra.mxu0 %v2822
      %v2907 = vpop.f32.mrf.mxu0
      %v2908 = vadd.f32 %v2864, %v2907
      %2909 = vmatmul.f32.gmra.mxu0 %v2823
      %v2910 = vpop.f32.mrf.mxu0
      %v2911 = vadd.f32 %v2864, %v2910
      %2912 = vmatmul.f32.gmra.mxu0 %v2824
      %v2913 = vpop.f32.mrf.mxu0
      %v2914 = vadd.f32 %v2864, %v2913
      %2915 = vmatmul.f32.gmra.mxu0 %v2825
      %v2916 = vpop.f32.mrf.mxu0
      %v2917 = vadd.f32 %v2864, %v2916
      %2918 = vmatmul.f32.gmra.mxu0 %v2826
      %v2919 = vpop.f32.mrf.mxu0
      %v2920 = vadd.f32 %v2864, %v2919
      %2921 = vmatmul.f32.gmra.mxu0 %v2827
      %v2922 = vpop.f32.mrf.mxu0
      %v2923 = vadd.f32 %v2864, %v2922
      %2924 = vmatmul.f32.gmra.mxu0 %v2828
      %v2925 = vpop.f32.mrf.mxu0
      %v2926 = vadd.f32 %v2864, %v2925
      %2927 = vmatmul.f32.gmra.mxu0 %v2829
      %v2928 = vpop.f32.mrf.mxu0
      %v2929 = vadd.f32 %v2864, %v2928
      %2930 = vmatmul.f32.gmra.mxu0 %v2830
      %v2931 = vpop.f32.mrf.mxu0
      %v2932 = vadd.f32 %v2864, %v2931
      %2933 = vmatmul.f32.gmra.mxu0 %v2831
      %v2934 = vpop.f32.mrf.mxu0
      %v2935 = vadd.f32 %v2864, %v2934
      %2936 = vmatmul.f32.gmra.mxu0 %v2832
      %v2937 = vpop.f32.mrf.mxu0
      %v2938 = vadd.f32 %v2864, %v2937
      %2939 = vmatmul.f32.gmra.mxu0 %v2833
      %v2940 = vpop.f32.mrf.mxu0
      %v2941 = vadd.f32 %v2864, %v2940
      %2942 = vmatmul.f32.gmra.mxu0 %v2834
      %v2943 = vpop.f32.mrf.mxu0
      %v2944 = vadd.f32 %v2864, %v2943
      %2945 = vmatmul.f32.gmra.mxu0 %v2835
      %v2946 = vpop.f32.mrf.mxu0
      %v2947 = vadd.f32 %v2864, %v2946
      %2948 = vmatmul.f32.gmra.mxu0 %v2836
      %v2949 = vpop.f32.mrf.mxu0
      %v2950 = vadd.f32 %v2864, %v2949
      %2951 = vmatmul.f32.gmra.mxu0 %v2837
      %v2952 = vpop.f32.mrf.mxu0
      %v2953 = vadd.f32 %v2864, %v2952
      %2954 = vmatmul.f32.gmra.mxu0 %v2838
      %v2955 = vpop.f32.mrf.mxu0
      %v2956 = vadd.f32 %v2864, %v2955
      %2957 = vmatmul.f32.gmra.mxu0 %v2839
      %v2958 = vpop.f32.mrf.mxu0
      %v2959 = vadd.f32 %v2864, %v2958
      %2960 = vmatmul.f32.gmra.mxu0 %v2840
      %v2961 = vpop.f32.mrf.mxu0
      %v2962 = vadd.f32 %v2864, %v2961
      %2963 = vmatmul.f32.gmra.mxu0 %v2841
      %v2964 = vpop.f32.mrf.mxu0
      %v2965 = vadd.f32 %v2864, %v2964
      %2966 = vmatmul.f32.gmra.mxu0 %v2842
      %v2967 = vpop.f32.mrf.mxu0
      %v2968 = vadd.f32 %v2864, %v2967
      %2969 = vmatmul.f32.gmra.mxu0 %v2843
      %v2970 = vpop.f32.mrf.mxu0
      %v2971 = vadd.f32 %v2864, %v2970
      %2972 = vmatmul.f32.gmra.mxu0 %v2844
      %v2973 = vpop.f32.mrf.mxu0
      %v2974 = vadd.f32 %v2864, %v2973
      %2975 = vmatmul.f32.gmra.mxu0 %v2845
      %v2976 = vpop.f32.mrf.mxu0
      %v2977 = vadd.f32 %v2864, %v2976
      %2978 = vdwg.mxu0
      %v2979 = vadd.f32 %v2884, %v333
      %v2980 = vadd.f32 %v2887, %v334
      %v2981 = vadd.f32 %v2890, %v335
      %v2982 = vadd.f32 %v2893, %v336
      %v2983 = vadd.f32 %v2896, %v337
      %v2984 = vadd.f32 %v2899, %v338
      %v2985 = vadd.f32 %v2902, %v339
      %v2986 = vadd.f32 %v2905, %v340
      %v2987 = vadd.f32 %v2908, %v341
      %v2988 = vadd.f32 %v2911, %v342
      %v2989 = vadd.f32 %v2914, %v343
      %v2990 = vadd.f32 %v2917, %v344
      %v2991 = vadd.f32 %v2920, %v345
      %v2992 = vadd.f32 %v2923, %v346
      %v2993 = vadd.f32 %v2926, %v347
      %v2994 = vadd.f32 %v2929, %v348
      %v2995 = vadd.f32 %v2932, %v349
      %v2996 = vadd.f32 %v2935, %v350
      %v2997 = vadd.f32 %v2938, %v351
      %v2998 = vadd.f32 %v2941, %v352
      %v2999 = vadd.f32 %v2944, %v353
      %v3000 = vadd.f32 %v2947, %v354
      %v3001 = vadd.f32 %v2950, %v355
      %v3002 = vadd.f32 %v2953, %v356
      %v3003 = vadd.f32 %v2956, %v357
      %v3004 = vadd.f32 %v2959, %v358
      %v3005 = vadd.f32 %v2962, %v359
      %v3006 = vadd.f32 %v2965, %v360
      %v3007 = vadd.f32 %v2968, %v361
      %v3008 = vadd.f32 %v2971, %v362
      %v3009 = vadd.f32 %v2974, %v363
      %v3010 = vadd.f32 %v2977, %v364
      %3011 = vst.msk [vmem:[%s332] sm:$0xff] %vm370, %v2979
      %3012 = vst.msk [vmem:[%s332 + $0x8] sm:$0xff] %vm370, %v2980
      %3013 = vst.msk [vmem:[%s332 + $0x10] sm:$0xff] %vm370, %v2981
      %3014 = vst.msk [vmem:[%s332 + $0x18] sm:$0xff] %vm370, %v2982
      %3015 = vst.msk [vmem:[%s332 + $0x20] sm:$0xff] %vm370, %v2983
      %3016 = vst.msk [vmem:[%s332 + $0x28] sm:$0xff] %vm370, %v2984
      %3017 = vst.msk [vmem:[%s332 + $0x30] sm:$0xff] %vm370, %v2985
      %3018 = vst.msk [vmem:[%s332 + $0x38] sm:$0xff] %vm370, %v2986
      %3019 = vst.msk [vmem:[%s332 + $0x40] sm:$0xff] %vm370, %v2987
      %3020 = vst.msk [vmem:[%s332 + $0x48] sm:$0xff] %vm370, %v2988
      %3021 = vst.msk [vmem:[%s332 + $0x50] sm:$0xff] %vm370, %v2989
      %3022 = vst.msk [vmem:[%s332 + $0x58] sm:$0xff] %vm370, %v2990
      %3023 = vst.msk [vmem:[%s332 + $0x60] sm:$0xff] %vm370, %v2991
      %3024 = vst.msk [vmem:[%s332 + $0x68] sm:$0xff] %vm370, %v2992
      %3025 = vst.msk [vmem:[%s332 + $0x70] sm:$0xff] %vm370, %v2993
      %3026 = vst.msk [vmem:[%s332 + $0x78] sm:$0xff] %vm370, %v2994
      %3027 = vst.msk [vmem:[%s332 + $0x80] sm:$0xff] %vm370, %v2995
      %3028 = vst.msk [vmem:[%s332 + $0x88] sm:$0xff] %vm370, %v2996
      %3029 = vst.msk [vmem:[%s332 + $0x90] sm:$0xff] %vm370, %v2997
      %3030 = vst.msk [vmem:[%s332 + $0x98] sm:$0xff] %vm370, %v2998
      %3031 = vst.msk [vmem:[%s332 + $0xa0] sm:$0xff] %vm370, %v2999
      %3032 = vst.msk [vmem:[%s332 + $0xa8] sm:$0xff] %vm370, %v3000
      %3033 = vst.msk [vmem:[%s332 + $0xb0] sm:$0xff] %vm370, %v3001
      %3034 = vst.msk [vmem:[%s332 + $0xb8] sm:$0xff] %vm370, %v3002
      %3035 = vst.msk [vmem:[%s332 + $0xc0] sm:$0xff] %vm370, %v3003
      %3036 = vst.msk [vmem:[%s332 + $0xc8] sm:$0xff] %vm370, %v3004
      %3037 = vst.msk [vmem:[%s332 + $0xd0] sm:$0xff] %vm370, %v3005
      %3038 = vst.msk [vmem:[%s332 + $0xd8] sm:$0xff] %vm370, %v3006
      %3039 = vst.msk [vmem:[%s332 + $0xe0] sm:$0xff] %vm370, %v3007
      %3040 = vst.msk [vmem:[%s332 + $0xe8] sm:$0xff] %vm370, %v3008
      %3041 = vst.msk [vmem:[%s332 + $0xf0] sm:$0xff] %vm370, %v3009
      %3042 = vst.msk [vmem:[%s332 + $0xf8] sm:$0xff] %vm370, %v3010
      %p3043 = scmp.lt.s32.totalorder %s20, 1
      %s3044 = scalar_select %p3043, %s20, 1
      %s3045 = smul.addr %s3044, 32
      %s3046 = smul.addr %s3045, 8
      %s3047 = scalar_lea.vmem %s9, %s3046
      // Predicated region
      $region57: #{tpu_custom_call.1} parent=55 // pred_check
        %p3048 = pneg %p232
      $region58: #{tpu_custom_call.1} parent=55 // pred_check_branch
        %3050 = sbr.rel (%p3048) target = $region60
      $region59: #{tpu_custom_call.1} parent=55 // pred_region
        _
      $region60: #{tpu_custom_call.1} parent=55 // pred_fallthru
        _
    $region56: #{tpu_custom_call.1} parent=5 // pred_fallthru
      _
    %p3051 = scmp.le.s32.totalorder 2, %s15
    // Predicated region
    $region61: #{tpu_custom_call.1} parent=5 // pred_check
      %p3052 = pneg %p3051
    $region62: #{tpu_custom_call.1} parent=5 // pred_check_branch
      %3054 = sbr.rel (%p3052) target = $region64
    $region63: #{tpu_custom_call.1} parent=5 // pred_region
      %s3055 = ssub.s32 %s15, 2
      // Predicated region
      $region65: #{tpu_custom_call.1} parent=63 // pred_check
        %p3056 = pneg %p238
      $region66: #{tpu_custom_call.1} parent=63 // pred_check_branch
        %3058 = sbr.rel (%p3056) target = $region68
      $region67: #{tpu_custom_call.1} parent=63 // pred_region
        %p3059 = scmp.lt.s32.totalorder %s21, 1
        %s3060 = scalar_select %p3059, %s21, 1
        %s3061 = smul.addr %s3060, 32
        %s3062 = smul.addr %s3061, 8
        %s3063 = scalar_lea.vmem %s9, %s3062
      $region68: #{tpu_custom_call.1} parent=63 // pred_fallthru
        _
    $region64: #{tpu_custom_call.1} parent=5 // pred_fallthru
      _
  $region6: #{tpu_custom_call.1} parent=0 // loop_footer
    %s19 = sadd.s32 1, %s15
  $region7: #{tpu_custom_call.1} parent=0 // loop_footer_branch
    %14 = sbr.rel target = $region3
  $region8: #{tpu_custom_call.1} parent=0 // loop_exit
    _

</llo_original>
